<compile_context>
chip_gen: v5e
topology: v5e:2x2
jax: 0.10.0
libtpu: 0.0.40
codegen_flags: <defaults>
</compile_context>

<pallas_src>
import functools

import jax
import jax.numpy as jnp
from jax.experimental import pallas as pl
from jax.experimental.pallas import tpu as pltpu

ALPHABET_SIZE = 256
LANE = 128


def _round_up(x, m):
    return -(-x // m) * m


def _device_kind():
    try:
        return jax.devices()[0].device_kind.lower()
    except Exception:
        return ""


def _emb_kernel(cids_ref, wids_ref, wf_ref, wt_ref, b_ref, o_ref, *, K, cmp_dtype):
    """One grid step: TN rows of fused [word-emb | char-CNN-maxpool] output."""
    cids = cids_ref[...]                          # (TN, WL) int32 char ids
    TN, WL = cids.shape
    A = wf_ref.shape[0]                           # alphabet size (256)
    G = o_ref.shape[1]                            # 128-lane output group
    T = WL - K + 1                                # Conv1d 'valid' output length

    # ---- char path: embedding-gather + Conv1d fused into ONE bf16 MXU matmul.
    # wf[a, k*G + word_dim + d] = (char_table @ conv_w[k])[a, d]; other lanes 0.
    ids3 = cids[:, :, None].astype(cmp_dtype)                        # (TN, WL, 1)
    iota = jax.lax.broadcasted_iota(jnp.int32, (1, 1, A), 2).astype(cmp_dtype)
    onehot = (ids3 == iota).astype(jnp.bfloat16).reshape(TN * WL, A)  # exact 0/1
    y = jnp.dot(onehot, wf_ref[...],
                preferred_element_type=jnp.float32)                  # (TN*WL, K*G)
    y = y.reshape(TN, WL, K * G)

    # Conv1d 'valid' = shift-and-add of K vreg-aligned 128-lane tap groups.
    acc = y[:, 0:T, 0:G]
    for k in range(1, K):                          # K static -> unrolled
        acc = acc + y[:, k:k + T, k * G:(k + 1) * G]                 # (TN, T, G)

    # max over time first; per-channel bias + monotone ReLU commute with max.
    # Padded lanes: relu(max(0) + 0) == 0 exactly.
    char_out = jnp.maximum(jnp.max(acc, axis=1) + b_ref[...], 0.0)   # (TN, G)

    # ---- word path: one-hot gather of word_table rows (tiny f32 matmul).
    wids = wids_ref[...]                                             # (TN, 1) int32
    V = wt_ref.shape[0]
    wiota = jax.lax.broadcasted_iota(jnp.int32, (1, V), 1)
    wonehot = (wids == wiota).astype(jnp.float32)
    word_out = jnp.dot(wonehot, wt_ref[...],
                       preferred_element_type=jnp.float32)           # (TN, G)

    # word_out non-zero only on lanes [0, word_dim), char_out only on
    # [word_dim, word_dim+C): one VPU add composes the concatenated block.
    o_ref[...] = (word_out + char_out).astype(o_ref.dtype)


def fused_embedding(word_ids, char_ids, word_table, char_table, conv_w, conv_b,
                    *, tile_n=None):
    """[word_table[word_ids] || max_t ReLU(Conv1d(char_table[char_ids]))].

    word_ids  : int32 (N,)
    char_ids  : int32 (N, WL)
    word_table: f32   (V, word_dim)
    char_table: f32   (A, C)
    conv_w    : f32   (K, C_in, C_out)   (PyTorch (C_out, C_in, K) transposed)
    conv_b    : f32   (C,)
    returns   : f32   (N, word_dim + C)
    """
    N, WL = char_ids.shape
    V, word_dim = word_table.shape
    A, C = char_table.shape
    K = conv_w.shape[0]
    assert WL >= K, "word length must be >= conv kernel size"
    # TODO(synk): generalize the single 128-lane output-group packing (and use a
    # DMA row-gather instead of the one-hot matmul) when word_dim + C > 128 or
    # the vocabulary is large.
    assert word_dim + C <= LANE, "fused output packing assumes word_dim + C <= 128"

    G = LANE
    off = word_dim                                 # char channels live at [off, off+C)

    # Fuse embedding table into conv weights, lane-padding each tap to 128:
    taps = jnp.einsum('ac,kcd->kad', char_table, conv_w)             # (K, A, C)
    wf = jnp.zeros((K, A, G), jnp.float32).at[:, :, off:off + C].set(taps)
    wf = jnp.transpose(wf, (1, 0, 2)).reshape(A, K * G).astype(jnp.bfloat16)

    b = jnp.zeros((1, G), jnp.float32).at[0, off:off + C].set(conv_b)

    V_pad = _round_up(V, LANE)
    wt = jnp.zeros((V_pad, G), jnp.float32).at[:V, :word_dim].set(word_table)

    # Per-generation knobs.
    kind = _device_kind()
    old_gen = any(t in kind for t in ("v2", "v3", "v4", "v5"))
    is_v7x = ("v7" in kind) or ("7x" in kind)
    cmp_dtype = jnp.int32 if old_gen else jnp.bfloat16   # bf16 VALU on v6e/v7x only
    if tile_n is None:
        tile_n = 256 if is_v7x else 512
    if is_v7x:
        # >= 2 grid steps so the 'parallel' axis shards across both TensorCores.
        tile_n = min(tile_n, max(32, _round_up(-(-N // 2), 32)))
    vmem_limit = (32 if is_v7x else 64) * 1024 * 1024

    TN = min(tile_n, _round_up(max(N, 1), 32))
    N_pad = _round_up(N, TN)

    cids = char_ids.astype(jnp.int32)
    wids = word_ids.reshape(N, 1).astype(jnp.int32)
    if N_pad != N:
        cids = jnp.pad(cids, ((0, N_pad - N), (0, 0)))
        wids = jnp.pad(wids, ((0, N_pad - N), (0, 0)))

    flops = 2 * N_pad * WL * A * (K * G) + 2 * N_pad * V_pad * G
    bytes_accessed = (cids.size * 4 + wids.size * 4 + wf.size * 2
                      + wt.size * 4 + b.size * 4 + N_pad * G * 4)

    kernel = functools.partial(_emb_kernel, K=K, cmp_dtype=cmp_dtype)

    out = pl.pallas_call(
        kernel,
        out_shape=jax.ShapeDtypeStruct((N_pad, G), jnp.float32),
        grid=(N_pad // TN,),
        in_specs=[
            pl.BlockSpec((TN, WL), lambda i: (i, 0)),      # char ids, tiled over N
            pl.BlockSpec((TN, 1), lambda i: (i, 0)),       # word ids, tiled over N
            pl.BlockSpec((A, K * G), lambda i: (0, 0)),    # fused conv table, replicated
            pl.BlockSpec((V_pad, G), lambda i: (0, 0)),    # padded word table, replicated
            pl.BlockSpec((1, G), lambda i: (0, 0)),        # padded conv bias, replicated
        ],
        out_specs=pl.BlockSpec((TN, G), lambda i: (i, 0)),
        compiler_params=pltpu.CompilerParams(
            dimension_semantics=("parallel",),
            vmem_limit_bytes=vmem_limit),
        cost_estimate=pl.CostEstimate(
            flops=flops, transcendentals=0, bytes_accessed=bytes_accessed),
    )(cids, wids, wf, wt, b)
    return out[:N, :word_dim + C]


def init_params(key, vocab_size, word_dim, char_dim, kernel_size):
    k1, k2, k3, k4 = jax.random.split(key, 4)
    char_table = jax.random.normal(k1, (ALPHABET_SIZE, char_dim), jnp.float32)
    word_table = jax.random.normal(k2, (vocab_size, word_dim), jnp.float32)
    # torch Conv1d weight is (C_out, C_in, K); store as (K, C_in, C_out).
    conv_w_torch = jax.random.normal(
        k3, (char_dim, char_dim, kernel_size), jnp.float32) * 0.1
    conv_w = jnp.transpose(conv_w_torch, (2, 1, 0))
    conv_b = jax.random.normal(k4, (char_dim,), jnp.float32) * 0.1
    return dict(char_table=char_table, word_table=word_table,
                conv_w=conv_w, conv_b=conv_b)


@jax.jit
def embedding_forward(encoding, params):
    bs, sl, _ = encoding.shape
    word_ids = encoding[:, :, 0].reshape(bs * sl)          # (bs*sl,)
    char_ids = encoding[:, :, 1:].reshape(bs * sl, -1)     # (bs*sl, wl)
    emb = fused_embedding(word_ids, char_ids,
                          params['word_table'], params['char_table'],
                          params['conv_w'], params['conv_b'])
    return emb.reshape(bs, sl, -1)


def reference_forward(encoding, params):
    # Pure-JAX f32 reference of the PyTorch forward, for a correctness check.
    bs, sl, _ = encoding.shape
    word_ids = encoding[:, :, 0]
    char_ids = encoding[:, :, 1:].reshape(bs * sl, -1)
    x = params['char_table'][char_ids]                     # (N, WL, C)
    K = params['conv_w'].shape[0]
    T = x.shape[1] - K + 1
    acc = jnp.zeros((x.shape[0], T, x.shape[2]), jnp.float32)
    for k in range(K):
        acc = acc + jnp.einsum('ntc,cd->ntd', x[:, k:k + T, :],
                               params['conv_w'][k])
    acc = jax.nn.relu(acc + params['conv_b'][None, None, :])
    c_emb = jnp.max(acc, axis=1).reshape(bs, sl, -1)
    w_emb = params['word_table'][word_ids]
    return jnp.concatenate([w_emb, c_emb], axis=2)


if __name__ == "__main__":
    key = jax.random.PRNGKey(0)
    kp, kw, kc = jax.random.split(key, 3)

    vocab_size, word_dim, char_dim, kernel_size = 100, 32, 32, 3
    bs, sl, wl = 2, 8, 16

    params = init_params(kp, vocab_size, word_dim, char_dim, kernel_size)

    word_ids = jax.random.randint(kw, (bs, sl, 1), 0, vocab_size, jnp.int32)
    char_ids = jax.random.randint(kc, (bs, sl, wl), 0, ALPHABET_SIZE, jnp.int32)
    encoding = jnp.concatenate([word_ids, char_ids], axis=2)   # (2, 8, 17)

    out = jax.block_until_ready(embedding_forward(encoding, params))
    ref = reference_forward(encoding, params)

    assert out.shape == (bs, sl, word_dim + char_dim), out.shape
    assert jnp.allclose(out, ref, atol=1e-2, rtol=1e-2), \
        float(jnp.max(jnp.abs(out - ref)))
    print("KERNEL_OK")
</pallas_src>

<mosaic_0001>
module attributes {stable_mosaic.version = 11 : i64} {
  func.func @_emb_kernel(%arg0: i32, %arg1: memref<32x16xi32, #tpu.memory_space<vmem>>, %arg2: memref<32x1xi32, #tpu.memory_space<vmem>>, %arg3: memref<256x384xbf16, #tpu.memory_space<vmem>>, %arg4: memref<128x128xf32, #tpu.memory_space<vmem>>, %arg5: memref<1x128xf32, #tpu.memory_space<vmem>>, %arg6: memref<32x128xf32, #tpu.memory_space<vmem>>) attributes {dimension_semantics = [#tpu.dimension_semantics<parallel>], iteration_bounds = array<i64: 1>, scalar_prefetch = 0 : i64, scratch_operands = 0 : i64, tpu.core_type = #tpu.core_type<tc>, window_params = [{transform_indices = @transform_0, window_bounds = array<i64: 32, 16>}, {transform_indices = @transform_1, window_bounds = array<i64: 32, 1>}, {pipeline_mode = #tpu.pipeline_mode<synchronous>, transform_indices = @transform_2, window_bounds = array<i64: 256, 384>}, {pipeline_mode = #tpu.pipeline_mode<synchronous>, transform_indices = @transform_3, window_bounds = array<i64: 128, 128>}, {pipeline_mode = #tpu.pipeline_mode<synchronous>, transform_indices = @transform_4, window_bounds = array<i64: 1, 128>}, {transform_indices = @transform_5, window_bounds = array<i64: 32, 128>}]} {
    %c0 = arith.constant 0 : index
    %c0_0 = arith.constant 0 : index
    %0 = vector.load %arg1[%c0, %c0_0] : memref<32x16xi32, #tpu.memory_space<vmem>>, vector<32x16xi32>
    %1 = vector.shape_cast %0 : vector<32x16xi32> to vector<32x16x1xi32>
    %2 = arith.sitofp %1 : vector<32x16x1xi32> to vector<32x16x1xbf16>
    %3 = tpu.iota {dimensions = array<i32: 2>} : vector<1x1x256xi32>
    %4 = arith.sitofp %3 : vector<1x1x256xi32> to vector<1x1x256xbf16>
    %5 = vector.broadcast %2 : vector<32x16x1xbf16> to vector<32x16x256xbf16>
    %6 = vector.broadcast %4 : vector<1x1x256xbf16> to vector<32x16x256xbf16>
    %7 = arith.cmpf oeq, %5, %6 : vector<32x16x256xbf16>
    %8 = arith.extui %7 : vector<32x16x256xi1> to vector<32x16x256xi32>
    %9 = arith.sitofp %8 : vector<32x16x256xi32> to vector<32x16x256xf32>
    %10 = arith.truncf %9 : vector<32x16x256xf32> to vector<32x16x256xbf16>
    %11 = vector.shape_cast %10 : vector<32x16x256xbf16> to vector<512x256xbf16>
    %c0_1 = arith.constant 0 : index
    %c0_2 = arith.constant 0 : index
    %12 = vector.load %arg3[%c0_1, %c0_2] : memref<256x384xbf16, #tpu.memory_space<vmem>>, vector<256x384xbf16>
    %cst = arith.constant dense<0.000000e+00> : vector<512x384xf32>
    %13 = tpu.matmul %11, %12, %cst {dimension_numbers = #tpu.dot_dimension_numbers<[1], [0], [0], [1], [0, 0, 1, 1], [], []>} : vector<512x256xbf16>, vector<256x384xbf16>, vector<512x384xf32> -> vector<512x384xf32>
    %14 = vector.shape_cast %13 : vector<512x384xf32> to vector<32x16x384xf32>
    %15 = vector.extract_strided_slice %14 {offsets = [0, 0, 0], sizes = [32, 14, 128], strides = [1, 1, 1]} : vector<32x16x384xf32> to vector<32x14x128xf32>
    %16 = vector.extract_strided_slice %14 {offsets = [0, 1, 128], sizes = [32, 14, 128], strides = [1, 1, 1]} : vector<32x16x384xf32> to vector<32x14x128xf32>
    %17 = arith.addf %15, %16 : vector<32x14x128xf32>
    %18 = vector.extract_strided_slice %14 {offsets = [0, 2, 256], sizes = [32, 14, 128], strides = [1, 1, 1]} : vector<32x16x384xf32> to vector<32x14x128xf32>
    %19 = arith.addf %17, %18 : vector<32x14x128xf32>
    %cst_3 = arith.constant dense<0xFF800000> : vector<32x128xf32>
    %20 = vector.multi_reduction <maximumf>, %19, %cst_3 [1] : vector<32x14x128xf32> to vector<32x128xf32>
    %c0_4 = arith.constant 0 : index
    %c0_5 = arith.constant 0 : index
    %21 = vector.load %arg5[%c0_4, %c0_5] : memref<1x128xf32, #tpu.memory_space<vmem>>, vector<1x128xf32>
    %22 = vector.broadcast %21 : vector<1x128xf32> to vector<32x128xf32>
    %23 = arith.addf %20, %22 : vector<32x128xf32>
    %cst_6 = arith.constant 0.000000e+00 : f32
    %24 = vector.broadcast %cst_6 : f32 to vector<32x128xf32>
    %25 = arith.maximumf %23, %24 : vector<32x128xf32>
    %c0_7 = arith.constant 0 : index
    %c0_8 = arith.constant 0 : index
    %26 = vector.load %arg2[%c0_7, %c0_8] : memref<32x1xi32, #tpu.memory_space<vmem>>, vector<32x1xi32>
    %27 = tpu.iota {dimensions = array<i32: 1>} : vector<1x128xi32>
    %28 = vector.broadcast %26 : vector<32x1xi32> to vector<32x128xi32>
    %29 = vector.broadcast %27 : vector<1x128xi32> to vector<32x128xi32>
    %30 = arith.cmpi eq, %28, %29 : vector<32x128xi32>
    %31 = arith.extui %30 : vector<32x128xi1> to vector<32x128xi32>
    %32 = arith.sitofp %31 : vector<32x128xi32> to vector<32x128xf32>
    %c0_9 = arith.constant 0 : index
    %c0_10 = arith.constant 0 : index
    %33 = vector.load %arg4[%c0_9, %c0_10] : memref<128x128xf32, #tpu.memory_space<vmem>>, vector<128x128xf32>
    %cst_11 = arith.constant dense<0.000000e+00> : vector<32x128xf32>
    %34 = tpu.matmul %32, %33, %cst_11 {dimension_numbers = #tpu.dot_dimension_numbers<[1], [0], [0], [1], [0, 0, 1, 1], [], []>} : vector<32x128xf32>, vector<128x128xf32>, vector<32x128xf32> -> vector<32x128xf32>
    %35 = arith.addf %34, %25 : vector<32x128xf32>
    %c0_12 = arith.constant 0 : index
    %c0_13 = arith.constant 0 : index
    %36 = vector.load %arg6[%c0_12, %c0_13] : memref<32x128xf32, #tpu.memory_space<vmem>>, vector<32x128xf32>
    tpu.vector_store %arg6[%c0_12, %c0_13], %35 {strides = array<i32>} : memref<32x128xf32, #tpu.memory_space<vmem>>, vector<32x128xf32>,
    return
  }
  func.func @transform_0(%arg0: i32) -> (i32, i32) {
    %c0_i32 = arith.constant 0 : i32
    %c0_i32_0 = arith.constant 0 : i32
    return %arg0, %c0_i32 : i32, i32
  }
  func.func @transform_1(%arg0: i32) -> (i32, i32) {
    %c0_i32 = arith.constant 0 : i32
    %c0_i32_0 = arith.constant 0 : i32
    return %arg0, %c0_i32 : i32, i32
  }
  func.func @transform_2(%arg0: i32) -> (i32, i32) {
    %c0_i32 = arith.constant 0 : i32
    %c0_i32_0 = arith.constant 0 : i32
    %c0_i32_1 = arith.constant 0 : i32
    return %c0_i32, %c0_i32_0 : i32, i32
  }
  func.func @transform_3(%arg0: i32) -> (i32, i32) {
    %c0_i32 = arith.constant 0 : i32
    %c0_i32_0 = arith.constant 0 : i32
    %c0_i32_1 = arith.constant 0 : i32
    return %c0_i32, %c0_i32_0 : i32, i32
  }
  func.func @transform_4(%arg0: i32) -> (i32, i32) {
    %c0_i32 = arith.constant 0 : i32
    %c0_i32_0 = arith.constant 0 : i32
    %c0_i32_1 = arith.constant 0 : i32
    return %c0_i32, %c0_i32_0 : i32, i32
  }
  func.func @transform_5(%arg0: i32) -> (i32, i32) {
    %c0_i32 = arith.constant 0 : i32
    %c0_i32_0 = arith.constant 0 : i32
    return %arg0, %c0_i32 : i32, i32
  }
}

</mosaic_0001>

<llo_original>
// kernel: embedding_forward.1
$region0: #{embedding_forward.1}
  #allocation0 [shape = 'u32[]', space=smem, size = 0x4, offset = 0x4, fixed_abs, tag = 'smem constant byte address 0x4 - core index']
  #allocation1 [shape = 'u32[72,128]{1,0:T(1,128)}', space=vmem, size = 0x9000, scoped, tag = 'internal scratch']
  %s0 = inlined_call_operand.vmem [shape: s32[32,16], index: 0, kind: input, shape index: {}]
  %s1 = inlined_call_operand.vmem [shape: s32[32,1], index: 1, kind: input, shape index: {}]
  %s2 = inlined_call_operand.vmem [shape: bf16[256,384], index: 2, kind: input, shape index: {}]
  %s3 = inlined_call_operand.vmem [shape: f32[128,128], index: 3, kind: input, shape index: {}]
  %s4 = inlined_call_operand.vmem [shape: f32[1,128], index: 4, kind: input, shape index: {}]
  %s5 = inlined_call_operand.vmem [shape: f32[32,128], index: 5, kind: output, shape index: {}]
  %s6 = sld [smem:[#allocation0]]
  $region30: #{embedding_forward.1} parent=0
    _
  %s8 = ssub.s32 1, %s6
  %s9 = scalar_select 0, %s8, %s6
  // Predicated region
  $region2: #{embedding_forward.1} parent=0 // pred_check
    _
  $region3: #{embedding_forward.1} parent=0 // pred_check_branch
    %11 = sbr.rel (0) target = $region5
  $region4: #{embedding_forward.1} parent=0 // pred_region
    _
  $region5: #{embedding_forward.1} parent=0 // pred_fallthru
    _
  // Predicated region
  $region6: #{embedding_forward.1} parent=0 // pred_check
    _
  $region7: #{embedding_forward.1} parent=0 // pred_check_branch
    %13 = sbr.rel (0) target = $region9
  $region8: #{embedding_forward.1} parent=0 // pred_region
    _
  $region9: #{embedding_forward.1} parent=0 // pred_fallthru
    _
  // Predicated region
  $region10: #{embedding_forward.1} parent=0 // pred_check
    _
  $region11: #{embedding_forward.1} parent=0 // pred_check_branch
    %15 = sbr.rel (0) target = $region13
  $region12: #{embedding_forward.1} parent=0 // pred_region
    _
  $region13: #{embedding_forward.1} parent=0 // pred_fallthru
    _
  // Predicated region
  $region14: #{embedding_forward.1} parent=0 // pred_check
    _
  $region15: #{embedding_forward.1} parent=0 // pred_check_branch
    %17 = sbr.rel (0) target = $region17
  $region16: #{embedding_forward.1} parent=0 // pred_region
    _
  $region17: #{embedding_forward.1} parent=0 // pred_fallthru
    _
  // Predicated region
  $region18: #{embedding_forward.1} parent=0 // pred_check
    _
  $region19: #{embedding_forward.1} parent=0 // pred_check_branch
    %19 = sbr.rel (0) target = $region21
  $region20: #{embedding_forward.1} parent=0 // pred_region
    _
  $region21: #{embedding_forward.1} parent=0 // pred_fallthru
    _
  %v20 = vld [vmem:[%s0] sm:$0xff]
  %v21 = vld [vmem:[%s0 + $0x8] sm:$0xff]
  %v22 = vld [vmem:[%s0 + $0x10] sm:$0xff]
  %v23 = vld [vmem:[%s0 + $0x18] sm:$0xff]
  %v24 = vperm.slane %v20, 0
  %v25 = vlaneseq
  %v26 = vshrl.u32 %v25, 7
  %28 = vset.pattern.permute.xlu0 %v26
  %29 = vperm.xlu0 %28, %v24
  %v30 = vpop.permute.xlu0 %29
  %v31 = vlaneseq
  %v32 = vshrl.u32 %v31, 7
  %v33 = vadd.s32 %v32, 8
  %34 = vset.pattern.permute.xlu0 %v33
  %35 = vperm.xlu0 %34, %v24
  %v36 = vpop.permute.xlu0 %35
  %v37 = vperm.slane %v20, 1
  %v38 = vlaneseq
  %v39 = vshrl.u32 %v38, 7
  %41 = vset.pattern.permute.xlu0 %v39
  %42 = vperm.xlu0 %41, %v37
  %v43 = vpop.permute.xlu0 %42
  %v44 = vlaneseq
  %v45 = vshrl.u32 %v44, 7
  %v46 = vadd.s32 %v45, 8
  %47 = vset.pattern.permute.xlu0 %v46
  %48 = vperm.xlu0 %47, %v37
  %v49 = vpop.permute.xlu0 %48
  %v50 = vperm.slane %v20, 2
  %v51 = vlaneseq
  %v52 = vshrl.u32 %v51, 7
  %54 = vset.pattern.permute.xlu0 %v52
  %55 = vperm.xlu0 %54, %v50
  %v56 = vpop.permute.xlu0 %55
  %v57 = vlaneseq
  %v58 = vshrl.u32 %v57, 7
  %v59 = vadd.s32 %v58, 8
  %60 = vset.pattern.permute.xlu0 %v59
  %61 = vperm.xlu0 %60, %v50
  %v62 = vpop.permute.xlu0 %61
  %v63 = vperm.slane %v20, 3
  %v64 = vlaneseq
  %v65 = vshrl.u32 %v64, 7
  %67 = vset.pattern.permute.xlu0 %v65
  %68 = vperm.xlu0 %67, %v63
  %v69 = vpop.permute.xlu0 %68
  %v70 = vlaneseq
  %v71 = vshrl.u32 %v70, 7
  %v72 = vadd.s32 %v71, 8
  %73 = vset.pattern.permute.xlu0 %v72
  %74 = vperm.xlu0 %73, %v63
  %v75 = vpop.permute.xlu0 %74
  %v76 = vperm.slane %v20, 4
  %v77 = vlaneseq
  %v78 = vshrl.u32 %v77, 7
  %80 = vset.pattern.permute.xlu0 %v78
  %81 = vperm.xlu0 %80, %v76
  %v82 = vpop.permute.xlu0 %81
  %v83 = vlaneseq
  %v84 = vshrl.u32 %v83, 7
  %v85 = vadd.s32 %v84, 8
  %86 = vset.pattern.permute.xlu0 %v85
  %87 = vperm.xlu0 %86, %v76
  %v88 = vpop.permute.xlu0 %87
  %v89 = vperm.slane %v20, 5
  %v90 = vlaneseq
  %v91 = vshrl.u32 %v90, 7
  %93 = vset.pattern.permute.xlu0 %v91
  %94 = vperm.xlu0 %93, %v89
  %v95 = vpop.permute.xlu0 %94
  %v96 = vlaneseq
  %v97 = vshrl.u32 %v96, 7
  %v98 = vadd.s32 %v97, 8
  %99 = vset.pattern.permute.xlu0 %v98
  %100 = vperm.xlu0 %99, %v89
  %v101 = vpop.permute.xlu0 %100
  %v102 = vperm.slane %v20, 6
  %v103 = vlaneseq
  %v104 = vshrl.u32 %v103, 7
  %106 = vset.pattern.permute.xlu0 %v104
  %107 = vperm.xlu0 %106, %v102
  %v108 = vpop.permute.xlu0 %107
  %v109 = vlaneseq
  %v110 = vshrl.u32 %v109, 7
  %v111 = vadd.s32 %v110, 8
  %112 = vset.pattern.permute.xlu0 %v111
  %113 = vperm.xlu0 %112, %v102
  %v114 = vpop.permute.xlu0 %113
  %v115 = vperm.slane %v20, 7
  %v116 = vlaneseq
  %v117 = vshrl.u32 %v116, 7
  %119 = vset.pattern.permute.xlu0 %v117
  %120 = vperm.xlu0 %119, %v115
  %v121 = vpop.permute.xlu0 %120
  %v122 = vlaneseq
  %v123 = vshrl.u32 %v122, 7
  %v124 = vadd.s32 %v123, 8
  %125 = vset.pattern.permute.xlu0 %v124
  %126 = vperm.xlu0 %125, %v115
  %v127 = vpop.permute.xlu0 %126
  %v128 = vperm.slane %v21, 0
  %v129 = vlaneseq
  %v130 = vshrl.u32 %v129, 7
  %132 = vset.pattern.permute.xlu0 %v130
  %133 = vperm.xlu0 %132, %v128
  %v134 = vpop.permute.xlu0 %133
  %v135 = vlaneseq
  %v136 = vshrl.u32 %v135, 7
  %v137 = vadd.s32 %v136, 8
  %138 = vset.pattern.permute.xlu0 %v137
  %139 = vperm.xlu0 %138, %v128
  %v140 = vpop.permute.xlu0 %139
  %v141 = vperm.slane %v21, 1
  %v142 = vlaneseq
  %v143 = vshrl.u32 %v142, 7
  %145 = vset.pattern.permute.xlu0 %v143
  %146 = vperm.xlu0 %145, %v141
  %v147 = vpop.permute.xlu0 %146
  %v148 = vlaneseq
  %v149 = vshrl.u32 %v148, 7
  %v150 = vadd.s32 %v149, 8
  %151 = vset.pattern.permute.xlu0 %v150
  %152 = vperm.xlu0 %151, %v141
  %v153 = vpop.permute.xlu0 %152
  %v154 = vperm.slane %v21, 2
  %v155 = vlaneseq
  %v156 = vshrl.u32 %v155, 7
  %158 = vset.pattern.permute.xlu0 %v156
  %159 = vperm.xlu0 %158, %v154
  %v160 = vpop.permute.xlu0 %159
  %v161 = vlaneseq
  %v162 = vshrl.u32 %v161, 7
  %v163 = vadd.s32 %v162, 8
  %164 = vset.pattern.permute.xlu0 %v163
  %165 = vperm.xlu0 %164, %v154
  %v166 = vpop.permute.xlu0 %165
  %v167 = vperm.slane %v21, 3
  %v168 = vlaneseq
  %v169 = vshrl.u32 %v168, 7
  %171 = vset.pattern.permute.xlu0 %v169
  %172 = vperm.xlu0 %171, %v167
  %v173 = vpop.permute.xlu0 %172
  %v174 = vlaneseq
  %v175 = vshrl.u32 %v174, 7
  %v176 = vadd.s32 %v175, 8
  %177 = vset.pattern.permute.xlu0 %v176
  %178 = vperm.xlu0 %177, %v167
  %v179 = vpop.permute.xlu0 %178
  %v180 = vperm.slane %v21, 4
  %v181 = vlaneseq
  %v182 = vshrl.u32 %v181, 7
  %184 = vset.pattern.permute.xlu0 %v182
  %185 = vperm.xlu0 %184, %v180
  %v186 = vpop.permute.xlu0 %185
  %v187 = vlaneseq
  %v188 = vshrl.u32 %v187, 7
  %v189 = vadd.s32 %v188, 8
  %190 = vset.pattern.permute.xlu0 %v189
  %191 = vperm.xlu0 %190, %v180
  %v192 = vpop.permute.xlu0 %191
  %v193 = vperm.slane %v21, 5
  %v194 = vlaneseq
  %v195 = vshrl.u32 %v194, 7
  %197 = vset.pattern.permute.xlu0 %v195
  %198 = vperm.xlu0 %197, %v193
  %v199 = vpop.permute.xlu0 %198
  %v200 = vlaneseq
  %v201 = vshrl.u32 %v200, 7
  %v202 = vadd.s32 %v201, 8
  %203 = vset.pattern.permute.xlu0 %v202
  %204 = vperm.xlu0 %203, %v193
  %v205 = vpop.permute.xlu0 %204
  %v206 = vperm.slane %v21, 6
  %v207 = vlaneseq
  %v208 = vshrl.u32 %v207, 7
  %210 = vset.pattern.permute.xlu0 %v208
  %211 = vperm.xlu0 %210, %v206
  %v212 = vpop.permute.xlu0 %211
  %v213 = vlaneseq
  %v214 = vshrl.u32 %v213, 7
  %v215 = vadd.s32 %v214, 8
  %216 = vset.pattern.permute.xlu0 %v215
  %217 = vperm.xlu0 %216, %v206
  %v218 = vpop.permute.xlu0 %217
  %v219 = vperm.slane %v21, 7
  %v220 = vlaneseq
  %v221 = vshrl.u32 %v220, 7
  %223 = vset.pattern.permute.xlu0 %v221
  %224 = vperm.xlu0 %223, %v219
  %v225 = vpop.permute.xlu0 %224
  %v226 = vlaneseq
  %v227 = vshrl.u32 %v226, 7
  %v228 = vadd.s32 %v227, 8
  %229 = vset.pattern.permute.xlu0 %v228
  %230 = vperm.xlu0 %229, %v219
  %v231 = vpop.permute.xlu0 %230
  %v232 = vperm.slane %v22, 0
  %v233 = vlaneseq
  %v234 = vshrl.u32 %v233, 7
  %236 = vset.pattern.permute.xlu0 %v234
  %237 = vperm.xlu0 %236, %v232
  %v238 = vpop.permute.xlu0 %237
  %v239 = vlaneseq
  %v240 = vshrl.u32 %v239, 7
  %v241 = vadd.s32 %v240, 8
  %242 = vset.pattern.permute.xlu0 %v241
  %243 = vperm.xlu0 %242, %v232
  %v244 = vpop.permute.xlu0 %243
  %v245 = vperm.slane %v22, 1
  %v246 = vlaneseq
  %v247 = vshrl.u32 %v246, 7
  %249 = vset.pattern.permute.xlu0 %v247
  %250 = vperm.xlu0 %249, %v245
  %v251 = vpop.permute.xlu0 %250
  %v252 = vlaneseq
  %v253 = vshrl.u32 %v252, 7
  %v254 = vadd.s32 %v253, 8
  %255 = vset.pattern.permute.xlu0 %v254
  %256 = vperm.xlu0 %255, %v245
  %v257 = vpop.permute.xlu0 %256
  %v258 = vperm.slane %v22, 2
  %v259 = vlaneseq
  %v260 = vshrl.u32 %v259, 7
  %262 = vset.pattern.permute.xlu0 %v260
  %263 = vperm.xlu0 %262, %v258
  %v264 = vpop.permute.xlu0 %263
  %v265 = vlaneseq
  %v266 = vshrl.u32 %v265, 7
  %v267 = vadd.s32 %v266, 8
  %268 = vset.pattern.permute.xlu0 %v267
  %269 = vperm.xlu0 %268, %v258
  %v270 = vpop.permute.xlu0 %269
  %v271 = vperm.slane %v22, 3
  %v272 = vlaneseq
  %v273 = vshrl.u32 %v272, 7
  %275 = vset.pattern.permute.xlu0 %v273
  %276 = vperm.xlu0 %275, %v271
  %v277 = vpop.permute.xlu0 %276
  %v278 = vlaneseq
  %v279 = vshrl.u32 %v278, 7
  %v280 = vadd.s32 %v279, 8
  %281 = vset.pattern.permute.xlu0 %v280
  %282 = vperm.xlu0 %281, %v271
  %v283 = vpop.permute.xlu0 %282
  %v284 = vperm.slane %v22, 4
  %v285 = vlaneseq
  %v286 = vshrl.u32 %v285, 7
  %288 = vset.pattern.permute.xlu0 %v286
  %289 = vperm.xlu0 %288, %v284
  %v290 = vpop.permute.xlu0 %289
  %v291 = vlaneseq
  %v292 = vshrl.u32 %v291, 7
  %v293 = vadd.s32 %v292, 8
  %294 = vset.pattern.permute.xlu0 %v293
  %295 = vperm.xlu0 %294, %v284
  %v296 = vpop.permute.xlu0 %295
  %v297 = vperm.slane %v22, 5
  %v298 = vlaneseq
  %v299 = vshrl.u32 %v298, 7
  %301 = vset.pattern.permute.xlu0 %v299
  %302 = vperm.xlu0 %301, %v297
  %v303 = vpop.permute.xlu0 %302
  %v304 = vlaneseq
  %v305 = vshrl.u32 %v304, 7
  %v306 = vadd.s32 %v305, 8
  %307 = vset.pattern.permute.xlu0 %v306
  %308 = vperm.xlu0 %307, %v297
  %v309 = vpop.permute.xlu0 %308
  %v310 = vperm.slane %v22, 6
  %v311 = vlaneseq
  %v312 = vshrl.u32 %v311, 7
  %314 = vset.pattern.permute.xlu0 %v312
  %315 = vperm.xlu0 %314, %v310
  %v316 = vpop.permute.xlu0 %315
  %v317 = vlaneseq
  %v318 = vshrl.u32 %v317, 7
  %v319 = vadd.s32 %v318, 8
  %320 = vset.pattern.permute.xlu0 %v319
  %321 = vperm.xlu0 %320, %v310
  %v322 = vpop.permute.xlu0 %321
  %v323 = vperm.slane %v22, 7
  %v324 = vlaneseq
  %v325 = vshrl.u32 %v324, 7
  %327 = vset.pattern.permute.xlu0 %v325
  %328 = vperm.xlu0 %327, %v323
  %v329 = vpop.permute.xlu0 %328
  %v330 = vlaneseq
  %v331 = vshrl.u32 %v330, 7
  %v332 = vadd.s32 %v331, 8
  %333 = vset.pattern.permute.xlu0 %v332
  %334 = vperm.xlu0 %333, %v323
  %v335 = vpop.permute.xlu0 %334
  %v336 = vperm.slane %v23, 0
  %v337 = vlaneseq
  %v338 = vshrl.u32 %v337, 7
  %340 = vset.pattern.permute.xlu0 %v338
  %341 = vperm.xlu0 %340, %v336
  %v342 = vpop.permute.xlu0 %341
  %v343 = vlaneseq
  %v344 = vshrl.u32 %v343, 7
  %v345 = vadd.s32 %v344, 8
  %346 = vset.pattern.permute.xlu0 %v345
  %347 = vperm.xlu0 %346, %v336
  %v348 = vpop.permute.xlu0 %347
  %v349 = vperm.slane %v23, 1
  %v350 = vlaneseq
  %v351 = vshrl.u32 %v350, 7
  %353 = vset.pattern.permute.xlu0 %v351
  %354 = vperm.xlu0 %353, %v349
  %v355 = vpop.permute.xlu0 %354
  %v356 = vlaneseq
  %v357 = vshrl.u32 %v356, 7
  %v358 = vadd.s32 %v357, 8
  %359 = vset.pattern.permute.xlu0 %v358
  %360 = vperm.xlu0 %359, %v349
  %v361 = vpop.permute.xlu0 %360
  %v362 = vperm.slane %v23, 2
  %v363 = vlaneseq
  %v364 = vshrl.u32 %v363, 7
  %366 = vset.pattern.permute.xlu0 %v364
  %367 = vperm.xlu0 %366, %v362
  %v368 = vpop.permute.xlu0 %367
  %v369 = vlaneseq
  %v370 = vshrl.u32 %v369, 7
  %v371 = vadd.s32 %v370, 8
  %372 = vset.pattern.permute.xlu0 %v371
  %373 = vperm.xlu0 %372, %v362
  %v374 = vpop.permute.xlu0 %373
  %v375 = vperm.slane %v23, 3
  %v376 = vlaneseq
  %v377 = vshrl.u32 %v376, 7
  %379 = vset.pattern.permute.xlu0 %v377
  %380 = vperm.xlu0 %379, %v375
  %v381 = vpop.permute.xlu0 %380
  %v382 = vlaneseq
  %v383 = vshrl.u32 %v382, 7
  %v384 = vadd.s32 %v383, 8
  %385 = vset.pattern.permute.xlu0 %v384
  %386 = vperm.xlu0 %385, %v375
  %v387 = vpop.permute.xlu0 %386
  %v388 = vperm.slane %v23, 4
  %v389 = vlaneseq
  %v390 = vshrl.u32 %v389, 7
  %392 = vset.pattern.permute.xlu0 %v390
  %393 = vperm.xlu0 %392, %v388
  %v394 = vpop.permute.xlu0 %393
  %v395 = vlaneseq
  %v396 = vshrl.u32 %v395, 7
  %v397 = vadd.s32 %v396, 8
  %398 = vset.pattern.permute.xlu0 %v397
  %399 = vperm.xlu0 %398, %v388
  %v400 = vpop.permute.xlu0 %399
  %v401 = vperm.slane %v23, 5
  %v402 = vlaneseq
  %v403 = vshrl.u32 %v402, 7
  %405 = vset.pattern.permute.xlu0 %v403
  %406 = vperm.xlu0 %405, %v401
  %v407 = vpop.permute.xlu0 %406
  %v408 = vlaneseq
  %v409 = vshrl.u32 %v408, 7
  %v410 = vadd.s32 %v409, 8
  %411 = vset.pattern.permute.xlu0 %v410
  %412 = vperm.xlu0 %411, %v401
  %v413 = vpop.permute.xlu0 %412
  %v414 = vperm.slane %v23, 6
  %v415 = vlaneseq
  %v416 = vshrl.u32 %v415, 7
  %418 = vset.pattern.permute.xlu0 %v416
  %419 = vperm.xlu0 %418, %v414
  %v420 = vpop.permute.xlu0 %419
  %v421 = vlaneseq
  %v422 = vshrl.u32 %v421, 7
  %v423 = vadd.s32 %v422, 8
  %424 = vset.pattern.permute.xlu0 %v423
  %425 = vperm.xlu0 %424, %v414
  %v426 = vpop.permute.xlu0 %425
  %v427 = vperm.slane %v23, 7
  %v428 = vlaneseq
  %v429 = vshrl.u32 %v428, 7
  %431 = vset.pattern.permute.xlu0 %v429
  %432 = vperm.xlu0 %431, %v427
  %v433 = vpop.permute.xlu0 %432
  %v434 = vlaneseq
  %v435 = vshrl.u32 %v434, 7
  %v436 = vadd.s32 %v435, 8
  %437 = vset.pattern.permute.xlu0 %v436
  %438 = vperm.xlu0 %437, %v427
  %v439 = vpop.permute.xlu0 %438
  %v440 = vcvt.s32.f32 %v30
  %v441 = vcvt.s32.f32 %v36
  %v442 = vcvt.s32.f32 %v43
  %v443 = vcvt.s32.f32 %v49
  %v444 = vcvt.s32.f32 %v56
  %v445 = vcvt.s32.f32 %v62
  %v446 = vcvt.s32.f32 %v69
  %v447 = vcvt.s32.f32 %v75
  %v448 = vcvt.s32.f32 %v82
  %v449 = vcvt.s32.f32 %v88
  %v450 = vcvt.s32.f32 %v95
  %v451 = vcvt.s32.f32 %v101
  %v452 = vcvt.s32.f32 %v108
  %v453 = vcvt.s32.f32 %v114
  %v454 = vcvt.s32.f32 %v121
  %v455 = vcvt.s32.f32 %v127
  %v456 = vcvt.s32.f32 %v134
  %v457 = vcvt.s32.f32 %v140
  %v458 = vcvt.s32.f32 %v147
  %v459 = vcvt.s32.f32 %v153
  %v460 = vcvt.s32.f32 %v160
  %v461 = vcvt.s32.f32 %v166
  %v462 = vcvt.s32.f32 %v173
  %v463 = vcvt.s32.f32 %v179
  %v464 = vcvt.s32.f32 %v186
  %v465 = vcvt.s32.f32 %v192
  %v466 = vcvt.s32.f32 %v199
  %v467 = vcvt.s32.f32 %v205
  %v468 = vcvt.s32.f32 %v212
  %v469 = vcvt.s32.f32 %v218
  %v470 = vcvt.s32.f32 %v225
  %v471 = vcvt.s32.f32 %v231
  %v472 = vcvt.s32.f32 %v238
  %v473 = vcvt.s32.f32 %v244
  %v474 = vcvt.s32.f32 %v251
  %v475 = vcvt.s32.f32 %v257
  %v476 = vcvt.s32.f32 %v264
  %v477 = vcvt.s32.f32 %v270
  %v478 = vcvt.s32.f32 %v277
  %v479 = vcvt.s32.f32 %v283
  %v480 = vcvt.s32.f32 %v290
  %v481 = vcvt.s32.f32 %v296
  %v482 = vcvt.s32.f32 %v303
  %v483 = vcvt.s32.f32 %v309
  %v484 = vcvt.s32.f32 %v316
  %v485 = vcvt.s32.f32 %v322
  %v486 = vcvt.s32.f32 %v329
  %v487 = vcvt.s32.f32 %v335
  %v488 = vcvt.s32.f32 %v342
  %v489 = vcvt.s32.f32 %v348
  %v490 = vcvt.s32.f32 %v355
  %v491 = vcvt.s32.f32 %v361
  %v492 = vcvt.s32.f32 %v368
  %v493 = vcvt.s32.f32 %v374
  %v494 = vcvt.s32.f32 %v381
  %v495 = vcvt.s32.f32 %v387
  %v496 = vcvt.s32.f32 %v394
  %v497 = vcvt.s32.f32 %v400
  %v498 = vcvt.s32.f32 %v407
  %v499 = vcvt.s32.f32 %v413
  %v500 = vcvt.s32.f32 %v420
  %v501 = vcvt.s32.f32 %v426
  %v502 = vcvt.s32.f32 %v433
  %v503 = vcvt.s32.f32 %v439
  %v504 = vpack.c.bf16 %v440, %v440
  %v505 = vpack.c.bf16 %v441, %v441
  %v506 = vpack.c.bf16 %v442, %v442
  %v507 = vpack.c.bf16 %v443, %v443
  %v508 = vpack.c.bf16 %v444, %v444
  %v509 = vpack.c.bf16 %v445, %v445
  %v510 = vpack.c.bf16 %v446, %v446
  %v511 = vpack.c.bf16 %v447, %v447
  %v512 = vpack.c.bf16 %v448, %v448
  %v513 = vpack.c.bf16 %v449, %v449
  %v514 = vpack.c.bf16 %v450, %v450
  %v515 = vpack.c.bf16 %v451, %v451
  %v516 = vpack.c.bf16 %v452, %v452
  %v517 = vpack.c.bf16 %v453, %v453
  %v518 = vpack.c.bf16 %v454, %v454
  %v519 = vpack.c.bf16 %v455, %v455
  %v520 = vpack.c.bf16 %v456, %v456
  %v521 = vpack.c.bf16 %v457, %v457
  %v522 = vpack.c.bf16 %v458, %v458
  %v523 = vpack.c.bf16 %v459, %v459
  %v524 = vpack.c.bf16 %v460, %v460
  %v525 = vpack.c.bf16 %v461, %v461
  %v526 = vpack.c.bf16 %v462, %v462
  %v527 = vpack.c.bf16 %v463, %v463
  %v528 = vpack.c.bf16 %v464, %v464
  %v529 = vpack.c.bf16 %v465, %v465
  %v530 = vpack.c.bf16 %v466, %v466
  %v531 = vpack.c.bf16 %v467, %v467
  %v532 = vpack.c.bf16 %v468, %v468
  %v533 = vpack.c.bf16 %v469, %v469
  %v534 = vpack.c.bf16 %v470, %v470
  %v535 = vpack.c.bf16 %v471, %v471
  %v536 = vpack.c.bf16 %v472, %v472
  %v537 = vpack.c.bf16 %v473, %v473
  %v538 = vpack.c.bf16 %v474, %v474
  %v539 = vpack.c.bf16 %v475, %v475
  %v540 = vpack.c.bf16 %v476, %v476
  %v541 = vpack.c.bf16 %v477, %v477
  %v542 = vpack.c.bf16 %v478, %v478
  %v543 = vpack.c.bf16 %v479, %v479
  %v544 = vpack.c.bf16 %v480, %v480
  %v545 = vpack.c.bf16 %v481, %v481
  %v546 = vpack.c.bf16 %v482, %v482
  %v547 = vpack.c.bf16 %v483, %v483
  %v548 = vpack.c.bf16 %v484, %v484
  %v549 = vpack.c.bf16 %v485, %v485
  %v550 = vpack.c.bf16 %v486, %v486
  %v551 = vpack.c.bf16 %v487, %v487
  %v552 = vpack.c.bf16 %v488, %v488
  %v553 = vpack.c.bf16 %v489, %v489
  %v554 = vpack.c.bf16 %v490, %v490
  %v555 = vpack.c.bf16 %v491, %v491
  %v556 = vpack.c.bf16 %v492, %v492
  %v557 = vpack.c.bf16 %v493, %v493
  %v558 = vpack.c.bf16 %v494, %v494
  %v559 = vpack.c.bf16 %v495, %v495
  %v560 = vpack.c.bf16 %v496, %v496
  %v561 = vpack.c.bf16 %v497, %v497
  %v562 = vpack.c.bf16 %v498, %v498
  %v563 = vpack.c.bf16 %v499, %v499
  %v564 = vpack.c.bf16 %v500, %v500
  %v565 = vpack.c.bf16 %v501, %v501
  %v566 = vpack.c.bf16 %v502, %v502
  %v567 = vpack.c.bf16 %v503, %v503
  %v568 = vlaneseq
  %v569 = vand.u32 %v568, 127
  %v570 = vadd.s32 %v569, 128
  %v571 = vcvt.s32.f32 %v569
  %v572 = vcvt.s32.f32 %v570
  %v573 = vpack.c.bf16 %v572, %v571
  %v574 = vunpack.c.l.bf16 %v504
  %v575 = vunpack.c.l.bf16 %v505
  %v576 = vunpack.c.l.bf16 %v506
  %v577 = vunpack.c.l.bf16 %v507
  %v578 = vunpack.c.l.bf16 %v508
  %v579 = vunpack.c.l.bf16 %v509
  %v580 = vunpack.c.l.bf16 %v510
  %v581 = vunpack.c.l.bf16 %v511
  %v582 = vunpack.c.l.bf16 %v512
  %v583 = vunpack.c.l.bf16 %v513
  %v584 = vunpack.c.l.bf16 %v514
  %v585 = vunpack.c.l.bf16 %v515
  %v586 = vunpack.c.l.bf16 %v516
  %v587 = vunpack.c.l.bf16 %v517
  %v588 = vunpack.c.l.bf16 %v518
  %v589 = vunpack.c.l.bf16 %v519
  %v590 = vunpack.c.l.bf16 %v520
  %v591 = vunpack.c.l.bf16 %v521
  %v592 = vunpack.c.l.bf16 %v522
  %v593 = vunpack.c.l.bf16 %v523
  %v594 = vunpack.c.l.bf16 %v524
  %v595 = vunpack.c.l.bf16 %v525
  %v596 = vunpack.c.l.bf16 %v526
  %v597 = vunpack.c.l.bf16 %v527
  %v598 = vunpack.c.l.bf16 %v528
  %v599 = vunpack.c.l.bf16 %v529
  %v600 = vunpack.c.l.bf16 %v530
  %v601 = vunpack.c.l.bf16 %v531
  %v602 = vunpack.c.l.bf16 %v532
  %v603 = vunpack.c.l.bf16 %v533
  %v604 = vunpack.c.l.bf16 %v534
  %v605 = vunpack.c.l.bf16 %v535
  %v606 = vunpack.c.l.bf16 %v536
  %v607 = vunpack.c.l.bf16 %v537
  %v608 = vunpack.c.l.bf16 %v538
  %v609 = vunpack.c.l.bf16 %v539
  %v610 = vunpack.c.l.bf16 %v540
  %v611 = vunpack.c.l.bf16 %v541
  %v612 = vunpack.c.l.bf16 %v542
  %v613 = vunpack.c.l.bf16 %v543
  %v614 = vunpack.c.l.bf16 %v544
  %v615 = vunpack.c.l.bf16 %v545
  %v616 = vunpack.c.l.bf16 %v546
  %v617 = vunpack.c.l.bf16 %v547
  %v618 = vunpack.c.l.bf16 %v548
  %v619 = vunpack.c.l.bf16 %v549
  %v620 = vunpack.c.l.bf16 %v550
  %v621 = vunpack.c.l.bf16 %v551
  %v622 = vunpack.c.l.bf16 %v552
  %v623 = vunpack.c.l.bf16 %v553
  %v624 = vunpack.c.l.bf16 %v554
  %v625 = vunpack.c.l.bf16 %v555
  %v626 = vunpack.c.l.bf16 %v556
  %v627 = vunpack.c.l.bf16 %v557
  %v628 = vunpack.c.l.bf16 %v558
  %v629 = vunpack.c.l.bf16 %v559
  %v630 = vunpack.c.l.bf16 %v560
  %v631 = vunpack.c.l.bf16 %v561
  %v632 = vunpack.c.l.bf16 %v562
  %v633 = vunpack.c.l.bf16 %v563
  %v634 = vunpack.c.l.bf16 %v564
  %v635 = vunpack.c.l.bf16 %v565
  %v636 = vunpack.c.l.bf16 %v566
  %v637 = vunpack.c.l.bf16 %v567
  %v638 = vunpack.c.l.bf16 %v573
  %v639 = vunpack.c.h.bf16 %v573
  %vm640 = vcmp.eq.f32.partialorder %v574, %v638
  %vm641 = vcmp.eq.f32.partialorder %v574, %v639
  %vm642 = vcmp.eq.f32.partialorder %v575, %v638
  %vm643 = vcmp.eq.f32.partialorder %v575, %v639
  %vm644 = vcmp.eq.f32.partialorder %v576, %v638
  %vm645 = vcmp.eq.f32.partialorder %v576, %v639
  %vm646 = vcmp.eq.f32.partialorder %v577, %v638
  %vm647 = vcmp.eq.f32.partialorder %v577, %v639
  %vm648 = vcmp.eq.f32.partialorder %v578, %v638
  %vm649 = vcmp.eq.f32.partialorder %v578, %v639
  %vm650 = vcmp.eq.f32.partialorder %v579, %v638
  %vm651 = vcmp.eq.f32.partialorder %v579, %v639
  %vm652 = vcmp.eq.f32.partialorder %v580, %v638
  %vm653 = vcmp.eq.f32.partialorder %v580, %v639
  %vm654 = vcmp.eq.f32.partialorder %v581, %v638
  %vm655 = vcmp.eq.f32.partialorder %v581, %v639
  %vm656 = vcmp.eq.f32.partialorder %v582, %v638
  %vm657 = vcmp.eq.f32.partialorder %v582, %v639
  %vm658 = vcmp.eq.f32.partialorder %v583, %v638
  %vm659 = vcmp.eq.f32.partialorder %v583, %v639
  %vm660 = vcmp.eq.f32.partialorder %v584, %v638
  %vm661 = vcmp.eq.f32.partialorder %v584, %v639
  %vm662 = vcmp.eq.f32.partialorder %v585, %v638
  %vm663 = vcmp.eq.f32.partialorder %v585, %v639
  %vm664 = vcmp.eq.f32.partialorder %v586, %v638
  %vm665 = vcmp.eq.f32.partialorder %v586, %v639
  %vm666 = vcmp.eq.f32.partialorder %v587, %v638
  %vm667 = vcmp.eq.f32.partialorder %v587, %v639
  %vm668 = vcmp.eq.f32.partialorder %v588, %v638
  %vm669 = vcmp.eq.f32.partialorder %v588, %v639
  %vm670 = vcmp.eq.f32.partialorder %v589, %v638
  %vm671 = vcmp.eq.f32.partialorder %v589, %v639
  %vm672 = vcmp.eq.f32.partialorder %v590, %v638
  %vm673 = vcmp.eq.f32.partialorder %v590, %v639
  %vm674 = vcmp.eq.f32.partialorder %v591, %v638
  %vm675 = vcmp.eq.f32.partialorder %v591, %v639
  %vm676 = vcmp.eq.f32.partialorder %v592, %v638
  %vm677 = vcmp.eq.f32.partialorder %v592, %v639
  %vm678 = vcmp.eq.f32.partialorder %v593, %v638
  %vm679 = vcmp.eq.f32.partialorder %v593, %v639
  %vm680 = vcmp.eq.f32.partialorder %v594, %v638
  %vm681 = vcmp.eq.f32.partialorder %v594, %v639
  %vm682 = vcmp.eq.f32.partialorder %v595, %v638
  %vm683 = vcmp.eq.f32.partialorder %v595, %v639
  %vm684 = vcmp.eq.f32.partialorder %v596, %v638
  %vm685 = vcmp.eq.f32.partialorder %v596, %v639
  %vm686 = vcmp.eq.f32.partialorder %v597, %v638
  %vm687 = vcmp.eq.f32.partialorder %v597, %v639
  %vm688 = vcmp.eq.f32.partialorder %v598, %v638
  %vm689 = vcmp.eq.f32.partialorder %v598, %v639
  %vm690 = vcmp.eq.f32.partialorder %v599, %v638
  %vm691 = vcmp.eq.f32.partialorder %v599, %v639
  %vm692 = vcmp.eq.f32.partialorder %v600, %v638
  %vm693 = vcmp.eq.f32.partialorder %v600, %v639
  %vm694 = vcmp.eq.f32.partialorder %v601, %v638
  %vm695 = vcmp.eq.f32.partialorder %v601, %v639
  %vm696 = vcmp.eq.f32.partialorder %v602, %v638
  %vm697 = vcmp.eq.f32.partialorder %v602, %v639
  %vm698 = vcmp.eq.f32.partialorder %v603, %v638
  %vm699 = vcmp.eq.f32.partialorder %v603, %v639
  %vm700 = vcmp.eq.f32.partialorder %v604, %v638
  %vm701 = vcmp.eq.f32.partialorder %v604, %v639
  %vm702 = vcmp.eq.f32.partialorder %v605, %v638
  %vm703 = vcmp.eq.f32.partialorder %v605, %v639
  %vm704 = vcmp.eq.f32.partialorder %v606, %v638
  %vm705 = vcmp.eq.f32.partialorder %v606, %v639
  %vm706 = vcmp.eq.f32.partialorder %v607, %v638
  %vm707 = vcmp.eq.f32.partialorder %v607, %v639
  %vm708 = vcmp.eq.f32.partialorder %v608, %v638
  %vm709 = vcmp.eq.f32.partialorder %v608, %v639
  %vm710 = vcmp.eq.f32.partialorder %v609, %v638
  %vm711 = vcmp.eq.f32.partialorder %v609, %v639
  %vm712 = vcmp.eq.f32.partialorder %v610, %v638
  %vm713 = vcmp.eq.f32.partialorder %v610, %v639
  %vm714 = vcmp.eq.f32.partialorder %v611, %v638
  %vm715 = vcmp.eq.f32.partialorder %v611, %v639
  %vm716 = vcmp.eq.f32.partialorder %v612, %v638
  %vm717 = vcmp.eq.f32.partialorder %v612, %v639
  %vm718 = vcmp.eq.f32.partialorder %v613, %v638
  %vm719 = vcmp.eq.f32.partialorder %v613, %v639
  %vm720 = vcmp.eq.f32.partialorder %v614, %v638
  %vm721 = vcmp.eq.f32.partialorder %v614, %v639
  %vm722 = vcmp.eq.f32.partialorder %v615, %v638
  %vm723 = vcmp.eq.f32.partialorder %v615, %v639
  %vm724 = vcmp.eq.f32.partialorder %v616, %v638
  %vm725 = vcmp.eq.f32.partialorder %v616, %v639
  %vm726 = vcmp.eq.f32.partialorder %v617, %v638
  %vm727 = vcmp.eq.f32.partialorder %v617, %v639
  %vm728 = vcmp.eq.f32.partialorder %v618, %v638
  %vm729 = vcmp.eq.f32.partialorder %v618, %v639
  %vm730 = vcmp.eq.f32.partialorder %v619, %v638
  %vm731 = vcmp.eq.f32.partialorder %v619, %v639
  %vm732 = vcmp.eq.f32.partialorder %v620, %v638
  %vm733 = vcmp.eq.f32.partialorder %v620, %v639
  %vm734 = vcmp.eq.f32.partialorder %v621, %v638
  %vm735 = vcmp.eq.f32.partialorder %v621, %v639
  %vm736 = vcmp.eq.f32.partialorder %v622, %v638
  %vm737 = vcmp.eq.f32.partialorder %v622, %v639
  %vm738 = vcmp.eq.f32.partialorder %v623, %v638
  %vm739 = vcmp.eq.f32.partialorder %v623, %v639
  %vm740 = vcmp.eq.f32.partialorder %v624, %v638
  %vm741 = vcmp.eq.f32.partialorder %v624, %v639
  %vm742 = vcmp.eq.f32.partialorder %v625, %v638
  %vm743 = vcmp.eq.f32.partialorder %v625, %v639
  %vm744 = vcmp.eq.f32.partialorder %v626, %v638
  %vm745 = vcmp.eq.f32.partialorder %v626, %v639
  %vm746 = vcmp.eq.f32.partialorder %v627, %v638
  %vm747 = vcmp.eq.f32.partialorder %v627, %v639
  %vm748 = vcmp.eq.f32.partialorder %v628, %v638
  %vm749 = vcmp.eq.f32.partialorder %v628, %v639
  %vm750 = vcmp.eq.f32.partialorder %v629, %v638
  %vm751 = vcmp.eq.f32.partialorder %v629, %v639
  %vm752 = vcmp.eq.f32.partialorder %v630, %v638
  %vm753 = vcmp.eq.f32.partialorder %v630, %v639
  %vm754 = vcmp.eq.f32.partialorder %v631, %v638
  %vm755 = vcmp.eq.f32.partialorder %v631, %v639
  %vm756 = vcmp.eq.f32.partialorder %v632, %v638
  %vm757 = vcmp.eq.f32.partialorder %v632, %v639
  %vm758 = vcmp.eq.f32.partialorder %v633, %v638
  %vm759 = vcmp.eq.f32.partialorder %v633, %v639
  %vm760 = vcmp.eq.f32.partialorder %v634, %v638
  %vm761 = vcmp.eq.f32.partialorder %v634, %v639
  %vm762 = vcmp.eq.f32.partialorder %v635, %v638
  %vm763 = vcmp.eq.f32.partialorder %v635, %v639
  %vm764 = vcmp.eq.f32.partialorder %v636, %v638
  %vm765 = vcmp.eq.f32.partialorder %v636, %v639
  %vm766 = vcmp.eq.f32.partialorder %v637, %v638
  %vm767 = vcmp.eq.f32.partialorder %v637, %v639
  %v768 = vsel %vm640, 1, 0
  %v769 = vsel %vm641, 1, 0
  %v770 = vsel %vm642, 1, 0
  %v771 = vsel %vm643, 1, 0
  %v772 = vsel %vm644, 1, 0
  %v773 = vsel %vm645, 1, 0
  %v774 = vsel %vm646, 1, 0
  %v775 = vsel %vm647, 1, 0
  %v776 = vsel %vm648, 1, 0
  %v777 = vsel %vm649, 1, 0
  %v778 = vsel %vm650, 1, 0
  %v779 = vsel %vm651, 1, 0
  %v780 = vsel %vm652, 1, 0
  %v781 = vsel %vm653, 1, 0
  %v782 = vsel %vm654, 1, 0
  %v783 = vsel %vm655, 1, 0
  %v784 = vsel %vm656, 1, 0
  %v785 = vsel %vm657, 1, 0
  %v786 = vsel %vm658, 1, 0
  %v787 = vsel %vm659, 1, 0
  %v788 = vsel %vm660, 1, 0
  %v789 = vsel %vm661, 1, 0
  %v790 = vsel %vm662, 1, 0
  %v791 = vsel %vm663, 1, 0
  %v792 = vsel %vm664, 1, 0
  %v793 = vsel %vm665, 1, 0
  %v794 = vsel %vm666, 1, 0
  %v795 = vsel %vm667, 1, 0
  %v796 = vsel %vm668, 1, 0
  %v797 = vsel %vm669, 1, 0
  %v798 = vsel %vm670, 1, 0
  %v799 = vsel %vm671, 1, 0
  %v800 = vsel %vm672, 1, 0
  %v801 = vsel %vm673, 1, 0
  %v802 = vsel %vm674, 1, 0
  %v803 = vsel %vm675, 1, 0
  %v804 = vsel %vm676, 1, 0
  %v805 = vsel %vm677, 1, 0
  %v806 = vsel %vm678, 1, 0
  %v807 = vsel %vm679, 1, 0
  %v808 = vsel %vm680, 1, 0
  %v809 = vsel %vm681, 1, 0
  %v810 = vsel %vm682, 1, 0
  %v811 = vsel %vm683, 1, 0
  %v812 = vsel %vm684, 1, 0
  %v813 = vsel %vm685, 1, 0
  %v814 = vsel %vm686, 1, 0
  %v815 = vsel %vm687, 1, 0
  %v816 = vsel %vm688, 1, 0
  %v817 = vsel %vm689, 1, 0
  %v818 = vsel %vm690, 1, 0
  %v819 = vsel %vm691, 1, 0
  %v820 = vsel %vm692, 1, 0
  %v821 = vsel %vm693, 1, 0
  %v822 = vsel %vm694, 1, 0
  %v823 = vsel %vm695, 1, 0
  %v824 = vsel %vm696, 1, 0
  %v825 = vsel %vm697, 1, 0
  %v826 = vsel %vm698, 1, 0
  %v827 = vsel %vm699, 1, 0
  %v828 = vsel %vm700, 1, 0
  %v829 = vsel %vm701, 1, 0
  %v830 = vsel %vm702, 1, 0
  %v831 = vsel %vm703, 1, 0
  %v832 = vsel %vm704, 1, 0
  %v833 = vsel %vm705, 1, 0
  %v834 = vsel %vm706, 1, 0
  %v835 = vsel %vm707, 1, 0
  %v836 = vsel %vm708, 1, 0
  %v837 = vsel %vm709, 1, 0
  %v838 = vsel %vm710, 1, 0
  %v839 = vsel %vm711, 1, 0
  %v840 = vsel %vm712, 1, 0
  %v841 = vsel %vm713, 1, 0
  %v842 = vsel %vm714, 1, 0
  %v843 = vsel %vm715, 1, 0
  %v844 = vsel %vm716, 1, 0
  %v845 = vsel %vm717, 1, 0
  %v846 = vsel %vm718, 1, 0
  %v847 = vsel %vm719, 1, 0
  %v848 = vsel %vm720, 1, 0
  %v849 = vsel %vm721, 1, 0
  %v850 = vsel %vm722, 1, 0
  %v851 = vsel %vm723, 1, 0
  %v852 = vsel %vm724, 1, 0
  %v853 = vsel %vm725, 1, 0
  %v854 = vsel %vm726, 1, 0
  %v855 = vsel %vm727, 1, 0
  %v856 = vsel %vm728, 1, 0
  %v857 = vsel %vm729, 1, 0
  %v858 = vsel %vm730, 1, 0
  %v859 = vsel %vm731, 1, 0
  %v860 = vsel %vm732, 1, 0
  %v861 = vsel %vm733, 1, 0
  %v862 = vsel %vm734, 1, 0
  %v863 = vsel %vm735, 1, 0
  %v864 = vsel %vm736, 1, 0
  %v865 = vsel %vm737, 1, 0
  %v866 = vsel %vm738, 1, 0
  %v867 = vsel %vm739, 1, 0
  %v868 = vsel %vm740, 1, 0
  %v869 = vsel %vm741, 1, 0
  %v870 = vsel %vm742, 1, 0
  %v871 = vsel %vm743, 1, 0
  %v872 = vsel %vm744, 1, 0
  %v873 = vsel %vm745, 1, 0
  %v874 = vsel %vm746, 1, 0
  %v875 = vsel %vm747, 1, 0
  %v876 = vsel %vm748, 1, 0
  %v877 = vsel %vm749, 1, 0
  %v878 = vsel %vm750, 1, 0
  %v879 = vsel %vm751, 1, 0
  %v880 = vsel %vm752, 1, 0
  %v881 = vsel %vm753, 1, 0
  %v882 = vsel %vm754, 1, 0
  %v883 = vsel %vm755, 1, 0
  %v884 = vsel %vm756, 1, 0
  %v885 = vsel %vm757, 1, 0
  %v886 = vsel %vm758, 1, 0
  %v887 = vsel %vm759, 1, 0
  %v888 = vsel %vm760, 1, 0
  %v889 = vsel %vm761, 1, 0
  %v890 = vsel %vm762, 1, 0
  %v891 = vsel %vm763, 1, 0
  %v892 = vsel %vm764, 1, 0
  %v893 = vsel %vm765, 1, 0
  %v894 = vsel %vm766, 1, 0
  %v895 = vsel %vm767, 1, 0
  %v896 = vcvt.s32.f32 %v768
  %v897 = vcvt.s32.f32 %v769
  %v898 = vcvt.s32.f32 %v770
  %v899 = vcvt.s32.f32 %v771
  %v900 = vcvt.s32.f32 %v772
  %v901 = vcvt.s32.f32 %v773
  %v902 = vcvt.s32.f32 %v774
  %v903 = vcvt.s32.f32 %v775
  %v904 = vcvt.s32.f32 %v776
  %v905 = vcvt.s32.f32 %v777
  %v906 = vcvt.s32.f32 %v778
  %v907 = vcvt.s32.f32 %v779
  %v908 = vcvt.s32.f32 %v780
  %v909 = vcvt.s32.f32 %v781
  %v910 = vcvt.s32.f32 %v782
  %v911 = vcvt.s32.f32 %v783
  %v912 = vcvt.s32.f32 %v784
  %v913 = vcvt.s32.f32 %v785
  %v914 = vcvt.s32.f32 %v786
  %v915 = vcvt.s32.f32 %v787
  %v916 = vcvt.s32.f32 %v788
  %v917 = vcvt.s32.f32 %v789
  %v918 = vcvt.s32.f32 %v790
  %v919 = vcvt.s32.f32 %v791
  %v920 = vcvt.s32.f32 %v792
  %v921 = vcvt.s32.f32 %v793
  %v922 = vcvt.s32.f32 %v794
  %v923 = vcvt.s32.f32 %v795
  %v924 = vcvt.s32.f32 %v796
  %v925 = vcvt.s32.f32 %v797
  %v926 = vcvt.s32.f32 %v798
  %v927 = vcvt.s32.f32 %v799
  %v928 = vcvt.s32.f32 %v800
  %v929 = vcvt.s32.f32 %v801
  %v930 = vcvt.s32.f32 %v802
  %v931 = vcvt.s32.f32 %v803
  %v932 = vcvt.s32.f32 %v804
  %v933 = vcvt.s32.f32 %v805
  %v934 = vcvt.s32.f32 %v806
  %v935 = vcvt.s32.f32 %v807
  %v936 = vcvt.s32.f32 %v808
  %v937 = vcvt.s32.f32 %v809
  %v938 = vcvt.s32.f32 %v810
  %v939 = vcvt.s32.f32 %v811
  %v940 = vcvt.s32.f32 %v812
  %v941 = vcvt.s32.f32 %v813
  %v942 = vcvt.s32.f32 %v814
  %v943 = vcvt.s32.f32 %v815
  %v944 = vcvt.s32.f32 %v816
  %v945 = vcvt.s32.f32 %v817
  %v946 = vcvt.s32.f32 %v818
  %v947 = vcvt.s32.f32 %v819
  %v948 = vcvt.s32.f32 %v820
  %v949 = vcvt.s32.f32 %v821
  %v950 = vcvt.s32.f32 %v822
  %v951 = vcvt.s32.f32 %v823
  %v952 = vcvt.s32.f32 %v824
  %v953 = vcvt.s32.f32 %v825
  %v954 = vcvt.s32.f32 %v826
  %v955 = vcvt.s32.f32 %v827
  %v956 = vcvt.s32.f32 %v828
  %v957 = vcvt.s32.f32 %v829
  %v958 = vcvt.s32.f32 %v830
  %v959 = vcvt.s32.f32 %v831
  %v960 = vcvt.s32.f32 %v832
  %v961 = vcvt.s32.f32 %v833
  %v962 = vcvt.s32.f32 %v834
  %v963 = vcvt.s32.f32 %v835
  %v964 = vcvt.s32.f32 %v836
  %v965 = vcvt.s32.f32 %v837
  %v966 = vcvt.s32.f32 %v838
  %v967 = vcvt.s32.f32 %v839
  %v968 = vcvt.s32.f32 %v840
  %v969 = vcvt.s32.f32 %v841
  %v970 = vcvt.s32.f32 %v842
  %v971 = vcvt.s32.f32 %v843
  %v972 = vcvt.s32.f32 %v844
  %v973 = vcvt.s32.f32 %v845
  %v974 = vcvt.s32.f32 %v846
  %v975 = vcvt.s32.f32 %v847
  %v976 = vcvt.s32.f32 %v848
  %v977 = vcvt.s32.f32 %v849
  %v978 = vcvt.s32.f32 %v850
  %v979 = vcvt.s32.f32 %v851
  %v980 = vcvt.s32.f32 %v852
  %v981 = vcvt.s32.f32 %v853
  %v982 = vcvt.s32.f32 %v854
  %v983 = vcvt.s32.f32 %v855
  %v984 = vcvt.s32.f32 %v856
  %v985 = vcvt.s32.f32 %v857
  %v986 = vcvt.s32.f32 %v858
  %v987 = vcvt.s32.f32 %v859
  %v988 = vcvt.s32.f32 %v860
  %v989 = vcvt.s32.f32 %v861
  %v990 = vcvt.s32.f32 %v862
  %v991 = vcvt.s32.f32 %v863
  %v992 = vcvt.s32.f32 %v864
  %v993 = vcvt.s32.f32 %v865
  %v994 = vcvt.s32.f32 %v866
  %v995 = vcvt.s32.f32 %v867
  %v996 = vcvt.s32.f32 %v868
  %v997 = vcvt.s32.f32 %v869
  %v998 = vcvt.s32.f32 %v870
  %v999 = vcvt.s32.f32 %v871
  %v1000 = vcvt.s32.f32 %v872
  %v1001 = vcvt.s32.f32 %v873
  %v1002 = vcvt.s32.f32 %v874
  %v1003 = vcvt.s32.f32 %v875
  %v1004 = vcvt.s32.f32 %v876
  %v1005 = vcvt.s32.f32 %v877
  %v1006 = vcvt.s32.f32 %v878
  %v1007 = vcvt.s32.f32 %v879
  %v1008 = vcvt.s32.f32 %v880
  %v1009 = vcvt.s32.f32 %v881
  %v1010 = vcvt.s32.f32 %v882
  %v1011 = vcvt.s32.f32 %v883
  %v1012 = vcvt.s32.f32 %v884
  %v1013 = vcvt.s32.f32 %v885
  %v1014 = vcvt.s32.f32 %v886
  %v1015 = vcvt.s32.f32 %v887
  %v1016 = vcvt.s32.f32 %v888
  %v1017 = vcvt.s32.f32 %v889
  %v1018 = vcvt.s32.f32 %v890
  %v1019 = vcvt.s32.f32 %v891
  %v1020 = vcvt.s32.f32 %v892
  %v1021 = vcvt.s32.f32 %v893
  %v1022 = vcvt.s32.f32 %v894
  %v1023 = vcvt.s32.f32 %v895
  %v1024 = vpack.c.bf16 %v897, %v896
  %v1025 = vpack.c.bf16 %v899, %v898
  %v1026 = vpack.c.bf16 %v901, %v900
  %v1027 = vpack.c.bf16 %v903, %v902
  %v1028 = vpack.c.bf16 %v905, %v904
  %v1029 = vpack.c.bf16 %v907, %v906
  %v1030 = vpack.c.bf16 %v909, %v908
  %v1031 = vpack.c.bf16 %v911, %v910
  %v1032 = vpack.c.bf16 %v913, %v912
  %v1033 = vpack.c.bf16 %v915, %v914
  %v1034 = vpack.c.bf16 %v917, %v916
  %v1035 = vpack.c.bf16 %v919, %v918
  %v1036 = vpack.c.bf16 %v921, %v920
  %v1037 = vpack.c.bf16 %v923, %v922
  %v1038 = vpack.c.bf16 %v925, %v924
  %v1039 = vpack.c.bf16 %v927, %v926
  %v1040 = vpack.c.bf16 %v929, %v928
  %v1041 = vpack.c.bf16 %v931, %v930
  %v1042 = vpack.c.bf16 %v933, %v932
  %v1043 = vpack.c.bf16 %v935, %v934
  %v1044 = vpack.c.bf16 %v937, %v936
  %v1045 = vpack.c.bf16 %v939, %v938
  %v1046 = vpack.c.bf16 %v941, %v940
  %v1047 = vpack.c.bf16 %v943, %v942
  %v1048 = vpack.c.bf16 %v945, %v944
  %v1049 = vpack.c.bf16 %v947, %v946
  %v1050 = vpack.c.bf16 %v949, %v948
  %v1051 = vpack.c.bf16 %v951, %v950
  %v1052 = vpack.c.bf16 %v953, %v952
  %v1053 = vpack.c.bf16 %v955, %v954
  %v1054 = vpack.c.bf16 %v957, %v956
  %v1055 = vpack.c.bf16 %v959, %v958
  %v1056 = vpack.c.bf16 %v961, %v960
  %v1057 = vpack.c.bf16 %v963, %v962
  %v1058 = vpack.c.bf16 %v965, %v964
  %v1059 = vpack.c.bf16 %v967, %v966
  %v1060 = vpack.c.bf16 %v969, %v968
  %v1061 = vpack.c.bf16 %v971, %v970
  %v1062 = vpack.c.bf16 %v973, %v972
  %v1063 = vpack.c.bf16 %v975, %v974
  %v1064 = vpack.c.bf16 %v977, %v976
  %v1065 = vpack.c.bf16 %v979, %v978
  %v1066 = vpack.c.bf16 %v981, %v980
  %v1067 = vpack.c.bf16 %v983, %v982
  %v1068 = vpack.c.bf16 %v985, %v984
  %v1069 = vpack.c.bf16 %v987, %v986
  %v1070 = vpack.c.bf16 %v989, %v988
  %v1071 = vpack.c.bf16 %v991, %v990
  %v1072 = vpack.c.bf16 %v993, %v992
  %v1073 = vpack.c.bf16 %v995, %v994
  %v1074 = vpack.c.bf16 %v997, %v996
  %v1075 = vpack.c.bf16 %v999, %v998
  %v1076 = vpack.c.bf16 %v1001, %v1000
  %v1077 = vpack.c.bf16 %v1003, %v1002
  %v1078 = vpack.c.bf16 %v1005, %v1004
  %v1079 = vpack.c.bf16 %v1007, %v1006
  %v1080 = vpack.c.bf16 %v1009, %v1008
  %v1081 = vpack.c.bf16 %v1011, %v1010
  %v1082 = vpack.c.bf16 %v1013, %v1012
  %v1083 = vpack.c.bf16 %v1015, %v1014
  %v1084 = vpack.c.bf16 %v1017, %v1016
  %v1085 = vpack.c.bf16 %v1019, %v1018
  %v1086 = vpack.c.bf16 %v1021, %v1020
  %v1087 = vpack.c.bf16 %v1023, %v1022
  %v1088 = vld [vmem:[%s2] sm:$0xff]
  %v1089 = vld [vmem:[%s2 + $0x8] sm:$0xf]
  %v1090 = vld [vmem:[%s2 + $0xc] sm:$0xff]
  %v1091 = vld [vmem:[%s2 + $0x14] sm:$0xf]
  %v1092 = vld [vmem:[%s2 + $0x18] sm:$0xff]
  %v1093 = vld [vmem:[%s2 + $0x20] sm:$0xf]
  %v1094 = vld [vmem:[%s2 + $0x24] sm:$0xff]
  %v1095 = vld [vmem:[%s2 + $0x2c] sm:$0xf]
  %v1096 = vld [vmem:[%s2 + $0x30] sm:$0xff]
  %v1097 = vld [vmem:[%s2 + $0x38] sm:$0xf]
  %v1098 = vld [vmem:[%s2 + $0x3c] sm:$0xff]
  %v1099 = vld [vmem:[%s2 + $0x44] sm:$0xf]
  %v1100 = vld [vmem:[%s2 + $0x48] sm:$0xff]
  %v1101 = vld [vmem:[%s2 + $0x50] sm:$0xf]
  %v1102 = vld [vmem:[%s2 + $0x54] sm:$0xff]
  %v1103 = vld [vmem:[%s2 + $0x5c] sm:$0xf]
  %v1104 = vld [vmem:[%s2 + $0x60] sm:$0xff]
  %v1105 = vld [vmem:[%s2 + $0x68] sm:$0xf]
  %v1106 = vld [vmem:[%s2 + $0x6c] sm:$0xff]
  %v1107 = vld [vmem:[%s2 + $0x74] sm:$0xf]
  %v1108 = vld [vmem:[%s2 + $0x78] sm:$0xff]
  %v1109 = vld [vmem:[%s2 + $0x80] sm:$0xf]
  %v1110 = vld [vmem:[%s2 + $0x84] sm:$0xff]
  %v1111 = vld [vmem:[%s2 + $0x8c] sm:$0xf]
  %v1112 = vld [vmem:[%s2 + $0x90] sm:$0xff]
  %v1113 = vld [vmem:[%s2 + $0x98] sm:$0xf]
  %v1114 = vld [vmem:[%s2 + $0x9c] sm:$0xff]
  %v1115 = vld [vmem:[%s2 + $0xa4] sm:$0xf]
  %v1116 = vld [vmem:[%s2 + $0xa8] sm:$0xff]
  %v1117 = vld [vmem:[%s2 + $0xb0] sm:$0xf]
  %v1118 = vld [vmem:[%s2 + $0xb4] sm:$0xff]
  %v1119 = vld [vmem:[%s2 + $0xbc] sm:$0xf]
  %v1120 = vld [vmem:[%s2 + $0xc0] sm:$0xff]
  %v1121 = vld [vmem:[%s2 + $0xc8] sm:$0xf]
  %v1122 = vld [vmem:[%s2 + $0xcc] sm:$0xff]
  %v1123 = vld [vmem:[%s2 + $0xd4] sm:$0xf]
  %v1124 = vld [vmem:[%s2 + $0xd8] sm:$0xff]
  %v1125 = vld [vmem:[%s2 + $0xe0] sm:$0xf]
  %v1126 = vld [vmem:[%s2 + $0xe4] sm:$0xff]
  %v1127 = vld [vmem:[%s2 + $0xec] sm:$0xf]
  %v1128 = vld [vmem:[%s2 + $0xf0] sm:$0xff]
  %v1129 = vld [vmem:[%s2 + $0xf8] sm:$0xf]
  %v1130 = vld [vmem:[%s2 + $0xfc] sm:$0xff]
  %v1131 = vld [vmem:[%s2 + $0x104] sm:$0xf]
  %v1132 = vld [vmem:[%s2 + $0x108] sm:$0xff]
  %v1133 = vld [vmem:[%s2 + $0x110] sm:$0xf]
  %v1134 = vld [vmem:[%s2 + $0x114] sm:$0xff]
  %v1135 = vld [vmem:[%s2 + $0x11c] sm:$0xf]
  %v1136 = vld [vmem:[%s2 + $0x120] sm:$0xff]
  %v1137 = vld [vmem:[%s2 + $0x128] sm:$0xf]
  %v1138 = vld [vmem:[%s2 + $0x12c] sm:$0xff]
  %v1139 = vld [vmem:[%s2 + $0x134] sm:$0xf]
  %v1140 = vld [vmem:[%s2 + $0x138] sm:$0xff]
  %v1141 = vld [vmem:[%s2 + $0x140] sm:$0xf]
  %v1142 = vld [vmem:[%s2 + $0x144] sm:$0xff]
  %v1143 = vld [vmem:[%s2 + $0x14c] sm:$0xf]
  %v1144 = vld [vmem:[%s2 + $0x150] sm:$0xff]
  %v1145 = vld [vmem:[%s2 + $0x158] sm:$0xf]
  %v1146 = vld [vmem:[%s2 + $0x15c] sm:$0xff]
  %v1147 = vld [vmem:[%s2 + $0x164] sm:$0xf]
  %v1148 = vld [vmem:[%s2 + $0x168] sm:$0xff]
  %v1149 = vld [vmem:[%s2 + $0x170] sm:$0xf]
  %v1150 = vld [vmem:[%s2 + $0x174] sm:$0xff]
  %v1151 = vld [vmem:[%s2 + $0x17c] sm:$0xf]
  %v1216 = vunpack.c.l.b16 %v1024
  %v1217 = vunpack.c.h.b16 %v1024
  %v1218 = vunpack.c.l.b16 %v1025
  %v1219 = vunpack.c.h.b16 %v1025
  %v1220 = vunpack.c.l.b16 %v1026
  %v1221 = vunpack.c.h.b16 %v1026
  %v1222 = vunpack.c.l.b16 %v1027
  %v1223 = vunpack.c.h.b16 %v1027
  %v1224 = vunpack.c.l.b16 %v1028
  %v1225 = vunpack.c.h.b16 %v1028
  %v1226 = vunpack.c.l.b16 %v1029
  %v1227 = vunpack.c.h.b16 %v1029
  %v1228 = vunpack.c.l.b16 %v1030
  %v1229 = vunpack.c.h.b16 %v1030
  %v1230 = vunpack.c.l.b16 %v1031
  %v1231 = vunpack.c.h.b16 %v1031
  %v1232 = vunpack.c.l.b16 %v1032
  %v1233 = vunpack.c.h.b16 %v1032
  %v1234 = vunpack.c.l.b16 %v1033
  %v1235 = vunpack.c.h.b16 %v1033
  %v1236 = vunpack.c.l.b16 %v1034
  %v1237 = vunpack.c.h.b16 %v1034
  %v1238 = vunpack.c.l.b16 %v1035
  %v1239 = vunpack.c.h.b16 %v1035
  %v1240 = vunpack.c.l.b16 %v1036
  %v1241 = vunpack.c.h.b16 %v1036
  %v1242 = vunpack.c.l.b16 %v1037
  %v1243 = vunpack.c.h.b16 %v1037
  %v1244 = vunpack.c.l.b16 %v1038
  %v1245 = vunpack.c.h.b16 %v1038
  %v1246 = vunpack.c.l.b16 %v1039
  %v1247 = vunpack.c.h.b16 %v1039
  %v1248 = vunpack.c.l.b16 %v1040
  %v1249 = vunpack.c.h.b16 %v1040
  %v1250 = vunpack.c.l.b16 %v1041
  %v1251 = vunpack.c.h.b16 %v1041
  %v1252 = vunpack.c.l.b16 %v1042
  %v1253 = vunpack.c.h.b16 %v1042
  %v1254 = vunpack.c.l.b16 %v1043
  %v1255 = vunpack.c.h.b16 %v1043
  %v1256 = vunpack.c.l.b16 %v1044
  %v1257 = vunpack.c.h.b16 %v1044
  %v1258 = vunpack.c.l.b16 %v1045
  %v1259 = vunpack.c.h.b16 %v1045
  %v1260 = vunpack.c.l.b16 %v1046
  %v1261 = vunpack.c.h.b16 %v1046
  %v1262 = vunpack.c.l.b16 %v1047
  %v1263 = vunpack.c.h.b16 %v1047
  %v1264 = vunpack.c.l.b16 %v1048
  %v1265 = vunpack.c.h.b16 %v1048
  %v1266 = vunpack.c.l.b16 %v1049
  %v1267 = vunpack.c.h.b16 %v1049
  %v1268 = vunpack.c.l.b16 %v1050
  %v1269 = vunpack.c.h.b16 %v1050
  %v1270 = vunpack.c.l.b16 %v1051
  %v1271 = vunpack.c.h.b16 %v1051
  %v1272 = vunpack.c.l.b16 %v1052
  %v1273 = vunpack.c.h.b16 %v1052
  %v1274 = vunpack.c.l.b16 %v1053
  %v1275 = vunpack.c.h.b16 %v1053
  %v1276 = vunpack.c.l.b16 %v1054
  %v1277 = vunpack.c.h.b16 %v1054
  %v1278 = vunpack.c.l.b16 %v1055
  %v1279 = vunpack.c.h.b16 %v1055
  %v1280 = vunpack.c.l.b16 %v1056
  %v1281 = vunpack.c.h.b16 %v1056
  %v1282 = vunpack.c.l.b16 %v1057
  %v1283 = vunpack.c.h.b16 %v1057
  %v1284 = vunpack.c.l.b16 %v1058
  %v1285 = vunpack.c.h.b16 %v1058
  %v1286 = vunpack.c.l.b16 %v1059
  %v1287 = vunpack.c.h.b16 %v1059
  %v1288 = vunpack.c.l.b16 %v1060
  %v1289 = vunpack.c.h.b16 %v1060
  %v1290 = vunpack.c.l.b16 %v1061
  %v1291 = vunpack.c.h.b16 %v1061
  %v1292 = vunpack.c.l.b16 %v1062
  %v1293 = vunpack.c.h.b16 %v1062
  %v1294 = vunpack.c.l.b16 %v1063
  %v1295 = vunpack.c.h.b16 %v1063
  %v1296 = vunpack.c.l.b16 %v1064
  %v1297 = vunpack.c.h.b16 %v1064
  %v1298 = vunpack.c.l.b16 %v1065
  %v1299 = vunpack.c.h.b16 %v1065
  %v1300 = vunpack.c.l.b16 %v1066
  %v1301 = vunpack.c.h.b16 %v1066
  %v1302 = vunpack.c.l.b16 %v1067
  %v1303 = vunpack.c.h.b16 %v1067
  %v1304 = vunpack.c.l.b16 %v1068
  %v1305 = vunpack.c.h.b16 %v1068
  %v1306 = vunpack.c.l.b16 %v1069
  %v1307 = vunpack.c.h.b16 %v1069
  %v1308 = vunpack.c.l.b16 %v1070
  %v1309 = vunpack.c.h.b16 %v1070
  %v1310 = vunpack.c.l.b16 %v1071
  %v1311 = vunpack.c.h.b16 %v1071
  %v1312 = vunpack.c.l.b16 %v1072
  %v1313 = vunpack.c.h.b16 %v1072
  %v1314 = vunpack.c.l.b16 %v1073
  %v1315 = vunpack.c.h.b16 %v1073
  %v1316 = vunpack.c.l.b16 %v1074
  %v1317 = vunpack.c.h.b16 %v1074
  %v1318 = vunpack.c.l.b16 %v1075
  %v1319 = vunpack.c.h.b16 %v1075
  %v1320 = vunpack.c.l.b16 %v1076
  %v1321 = vunpack.c.h.b16 %v1076
  %v1322 = vunpack.c.l.b16 %v1077
  %v1323 = vunpack.c.h.b16 %v1077
  %v1324 = vunpack.c.l.b16 %v1078
  %v1325 = vunpack.c.h.b16 %v1078
  %v1326 = vunpack.c.l.b16 %v1079
  %v1327 = vunpack.c.h.b16 %v1079
  %v1328 = vunpack.c.l.b16 %v1080
  %v1329 = vunpack.c.h.b16 %v1080
  %v1330 = vunpack.c.l.b16 %v1081
  %v1331 = vunpack.c.h.b16 %v1081
  %v1332 = vunpack.c.l.b16 %v1082
  %v1333 = vunpack.c.h.b16 %v1082
  %v1334 = vunpack.c.l.b16 %v1083
  %v1335 = vunpack.c.h.b16 %v1083
  %v1336 = vunpack.c.l.b16 %v1084
  %v1337 = vunpack.c.h.b16 %v1084
  %v1338 = vunpack.c.l.b16 %v1085
  %v1339 = vunpack.c.h.b16 %v1085
  %v1340 = vunpack.c.l.b16 %v1086
  %v1341 = vunpack.c.h.b16 %v1086
  %v1342 = vunpack.c.l.b16 %v1087
  %v1343 = vunpack.c.h.b16 %v1087
  %v1344 = vpack.c.b16 %v1218, %v1216
  %v1345 = vpack.c.b16 %v1219, %v1217
  %v1346 = vpack.c.b16 %v1222, %v1220
  %v1347 = vpack.c.b16 %v1223, %v1221
  %v1348 = vpack.c.b16 %v1226, %v1224
  %v1349 = vpack.c.b16 %v1227, %v1225
  %v1350 = vpack.c.b16 %v1230, %v1228
  %v1351 = vpack.c.b16 %v1231, %v1229
  %v1352 = vpack.c.b16 %v1234, %v1232
  %v1353 = vpack.c.b16 %v1235, %v1233
  %v1354 = vpack.c.b16 %v1238, %v1236
  %v1355 = vpack.c.b16 %v1239, %v1237
  %v1356 = vpack.c.b16 %v1242, %v1240
  %v1357 = vpack.c.b16 %v1243, %v1241
  %v1358 = vpack.c.b16 %v1246, %v1244
  %v1359 = vpack.c.b16 %v1247, %v1245
  %v1360 = vpack.c.b16 %v1250, %v1248
  %v1361 = vpack.c.b16 %v1251, %v1249
  %v1362 = vpack.c.b16 %v1254, %v1252
  %v1363 = vpack.c.b16 %v1255, %v1253
  %v1364 = vpack.c.b16 %v1258, %v1256
  %v1365 = vpack.c.b16 %v1259, %v1257
  %v1366 = vpack.c.b16 %v1262, %v1260
  %v1367 = vpack.c.b16 %v1263, %v1261
  %v1368 = vpack.c.b16 %v1266, %v1264
  %v1369 = vpack.c.b16 %v1267, %v1265
  %v1370 = vpack.c.b16 %v1270, %v1268
  %v1371 = vpack.c.b16 %v1271, %v1269
  %v1372 = vpack.c.b16 %v1274, %v1272
  %v1373 = vpack.c.b16 %v1275, %v1273
  %v1374 = vpack.c.b16 %v1278, %v1276
  %v1375 = vpack.c.b16 %v1279, %v1277
  %v1376 = vpack.c.b16 %v1282, %v1280
  %v1377 = vpack.c.b16 %v1283, %v1281
  %v1378 = vpack.c.b16 %v1286, %v1284
  %v1379 = vpack.c.b16 %v1287, %v1285
  %v1380 = vpack.c.b16 %v1290, %v1288
  %v1381 = vpack.c.b16 %v1291, %v1289
  %v1382 = vpack.c.b16 %v1294, %v1292
  %v1383 = vpack.c.b16 %v1295, %v1293
  %v1384 = vpack.c.b16 %v1298, %v1296
  %v1385 = vpack.c.b16 %v1299, %v1297
  %v1386 = vpack.c.b16 %v1302, %v1300
  %v1387 = vpack.c.b16 %v1303, %v1301
  %v1388 = vpack.c.b16 %v1306, %v1304
  %v1389 = vpack.c.b16 %v1307, %v1305
  %v1390 = vpack.c.b16 %v1310, %v1308
  %v1391 = vpack.c.b16 %v1311, %v1309
  %v1392 = vpack.c.b16 %v1314, %v1312
  %v1393 = vpack.c.b16 %v1315, %v1313
  %v1394 = vpack.c.b16 %v1318, %v1316
  %v1395 = vpack.c.b16 %v1319, %v1317
  %v1396 = vpack.c.b16 %v1322, %v1320
  %v1397 = vpack.c.b16 %v1323, %v1321
  %v1398 = vpack.c.b16 %v1326, %v1324
  %v1399 = vpack.c.b16 %v1327, %v1325
  %v1400 = vpack.c.b16 %v1330, %v1328
  %v1401 = vpack.c.b16 %v1331, %v1329
  %v1402 = vpack.c.b16 %v1334, %v1332
  %v1403 = vpack.c.b16 %v1335, %v1333
  %v1404 = vpack.c.b16 %v1338, %v1336
  %v1405 = vpack.c.b16 %v1339, %v1337
  %v1406 = vpack.c.b16 %v1342, %v1340
  %v1407 = vpack.c.b16 %v1343, %v1341
  %v1536 = vunpack.c.l.b16 %v1088
  %v1537 = vunpack.c.h.b16 %v1088
  %v1538 = vunpack.c.l.b16 %v1089
  %v1539 = vunpack.c.l.b16 %v1090
  %v1540 = vunpack.c.h.b16 %v1090
  %v1541 = vunpack.c.l.b16 %v1091
  %v1542 = vunpack.c.l.b16 %v1092
  %v1543 = vunpack.c.h.b16 %v1092
  %v1544 = vunpack.c.l.b16 %v1093
  %v1545 = vunpack.c.l.b16 %v1094
  %v1546 = vunpack.c.h.b16 %v1094
  %v1547 = vunpack.c.l.b16 %v1095
  %v1548 = vunpack.c.l.b16 %v1096
  %v1549 = vunpack.c.h.b16 %v1096
  %v1550 = vunpack.c.l.b16 %v1097
  %v1551 = vunpack.c.l.b16 %v1098
  %v1552 = vunpack.c.h.b16 %v1098
  %v1553 = vunpack.c.l.b16 %v1099
  %v1554 = vunpack.c.l.b16 %v1100
  %v1555 = vunpack.c.h.b16 %v1100
  %v1556 = vunpack.c.l.b16 %v1101
  %v1557 = vunpack.c.l.b16 %v1102
  %v1558 = vunpack.c.h.b16 %v1102
  %v1559 = vunpack.c.l.b16 %v1103
  %v1560 = vunpack.c.l.b16 %v1104
  %v1561 = vunpack.c.h.b16 %v1104
  %v1562 = vunpack.c.l.b16 %v1105
  %v1563 = vunpack.c.l.b16 %v1106
  %v1564 = vunpack.c.h.b16 %v1106
  %v1565 = vunpack.c.l.b16 %v1107
  %v1566 = vunpack.c.l.b16 %v1108
  %v1567 = vunpack.c.h.b16 %v1108
  %v1568 = vunpack.c.l.b16 %v1109
  %v1569 = vunpack.c.l.b16 %v1110
  %v1570 = vunpack.c.h.b16 %v1110
  %v1571 = vunpack.c.l.b16 %v1111
  %v1572 = vunpack.c.l.b16 %v1112
  %v1573 = vunpack.c.h.b16 %v1112
  %v1574 = vunpack.c.l.b16 %v1113
  %v1575 = vunpack.c.l.b16 %v1114
  %v1576 = vunpack.c.h.b16 %v1114
  %v1577 = vunpack.c.l.b16 %v1115
  %v1578 = vunpack.c.l.b16 %v1116
  %v1579 = vunpack.c.h.b16 %v1116
  %v1580 = vunpack.c.l.b16 %v1117
  %v1581 = vunpack.c.l.b16 %v1118
  %v1582 = vunpack.c.h.b16 %v1118
  %v1583 = vunpack.c.l.b16 %v1119
  %v1584 = vunpack.c.l.b16 %v1120
  %v1585 = vunpack.c.h.b16 %v1120
  %v1586 = vunpack.c.l.b16 %v1121
  %v1587 = vunpack.c.l.b16 %v1122
  %v1588 = vunpack.c.h.b16 %v1122
  %v1589 = vunpack.c.l.b16 %v1123
  %v1590 = vunpack.c.l.b16 %v1124
  %v1591 = vunpack.c.h.b16 %v1124
  %v1592 = vunpack.c.l.b16 %v1125
  %v1593 = vunpack.c.l.b16 %v1126
  %v1594 = vunpack.c.h.b16 %v1126
  %v1595 = vunpack.c.l.b16 %v1127
  %v1596 = vunpack.c.l.b16 %v1128
  %v1597 = vunpack.c.h.b16 %v1128
  %v1598 = vunpack.c.l.b16 %v1129
  %v1599 = vunpack.c.l.b16 %v1130
  %v1600 = vunpack.c.h.b16 %v1130
  %v1601 = vunpack.c.l.b16 %v1131
  %v1602 = vunpack.c.l.b16 %v1132
  %v1603 = vunpack.c.h.b16 %v1132
  %v1604 = vunpack.c.l.b16 %v1133
  %v1605 = vunpack.c.l.b16 %v1134
  %v1606 = vunpack.c.h.b16 %v1134
  %v1607 = vunpack.c.l.b16 %v1135
  %v1608 = vunpack.c.l.b16 %v1136
  %v1609 = vunpack.c.h.b16 %v1136
  %v1610 = vunpack.c.l.b16 %v1137
  %v1611 = vunpack.c.l.b16 %v1138
  %v1612 = vunpack.c.h.b16 %v1138
  %v1613 = vunpack.c.l.b16 %v1139
  %v1614 = vunpack.c.l.b16 %v1140
  %v1615 = vunpack.c.h.b16 %v1140
  %v1616 = vunpack.c.l.b16 %v1141
  %v1617 = vunpack.c.l.b16 %v1142
  %v1618 = vunpack.c.h.b16 %v1142
  %v1619 = vunpack.c.l.b16 %v1143
  %v1620 = vunpack.c.l.b16 %v1144
  %v1621 = vunpack.c.h.b16 %v1144
  %v1622 = vunpack.c.l.b16 %v1145
  %v1623 = vunpack.c.l.b16 %v1146
  %v1624 = vunpack.c.h.b16 %v1146
  %v1625 = vunpack.c.l.b16 %v1147
  %v1626 = vunpack.c.l.b16 %v1148
  %v1627 = vunpack.c.h.b16 %v1148
  %v1628 = vunpack.c.l.b16 %v1149
  %v1629 = vunpack.c.l.b16 %v1150
  %v1630 = vunpack.c.h.b16 %v1150
  %v1631 = vunpack.c.l.b16 %v1151
  %v1632 = vpack.c.b16 %v1539, %v1536
  %v1633 = vpack.c.b16 %v1540, %v1537
  %v1634 = vpack.c.b16 %v1541, %v1538
  %v1635 = vpack.c.b16 %v1545, %v1542
  %v1636 = vpack.c.b16 %v1546, %v1543
  %v1637 = vpack.c.b16 %v1547, %v1544
  %v1638 = vpack.c.b16 %v1551, %v1548
  %v1639 = vpack.c.b16 %v1552, %v1549
  %v1640 = vpack.c.b16 %v1553, %v1550
  %v1641 = vpack.c.b16 %v1557, %v1554
  %v1642 = vpack.c.b16 %v1558, %v1555
  %v1643 = vpack.c.b16 %v1559, %v1556
  %v1644 = vpack.c.b16 %v1563, %v1560
  %v1645 = vpack.c.b16 %v1564, %v1561
  %v1646 = vpack.c.b16 %v1565, %v1562
  %v1647 = vpack.c.b16 %v1569, %v1566
  %v1648 = vpack.c.b16 %v1570, %v1567
  %v1649 = vpack.c.b16 %v1571, %v1568
  %v1650 = vpack.c.b16 %v1575, %v1572
  %v1651 = vpack.c.b16 %v1576, %v1573
  %v1652 = vpack.c.b16 %v1577, %v1574
  %v1653 = vpack.c.b16 %v1581, %v1578
  %v1654 = vpack.c.b16 %v1582, %v1579
  %v1655 = vpack.c.b16 %v1583, %v1580
  %v1656 = vpack.c.b16 %v1587, %v1584
  %v1657 = vpack.c.b16 %v1588, %v1585
  %v1658 = vpack.c.b16 %v1589, %v1586
  %v1659 = vpack.c.b16 %v1593, %v1590
  %v1660 = vpack.c.b16 %v1594, %v1591
  %v1661 = vpack.c.b16 %v1595, %v1592
  %v1662 = vpack.c.b16 %v1599, %v1596
  %v1663 = vpack.c.b16 %v1600, %v1597
  %v1664 = vpack.c.b16 %v1601, %v1598
  %v1665 = vpack.c.b16 %v1605, %v1602
  %v1666 = vpack.c.b16 %v1606, %v1603
  %v1667 = vpack.c.b16 %v1607, %v1604
  %v1668 = vpack.c.b16 %v1611, %v1608
  %v1669 = vpack.c.b16 %v1612, %v1609
  %v1670 = vpack.c.b16 %v1613, %v1610
  %v1671 = vpack.c.b16 %v1617, %v1614
  %v1672 = vpack.c.b16 %v1618, %v1615
  %v1673 = vpack.c.b16 %v1619, %v1616
  %v1674 = vpack.c.b16 %v1623, %v1620
  %v1675 = vpack.c.b16 %v1624, %v1621
  %v1676 = vpack.c.b16 %v1625, %v1622
  %v1677 = vpack.c.b16 %v1629, %v1626
  %v1678 = vpack.c.b16 %v1630, %v1627
  %v1679 = vpack.c.b16 %v1631, %v1628
  %1728 = vmatpush.bf16.msra.mxu0 %v1653
  %1729 = vmatpush.bf16.msra.mxu0 %v1650
  %1730 = vmatpush.bf16.msra.mxu0 %v1647
  %1731 = vmatpush.bf16.msra.mxu0 %v1644
  %1732 = vmatpush.bf16.msra.mxu0 %v1641
  %1733 = vmatpush.bf16.msra.mxu0 %v1638
  %1734 = vmatpush.bf16.msra.mxu0 %v1635
  %1735 = vmatpush.bf16.msra.mxu0 %v1632
  %1736 = vmatmul.bf16.gmra.mxu0 %v1344
  %v1737 = vpop.f32.mrf.mxu0
  %v1738 = vadd.f32 0.0, %v1737
  %v1739 = vpop.f32.mrf.mxu0
  %v1740 = vadd.f32 0.0, %v1739
  %1741 = vmatmul.bf16.gmra.mxu0 %v1346
  %v1742 = vpop.f32.mrf.mxu0
  %v1743 = vadd.f32 0.0, %v1742
  %v1744 = vpop.f32.mrf.mxu0
  %v1745 = vadd.f32 0.0, %v1744
  %1746 = vmatmul.bf16.gmra.mxu0 %v1348
  %v1747 = vpop.f32.mrf.mxu0
  %v1748 = vadd.f32 0.0, %v1747
  %v1749 = vpop.f32.mrf.mxu0
  %v1750 = vadd.f32 0.0, %v1749
  %1751 = vmatmul.bf16.gmra.mxu0 %v1350
  %v1752 = vpop.f32.mrf.mxu0
  %v1753 = vadd.f32 0.0, %v1752
  %v1754 = vpop.f32.mrf.mxu0
  %v1755 = vadd.f32 0.0, %v1754
  %1756 = vmatmul.bf16.gmra.mxu0 %v1352
  %v1757 = vpop.f32.mrf.mxu0
  %v1758 = vadd.f32 0.0, %v1757
  %v1759 = vpop.f32.mrf.mxu0
  %v1760 = vadd.f32 0.0, %v1759
  %1761 = vmatmul.bf16.gmra.mxu0 %v1354
  %v1762 = vpop.f32.mrf.mxu0
  %v1763 = vadd.f32 0.0, %v1762
  %v1764 = vpop.f32.mrf.mxu0
  %v1765 = vadd.f32 0.0, %v1764
  %1766 = vmatmul.bf16.gmra.mxu0 %v1356
  %v1767 = vpop.f32.mrf.mxu0
  %v1768 = vadd.f32 0.0, %v1767
  %v1769 = vpop.f32.mrf.mxu0
  %v1770 = vadd.f32 0.0, %v1769
  %1771 = vmatmul.bf16.gmra.mxu0 %v1358
  %v1772 = vpop.f32.mrf.mxu0
  %v1773 = vadd.f32 0.0, %v1772
  %v1774 = vpop.f32.mrf.mxu0
  %v1775 = vadd.f32 0.0, %v1774
  %1776 = vmatmul.bf16.gmra.mxu0 %v1360
  %v1777 = vpop.f32.mrf.mxu0
  %v1778 = vadd.f32 0.0, %v1777
  %v1779 = vpop.f32.mrf.mxu0
  %v1780 = vadd.f32 0.0, %v1779
  %1781 = vmatmul.bf16.gmra.mxu0 %v1362
  %v1782 = vpop.f32.mrf.mxu0
  %v1783 = vadd.f32 0.0, %v1782
  %v1784 = vpop.f32.mrf.mxu0
  %v1785 = vadd.f32 0.0, %v1784
  %1786 = vmatmul.bf16.gmra.mxu0 %v1364
  %v1787 = vpop.f32.mrf.mxu0
  %v1788 = vadd.f32 0.0, %v1787
  %v1789 = vpop.f32.mrf.mxu0
  %v1790 = vadd.f32 0.0, %v1789
  %1791 = vmatmul.bf16.gmra.mxu0 %v1366
  %v1792 = vpop.f32.mrf.mxu0
  %v1793 = vadd.f32 0.0, %v1792
  %v1794 = vpop.f32.mrf.mxu0
  %v1795 = vadd.f32 0.0, %v1794
  %1796 = vmatmul.bf16.gmra.mxu0 %v1368
  %v1797 = vpop.f32.mrf.mxu0
  %v1798 = vadd.f32 0.0, %v1797
  %v1799 = vpop.f32.mrf.mxu0
  %v1800 = vadd.f32 0.0, %v1799
  %1801 = vmatmul.bf16.gmra.mxu0 %v1370
  %v1802 = vpop.f32.mrf.mxu0
  %v1803 = vadd.f32 0.0, %v1802
  %v1804 = vpop.f32.mrf.mxu0
  %v1805 = vadd.f32 0.0, %v1804
  %1806 = vmatmul.bf16.gmra.mxu0 %v1372
  %v1807 = vpop.f32.mrf.mxu0
  %v1808 = vadd.f32 0.0, %v1807
  %v1809 = vpop.f32.mrf.mxu0
  %v1810 = vadd.f32 0.0, %v1809
  %1811 = vmatmul.bf16.gmra.mxu0 %v1374
  %v1812 = vpop.f32.mrf.mxu0
  %v1813 = vadd.f32 0.0, %v1812
  %v1814 = vpop.f32.mrf.mxu0
  %v1815 = vadd.f32 0.0, %v1814
  %1816 = vmatmul.bf16.gmra.mxu0 %v1376
  %v1817 = vpop.f32.mrf.mxu0
  %v1818 = vadd.f32 0.0, %v1817
  %v1819 = vpop.f32.mrf.mxu0
  %v1820 = vadd.f32 0.0, %v1819
  %1821 = vmatmul.bf16.gmra.mxu0 %v1378
  %v1822 = vpop.f32.mrf.mxu0
  %v1823 = vadd.f32 0.0, %v1822
  %v1824 = vpop.f32.mrf.mxu0
  %v1825 = vadd.f32 0.0, %v1824
  %1826 = vmatmul.bf16.gmra.mxu0 %v1380
  %v1827 = vpop.f32.mrf.mxu0
  %v1828 = vadd.f32 0.0, %v1827
  %v1829 = vpop.f32.mrf.mxu0
  %v1830 = vadd.f32 0.0, %v1829
  %1831 = vmatmul.bf16.gmra.mxu0 %v1382
  %v1832 = vpop.f32.mrf.mxu0
  %v1833 = vadd.f32 0.0, %v1832
  %v1834 = vpop.f32.mrf.mxu0
  %v1835 = vadd.f32 0.0, %v1834
  %1836 = vmatmul.bf16.gmra.mxu0 %v1384
  %v1837 = vpop.f32.mrf.mxu0
  %v1838 = vadd.f32 0.0, %v1837
  %v1839 = vpop.f32.mrf.mxu0
  %v1840 = vadd.f32 0.0, %v1839
  %1841 = vmatmul.bf16.gmra.mxu0 %v1386
  %v1842 = vpop.f32.mrf.mxu0
  %v1843 = vadd.f32 0.0, %v1842
  %v1844 = vpop.f32.mrf.mxu0
  %v1845 = vadd.f32 0.0, %v1844
  %1846 = vmatmul.bf16.gmra.mxu0 %v1388
  %v1847 = vpop.f32.mrf.mxu0
  %v1848 = vadd.f32 0.0, %v1847
  %v1849 = vpop.f32.mrf.mxu0
  %v1850 = vadd.f32 0.0, %v1849
  %1851 = vmatmul.bf16.gmra.mxu0 %v1390
  %v1852 = vpop.f32.mrf.mxu0
  %v1853 = vadd.f32 0.0, %v1852
  %v1854 = vpop.f32.mrf.mxu0
  %v1855 = vadd.f32 0.0, %v1854
  %1856 = vmatmul.bf16.gmra.mxu0 %v1392
  %v1857 = vpop.f32.mrf.mxu0
  %v1858 = vadd.f32 0.0, %v1857
  %v1859 = vpop.f32.mrf.mxu0
  %v1860 = vadd.f32 0.0, %v1859
  %1861 = vmatmul.bf16.gmra.mxu0 %v1394
  %v1862 = vpop.f32.mrf.mxu0
  %v1863 = vadd.f32 0.0, %v1862
  %v1864 = vpop.f32.mrf.mxu0
  %v1865 = vadd.f32 0.0, %v1864
  %1866 = vmatmul.bf16.gmra.mxu0 %v1396
  %v1867 = vpop.f32.mrf.mxu0
  %v1868 = vadd.f32 0.0, %v1867
  %v1869 = vpop.f32.mrf.mxu0
  %v1870 = vadd.f32 0.0, %v1869
  %1871 = vmatmul.bf16.gmra.mxu0 %v1398
  %v1872 = vpop.f32.mrf.mxu0
  %v1873 = vadd.f32 0.0, %v1872
  %v1874 = vpop.f32.mrf.mxu0
  %v1875 = vadd.f32 0.0, %v1874
  %1876 = vmatmul.bf16.gmra.mxu0 %v1400
  %v1877 = vpop.f32.mrf.mxu0
  %v1878 = vadd.f32 0.0, %v1877
  %v1879 = vpop.f32.mrf.mxu0
  %v1880 = vadd.f32 0.0, %v1879
  %1881 = vmatmul.bf16.gmra.mxu0 %v1402
  %v1882 = vpop.f32.mrf.mxu0
  %v1883 = vadd.f32 0.0, %v1882
  %v1884 = vpop.f32.mrf.mxu0
  %v1885 = vadd.f32 0.0, %v1884
  %1886 = vmatmul.bf16.gmra.mxu0 %v1404
  %v1887 = vpop.f32.mrf.mxu0
  %v1888 = vadd.f32 0.0, %v1887
  %v1889 = vpop.f32.mrf.mxu0
  %v1890 = vadd.f32 0.0, %v1889
  %1891 = vmatmul.bf16.gmra.mxu0 %v1406
  %v1892 = vpop.f32.mrf.mxu0
  %v1893 = vadd.f32 0.0, %v1892
  %v1894 = vpop.f32.mrf.mxu0
  %v1895 = vadd.f32 0.0, %v1894
  %1896 = vdwg.mxu0
  %1897 = vmatpush.bf16.msra.mxu0 %v1677
  %1898 = vmatpush.bf16.msra.mxu0 %v1674
  %1899 = vmatpush.bf16.msra.mxu0 %v1671
  %1900 = vmatpush.bf16.msra.mxu0 %v1668
  %1901 = vmatpush.bf16.msra.mxu0 %v1665
  %1902 = vmatpush.bf16.msra.mxu0 %v1662
  %1903 = vmatpush.bf16.msra.mxu0 %v1659
  %1904 = vmatpush.bf16.msra.mxu0 %v1656
  %1905 = vmatmul.bf16.gmra.mxu0 %v1345
  %v1906 = vpop.f32.mrf.mxu0
  %v1907 = vadd.f32 %v1738, %v1906
  %v1908 = vpop.f32.mrf.mxu0
  %v1909 = vadd.f32 %v1740, %v1908
  %1910 = vmatmul.bf16.gmra.mxu0 %v1347
  %v1911 = vpop.f32.mrf.mxu0
  %v1912 = vadd.f32 %v1743, %v1911
  %v1913 = vpop.f32.mrf.mxu0
  %v1914 = vadd.f32 %v1745, %v1913
  %1915 = vmatmul.bf16.gmra.mxu0 %v1349
  %v1916 = vpop.f32.mrf.mxu0
  %v1917 = vadd.f32 %v1748, %v1916
  %v1918 = vpop.f32.mrf.mxu0
  %v1919 = vadd.f32 %v1750, %v1918
  %1920 = vmatmul.bf16.gmra.mxu0 %v1351
  %v1921 = vpop.f32.mrf.mxu0
  %v1922 = vadd.f32 %v1753, %v1921
  %v1923 = vpop.f32.mrf.mxu0
  %v1924 = vadd.f32 %v1755, %v1923
  %1925 = vmatmul.bf16.gmra.mxu0 %v1353
  %v1926 = vpop.f32.mrf.mxu0
  %v1927 = vadd.f32 %v1758, %v1926
  %v1928 = vpop.f32.mrf.mxu0
  %v1929 = vadd.f32 %v1760, %v1928
  %1930 = vmatmul.bf16.gmra.mxu0 %v1355
  %v1931 = vpop.f32.mrf.mxu0
  %v1932 = vadd.f32 %v1763, %v1931
  %v1933 = vpop.f32.mrf.mxu0
  %v1934 = vadd.f32 %v1765, %v1933
  %1935 = vmatmul.bf16.gmra.mxu0 %v1357
  %v1936 = vpop.f32.mrf.mxu0
  %v1937 = vadd.f32 %v1768, %v1936
  %v1938 = vpop.f32.mrf.mxu0
  %v1939 = vadd.f32 %v1770, %v1938
  %1940 = vmatmul.bf16.gmra.mxu0 %v1359
  %v1941 = vpop.f32.mrf.mxu0
  %v1942 = vadd.f32 %v1773, %v1941
  %v1943 = vpop.f32.mrf.mxu0
  %v1944 = vadd.f32 %v1775, %v1943
  %1945 = vmatmul.bf16.gmra.mxu0 %v1361
  %v1946 = vpop.f32.mrf.mxu0
  %v1947 = vadd.f32 %v1778, %v1946
  %v1948 = vpop.f32.mrf.mxu0
  %v1949 = vadd.f32 %v1780, %v1948
  %1950 = vmatmul.bf16.gmra.mxu0 %v1363
  %v1951 = vpop.f32.mrf.mxu0
  %v1952 = vadd.f32 %v1783, %v1951
  %v1953 = vpop.f32.mrf.mxu0
  %v1954 = vadd.f32 %v1785, %v1953
  %1955 = vmatmul.bf16.gmra.mxu0 %v1365
  %v1956 = vpop.f32.mrf.mxu0
  %v1957 = vadd.f32 %v1788, %v1956
  %v1958 = vpop.f32.mrf.mxu0
  %v1959 = vadd.f32 %v1790, %v1958
  %1960 = vmatmul.bf16.gmra.mxu0 %v1367
  %v1961 = vpop.f32.mrf.mxu0
  %v1962 = vadd.f32 %v1793, %v1961
  %v1963 = vpop.f32.mrf.mxu0
  %v1964 = vadd.f32 %v1795, %v1963
  %1965 = vmatmul.bf16.gmra.mxu0 %v1369
  %v1966 = vpop.f32.mrf.mxu0
  %v1967 = vadd.f32 %v1798, %v1966
  %v1968 = vpop.f32.mrf.mxu0
  %v1969 = vadd.f32 %v1800, %v1968
  %1970 = vmatmul.bf16.gmra.mxu0 %v1371
  %v1971 = vpop.f32.mrf.mxu0
  %v1972 = vadd.f32 %v1803, %v1971
  %v1973 = vpop.f32.mrf.mxu0
  %v1974 = vadd.f32 %v1805, %v1973
  %1975 = vmatmul.bf16.gmra.mxu0 %v1373
  %v1976 = vpop.f32.mrf.mxu0
  %v1977 = vadd.f32 %v1808, %v1976
  %v1978 = vpop.f32.mrf.mxu0
  %v1979 = vadd.f32 %v1810, %v1978
  %1980 = vmatmul.bf16.gmra.mxu0 %v1375
  %v1981 = vpop.f32.mrf.mxu0
  %v1982 = vadd.f32 %v1813, %v1981
  %v1983 = vpop.f32.mrf.mxu0
  %v1984 = vadd.f32 %v1815, %v1983
  %1985 = vmatmul.bf16.gmra.mxu0 %v1377
  %v1986 = vpop.f32.mrf.mxu0
  %v1987 = vadd.f32 %v1818, %v1986
  %v1988 = vpop.f32.mrf.mxu0
  %v1989 = vadd.f32 %v1820, %v1988
  %1990 = vmatmul.bf16.gmra.mxu0 %v1379
  %v1991 = vpop.f32.mrf.mxu0
  %v1992 = vadd.f32 %v1823, %v1991
  %v1993 = vpop.f32.mrf.mxu0
  %v1994 = vadd.f32 %v1825, %v1993
  %1995 = vmatmul.bf16.gmra.mxu0 %v1381
  %v1996 = vpop.f32.mrf.mxu0
  %v1997 = vadd.f32 %v1828, %v1996
  %v1998 = vpop.f32.mrf.mxu0
  %v1999 = vadd.f32 %v1830, %v1998
  %2000 = vmatmul.bf16.gmra.mxu0 %v1383
  %v2001 = vpop.f32.mrf.mxu0
  %v2002 = vadd.f32 %v1833, %v2001
  %v2003 = vpop.f32.mrf.mxu0
  %v2004 = vadd.f32 %v1835, %v2003
  %2005 = vmatmul.bf16.gmra.mxu0 %v1385
  %v2006 = vpop.f32.mrf.mxu0
  %v2007 = vadd.f32 %v1838, %v2006
  %v2008 = vpop.f32.mrf.mxu0
  %v2009 = vadd.f32 %v1840, %v2008
  %2010 = vmatmul.bf16.gmra.mxu0 %v1387
  %v2011 = vpop.f32.mrf.mxu0
  %v2012 = vadd.f32 %v1843, %v2011
  %v2013 = vpop.f32.mrf.mxu0
  %v2014 = vadd.f32 %v1845, %v2013
  %2015 = vmatmul.bf16.gmra.mxu0 %v1389
  %v2016 = vpop.f32.mrf.mxu0
  %v2017 = vadd.f32 %v1848, %v2016
  %v2018 = vpop.f32.mrf.mxu0
  %v2019 = vadd.f32 %v1850, %v2018
  %2020 = vmatmul.bf16.gmra.mxu0 %v1391
  %v2021 = vpop.f32.mrf.mxu0
  %v2022 = vadd.f32 %v1853, %v2021
  %v2023 = vpop.f32.mrf.mxu0
  %v2024 = vadd.f32 %v1855, %v2023
  %2025 = vmatmul.bf16.gmra.mxu0 %v1393
  %v2026 = vpop.f32.mrf.mxu0
  %v2027 = vadd.f32 %v1858, %v2026
  %v2028 = vpop.f32.mrf.mxu0
  %v2029 = vadd.f32 %v1860, %v2028
  %2030 = vmatmul.bf16.gmra.mxu0 %v1395
  %v2031 = vpop.f32.mrf.mxu0
  %v2032 = vadd.f32 %v1863, %v2031
  %v2033 = vpop.f32.mrf.mxu0
  %v2034 = vadd.f32 %v1865, %v2033
  %2035 = vmatmul.bf16.gmra.mxu0 %v1397
  %v2036 = vpop.f32.mrf.mxu0
  %v2037 = vadd.f32 %v1868, %v2036
  %v2038 = vpop.f32.mrf.mxu0
  %v2039 = vadd.f32 %v1870, %v2038
  %2040 = vmatmul.bf16.gmra.mxu0 %v1399
  %v2041 = vpop.f32.mrf.mxu0
  %v2042 = vadd.f32 %v1873, %v2041
  %v2043 = vpop.f32.mrf.mxu0
  %v2044 = vadd.f32 %v1875, %v2043
  %2045 = vmatmul.bf16.gmra.mxu0 %v1401
  %v2046 = vpop.f32.mrf.mxu0
  %v2047 = vadd.f32 %v1878, %v2046
  %v2048 = vpop.f32.mrf.mxu0
  %v2049 = vadd.f32 %v1880, %v2048
  %2050 = vmatmul.bf16.gmra.mxu0 %v1403
  %v2051 = vpop.f32.mrf.mxu0
  %v2052 = vadd.f32 %v1883, %v2051
  %v2053 = vpop.f32.mrf.mxu0
  %v2054 = vadd.f32 %v1885, %v2053
  %2055 = vmatmul.bf16.gmra.mxu0 %v1405
  %v2056 = vpop.f32.mrf.mxu0
  %v2057 = vadd.f32 %v1888, %v2056
  %v2058 = vpop.f32.mrf.mxu0
  %v2059 = vadd.f32 %v1890, %v2058
  %2060 = vmatmul.bf16.gmra.mxu0 %v1407
  %v2061 = vpop.f32.mrf.mxu0
  %v2062 = vadd.f32 %v1893, %v2061
  %v2063 = vpop.f32.mrf.mxu0
  %v2064 = vadd.f32 %v1895, %v2063
  %2065 = vdwg.mxu0
  %2066 = vmatpush.bf16.msra.mxu0 %v1654
  %2067 = vmatpush.bf16.msra.mxu0 %v1651
  %2068 = vmatpush.bf16.msra.mxu0 %v1648
  %2069 = vmatpush.bf16.msra.mxu0 %v1645
  %2070 = vmatpush.bf16.msra.mxu0 %v1642
  %2071 = vmatpush.bf16.msra.mxu0 %v1639
  %2072 = vmatpush.bf16.msra.mxu0 %v1636
  %2073 = vmatpush.bf16.msra.mxu0 %v1633
  %2074 = vmatmul.bf16.gmra.mxu0 %v1344
  %v2075 = vpop.f32.mrf.mxu0
  %v2076 = vadd.f32 0.0, %v2075
  %v2077 = vpop.f32.mrf.mxu0
  %v2078 = vadd.f32 0.0, %v2077
  %2079 = vmatmul.bf16.gmra.mxu0 %v1346
  %v2080 = vpop.f32.mrf.mxu0
  %v2081 = vadd.f32 0.0, %v2080
  %v2082 = vpop.f32.mrf.mxu0
  %v2083 = vadd.f32 0.0, %v2082
  %2084 = vmatmul.bf16.gmra.mxu0 %v1348
  %v2085 = vpop.f32.mrf.mxu0
  %v2086 = vadd.f32 0.0, %v2085
  %v2087 = vpop.f32.mrf.mxu0
  %v2088 = vadd.f32 0.0, %v2087
  %2089 = vmatmul.bf16.gmra.mxu0 %v1350
  %v2090 = vpop.f32.mrf.mxu0
  %v2091 = vadd.f32 0.0, %v2090
  %v2092 = vpop.f32.mrf.mxu0
  %v2093 = vadd.f32 0.0, %v2092
  %2094 = vmatmul.bf16.gmra.mxu0 %v1352
  %v2095 = vpop.f32.mrf.mxu0
  %v2096 = vadd.f32 0.0, %v2095
  %v2097 = vpop.f32.mrf.mxu0
  %v2098 = vadd.f32 0.0, %v2097
  %2099 = vmatmul.bf16.gmra.mxu0 %v1354
  %v2100 = vpop.f32.mrf.mxu0
  %v2101 = vadd.f32 0.0, %v2100
  %v2102 = vpop.f32.mrf.mxu0
  %v2103 = vadd.f32 0.0, %v2102
  %2104 = vmatmul.bf16.gmra.mxu0 %v1356
  %v2105 = vpop.f32.mrf.mxu0
  %v2106 = vadd.f32 0.0, %v2105
  %v2107 = vpop.f32.mrf.mxu0
  %v2108 = vadd.f32 0.0, %v2107
  %2109 = vmatmul.bf16.gmra.mxu0 %v1358
  %v2110 = vpop.f32.mrf.mxu0
  %v2111 = vadd.f32 0.0, %v2110
  %v2112 = vpop.f32.mrf.mxu0
  %v2113 = vadd.f32 0.0, %v2112
  %2114 = vmatmul.bf16.gmra.mxu0 %v1360
  %v2115 = vpop.f32.mrf.mxu0
  %v2116 = vadd.f32 0.0, %v2115
  %v2117 = vpop.f32.mrf.mxu0
  %v2118 = vadd.f32 0.0, %v2117
  %2119 = vmatmul.bf16.gmra.mxu0 %v1362
  %v2120 = vpop.f32.mrf.mxu0
  %v2121 = vadd.f32 0.0, %v2120
  %v2122 = vpop.f32.mrf.mxu0
  %v2123 = vadd.f32 0.0, %v2122
  %2124 = vmatmul.bf16.gmra.mxu0 %v1364
  %v2125 = vpop.f32.mrf.mxu0
  %v2126 = vadd.f32 0.0, %v2125
  %v2127 = vpop.f32.mrf.mxu0
  %v2128 = vadd.f32 0.0, %v2127
  %2129 = vmatmul.bf16.gmra.mxu0 %v1366
  %v2130 = vpop.f32.mrf.mxu0
  %v2131 = vadd.f32 0.0, %v2130
  %v2132 = vpop.f32.mrf.mxu0
  %v2133 = vadd.f32 0.0, %v2132
  %2134 = vmatmul.bf16.gmra.mxu0 %v1368
  %v2135 = vpop.f32.mrf.mxu0
  %v2136 = vadd.f32 0.0, %v2135
  %v2137 = vpop.f32.mrf.mxu0
  %v2138 = vadd.f32 0.0, %v2137
  %2139 = vmatmul.bf16.gmra.mxu0 %v1370
  %v2140 = vpop.f32.mrf.mxu0
  %v2141 = vadd.f32 0.0, %v2140
  %v2142 = vpop.f32.mrf.mxu0
  %v2143 = vadd.f32 0.0, %v2142
  %2144 = vmatmul.bf16.gmra.mxu0 %v1372
  %v2145 = vpop.f32.mrf.mxu0
  %v2146 = vadd.f32 0.0, %v2145
  %v2147 = vpop.f32.mrf.mxu0
  %v2148 = vadd.f32 0.0, %v2147
  %2149 = vmatmul.bf16.gmra.mxu0 %v1374
  %v2150 = vpop.f32.mrf.mxu0
  %v2151 = vadd.f32 0.0, %v2150
  %v2152 = vpop.f32.mrf.mxu0
  %v2153 = vadd.f32 0.0, %v2152
  %2154 = vmatmul.bf16.gmra.mxu0 %v1376
  %v2155 = vpop.f32.mrf.mxu0
  %v2156 = vadd.f32 0.0, %v2155
  %v2157 = vpop.f32.mrf.mxu0
  %v2158 = vadd.f32 0.0, %v2157
  %2159 = vmatmul.bf16.gmra.mxu0 %v1378
  %v2160 = vpop.f32.mrf.mxu0
  %v2161 = vadd.f32 0.0, %v2160
  %v2162 = vpop.f32.mrf.mxu0
  %v2163 = vadd.f32 0.0, %v2162
  %2164 = vmatmul.bf16.gmra.mxu0 %v1380
  %v2165 = vpop.f32.mrf.mxu0
  %v2166 = vadd.f32 0.0, %v2165
  %v2167 = vpop.f32.mrf.mxu0
  %v2168 = vadd.f32 0.0, %v2167
  %2169 = vmatmul.bf16.gmra.mxu0 %v1382
  %v2170 = vpop.f32.mrf.mxu0
  %v2171 = vadd.f32 0.0, %v2170
  %v2172 = vpop.f32.mrf.mxu0
  %v2173 = vadd.f32 0.0, %v2172
  %2174 = vmatmul.bf16.gmra.mxu0 %v1384
  %v2175 = vpop.f32.mrf.mxu0
  %v2176 = vadd.f32 0.0, %v2175
  %v2177 = vpop.f32.mrf.mxu0
  %v2178 = vadd.f32 0.0, %v2177
  %2179 = vmatmul.bf16.gmra.mxu0 %v1386
  %v2180 = vpop.f32.mrf.mxu0
  %v2181 = vadd.f32 0.0, %v2180
  %v2182 = vpop.f32.mrf.mxu0
  %v2183 = vadd.f32 0.0, %v2182
  %2184 = vmatmul.bf16.gmra.mxu0 %v1388
  %v2185 = vpop.f32.mrf.mxu0
  %v2186 = vadd.f32 0.0, %v2185
  %v2187 = vpop.f32.mrf.mxu0
  %v2188 = vadd.f32 0.0, %v2187
  %2189 = vmatmul.bf16.gmra.mxu0 %v1390
  %v2190 = vpop.f32.mrf.mxu0
  %v2191 = vadd.f32 0.0, %v2190
  %v2192 = vpop.f32.mrf.mxu0
  %v2193 = vadd.f32 0.0, %v2192
  %2194 = vmatmul.bf16.gmra.mxu0 %v1392
  %v2195 = vpop.f32.mrf.mxu0
  %v2196 = vadd.f32 0.0, %v2195
  %v2197 = vpop.f32.mrf.mxu0
  %v2198 = vadd.f32 0.0, %v2197
  %2199 = vmatmul.bf16.gmra.mxu0 %v1394
  %v2200 = vpop.f32.mrf.mxu0
  %v2201 = vadd.f32 0.0, %v2200
  %v2202 = vpop.f32.mrf.mxu0
  %v2203 = vadd.f32 0.0, %v2202
  %2204 = vmatmul.bf16.gmra.mxu0 %v1396
  %v2205 = vpop.f32.mrf.mxu0
  %v2206 = vadd.f32 0.0, %v2205
  %v2207 = vpop.f32.mrf.mxu0
  %v2208 = vadd.f32 0.0, %v2207
  %2209 = vmatmul.bf16.gmra.mxu0 %v1398
  %v2210 = vpop.f32.mrf.mxu0
  %v2211 = vadd.f32 0.0, %v2210
  %v2212 = vpop.f32.mrf.mxu0
  %v2213 = vadd.f32 0.0, %v2212
  %2214 = vmatmul.bf16.gmra.mxu0 %v1400
  %v2215 = vpop.f32.mrf.mxu0
  %v2216 = vadd.f32 0.0, %v2215
  %v2217 = vpop.f32.mrf.mxu0
  %v2218 = vadd.f32 0.0, %v2217
  %2219 = vmatmul.bf16.gmra.mxu0 %v1402
  %v2220 = vpop.f32.mrf.mxu0
  %v2221 = vadd.f32 0.0, %v2220
  %v2222 = vpop.f32.mrf.mxu0
  %v2223 = vadd.f32 0.0, %v2222
  %2224 = vmatmul.bf16.gmra.mxu0 %v1404
  %v2225 = vpop.f32.mrf.mxu0
  %v2226 = vadd.f32 0.0, %v2225
  %v2227 = vpop.f32.mrf.mxu0
  %v2228 = vadd.f32 0.0, %v2227
  %2229 = vmatmul.bf16.gmra.mxu0 %v1406
  %v2230 = vpop.f32.mrf.mxu0
  %v2231 = vadd.f32 0.0, %v2230
  %v2232 = vpop.f32.mrf.mxu0
  %v2233 = vadd.f32 0.0, %v2232
  %2234 = vdwg.mxu0
  %2235 = vmatpush.bf16.msra.mxu0 %v1678
  %2236 = vmatpush.bf16.msra.mxu0 %v1675
  %2237 = vmatpush.bf16.msra.mxu0 %v1672
  %2238 = vmatpush.bf16.msra.mxu0 %v1669
  %2239 = vmatpush.bf16.msra.mxu0 %v1666
  %2240 = vmatpush.bf16.msra.mxu0 %v1663
  %2241 = vmatpush.bf16.msra.mxu0 %v1660
  %2242 = vmatpush.bf16.msra.mxu0 %v1657
  %2243 = vmatmul.bf16.gmra.mxu0 %v1345
  %v2244 = vpop.f32.mrf.mxu0
  %v2245 = vadd.f32 %v2076, %v2244
  %v2246 = vpop.f32.mrf.mxu0
  %v2247 = vadd.f32 %v2078, %v2246
  %2248 = vmatmul.bf16.gmra.mxu0 %v1347
  %v2249 = vpop.f32.mrf.mxu0
  %v2250 = vadd.f32 %v2081, %v2249
  %v2251 = vpop.f32.mrf.mxu0
  %v2252 = vadd.f32 %v2083, %v2251
  %2253 = vmatmul.bf16.gmra.mxu0 %v1349
  %v2254 = vpop.f32.mrf.mxu0
  %v2255 = vadd.f32 %v2086, %v2254
  %v2256 = vpop.f32.mrf.mxu0
  %v2257 = vadd.f32 %v2088, %v2256
  %2258 = vmatmul.bf16.gmra.mxu0 %v1351
  %v2259 = vpop.f32.mrf.mxu0
  %v2260 = vadd.f32 %v2091, %v2259
  %v2261 = vpop.f32.mrf.mxu0
  %v2262 = vadd.f32 %v2093, %v2261
  %2263 = vmatmul.bf16.gmra.mxu0 %v1353
  %v2264 = vpop.f32.mrf.mxu0
  %v2265 = vadd.f32 %v2096, %v2264
  %v2266 = vpop.f32.mrf.mxu0
  %v2267 = vadd.f32 %v2098, %v2266
  %2268 = vmatmul.bf16.gmra.mxu0 %v1355
  %v2269 = vpop.f32.mrf.mxu0
  %v2270 = vadd.f32 %v2101, %v2269
  %v2271 = vpop.f32.mrf.mxu0
  %v2272 = vadd.f32 %v2103, %v2271
  %2273 = vmatmul.bf16.gmra.mxu0 %v1357
  %v2274 = vpop.f32.mrf.mxu0
  %v2275 = vadd.f32 %v2106, %v2274
  %v2276 = vpop.f32.mrf.mxu0
  %v2277 = vadd.f32 %v2108, %v2276
  %2278 = vmatmul.bf16.gmra.mxu0 %v1359
  %v2279 = vpop.f32.mrf.mxu0
  %v2280 = vadd.f32 %v2111, %v2279
  %v2281 = vpop.f32.mrf.mxu0
  %v2282 = vadd.f32 %v2113, %v2281
  %2283 = vmatmul.bf16.gmra.mxu0 %v1361
  %v2284 = vpop.f32.mrf.mxu0
  %v2285 = vadd.f32 %v2116, %v2284
  %v2286 = vpop.f32.mrf.mxu0
  %v2287 = vadd.f32 %v2118, %v2286
  %2288 = vmatmul.bf16.gmra.mxu0 %v1363
  %v2289 = vpop.f32.mrf.mxu0
  %v2290 = vadd.f32 %v2121, %v2289
  %v2291 = vpop.f32.mrf.mxu0
  %v2292 = vadd.f32 %v2123, %v2291
  %2293 = vmatmul.bf16.gmra.mxu0 %v1365
  %v2294 = vpop.f32.mrf.mxu0
  %v2295 = vadd.f32 %v2126, %v2294
  %v2296 = vpop.f32.mrf.mxu0
  %v2297 = vadd.f32 %v2128, %v2296
  %2298 = vmatmul.bf16.gmra.mxu0 %v1367
  %v2299 = vpop.f32.mrf.mxu0
  %v2300 = vadd.f32 %v2131, %v2299
  %v2301 = vpop.f32.mrf.mxu0
  %v2302 = vadd.f32 %v2133, %v2301
  %2303 = vmatmul.bf16.gmra.mxu0 %v1369
  %v2304 = vpop.f32.mrf.mxu0
  %v2305 = vadd.f32 %v2136, %v2304
  %v2306 = vpop.f32.mrf.mxu0
  %v2307 = vadd.f32 %v2138, %v2306
  %2308 = vmatmul.bf16.gmra.mxu0 %v1371
  %v2309 = vpop.f32.mrf.mxu0
  %v2310 = vadd.f32 %v2141, %v2309
  %v2311 = vpop.f32.mrf.mxu0
  %v2312 = vadd.f32 %v2143, %v2311
  %2313 = vmatmul.bf16.gmra.mxu0 %v1373
  %v2314 = vpop.f32.mrf.mxu0
  %v2315 = vadd.f32 %v2146, %v2314
  %v2316 = vpop.f32.mrf.mxu0
  %v2317 = vadd.f32 %v2148, %v2316
  %2318 = vmatmul.bf16.gmra.mxu0 %v1375
  %v2319 = vpop.f32.mrf.mxu0
  %v2320 = vadd.f32 %v2151, %v2319
  %v2321 = vpop.f32.mrf.mxu0
  %v2322 = vadd.f32 %v2153, %v2321
  %2323 = vmatmul.bf16.gmra.mxu0 %v1377
  %v2324 = vpop.f32.mrf.mxu0
  %v2325 = vadd.f32 %v2156, %v2324
  %v2326 = vpop.f32.mrf.mxu0
  %v2327 = vadd.f32 %v2158, %v2326
  %2328 = vmatmul.bf16.gmra.mxu0 %v1379
  %v2329 = vpop.f32.mrf.mxu0
  %v2330 = vadd.f32 %v2161, %v2329
  %v2331 = vpop.f32.mrf.mxu0
  %v2332 = vadd.f32 %v2163, %v2331
  %2333 = vmatmul.bf16.gmra.mxu0 %v1381
  %v2334 = vpop.f32.mrf.mxu0
  %v2335 = vadd.f32 %v2166, %v2334
  %v2336 = vpop.f32.mrf.mxu0
  %v2337 = vadd.f32 %v2168, %v2336
  %2338 = vmatmul.bf16.gmra.mxu0 %v1383
  %v2339 = vpop.f32.mrf.mxu0
  %v2340 = vadd.f32 %v2171, %v2339
  %v2341 = vpop.f32.mrf.mxu0
  %v2342 = vadd.f32 %v2173, %v2341
  %2343 = vmatmul.bf16.gmra.mxu0 %v1385
  %v2344 = vpop.f32.mrf.mxu0
  %v2345 = vadd.f32 %v2176, %v2344
  %v2346 = vpop.f32.mrf.mxu0
  %v2347 = vadd.f32 %v2178, %v2346
  %2348 = vmatmul.bf16.gmra.mxu0 %v1387
  %v2349 = vpop.f32.mrf.mxu0
  %v2350 = vadd.f32 %v2181, %v2349
  %v2351 = vpop.f32.mrf.mxu0
  %v2352 = vadd.f32 %v2183, %v2351
  %2353 = vmatmul.bf16.gmra.mxu0 %v1389
  %v2354 = vpop.f32.mrf.mxu0
  %v2355 = vadd.f32 %v2186, %v2354
  %v2356 = vpop.f32.mrf.mxu0
  %v2357 = vadd.f32 %v2188, %v2356
  %2358 = vmatmul.bf16.gmra.mxu0 %v1391
  %v2359 = vpop.f32.mrf.mxu0
  %v2360 = vadd.f32 %v2191, %v2359
  %v2361 = vpop.f32.mrf.mxu0
  %v2362 = vadd.f32 %v2193, %v2361
  %2363 = vmatmul.bf16.gmra.mxu0 %v1393
  %v2364 = vpop.f32.mrf.mxu0
  %v2365 = vadd.f32 %v2196, %v2364
  %v2366 = vpop.f32.mrf.mxu0
  %v2367 = vadd.f32 %v2198, %v2366
  %2368 = vmatmul.bf16.gmra.mxu0 %v1395
  %v2369 = vpop.f32.mrf.mxu0
  %v2370 = vadd.f32 %v2201, %v2369
  %v2371 = vpop.f32.mrf.mxu0
  %v2372 = vadd.f32 %v2203, %v2371
  %2373 = vmatmul.bf16.gmra.mxu0 %v1397
  %v2374 = vpop.f32.mrf.mxu0
  %v2375 = vadd.f32 %v2206, %v2374
  %v2376 = vpop.f32.mrf.mxu0
  %v2377 = vadd.f32 %v2208, %v2376
  %2378 = vmatmul.bf16.gmra.mxu0 %v1399
  %v2379 = vpop.f32.mrf.mxu0
  %v2380 = vadd.f32 %v2211, %v2379
  %v2381 = vpop.f32.mrf.mxu0
  %v2382 = vadd.f32 %v2213, %v2381
  %2383 = vmatmul.bf16.gmra.mxu0 %v1401
  %v2384 = vpop.f32.mrf.mxu0
  %v2385 = vadd.f32 %v2216, %v2384
  %v2386 = vpop.f32.mrf.mxu0
  %v2387 = vadd.f32 %v2218, %v2386
  %2388 = vmatmul.bf16.gmra.mxu0 %v1403
  %v2389 = vpop.f32.mrf.mxu0
  %v2390 = vadd.f32 %v2221, %v2389
  %v2391 = vpop.f32.mrf.mxu0
  %v2392 = vadd.f32 %v2223, %v2391
  %2393 = vmatmul.bf16.gmra.mxu0 %v1405
  %v2394 = vpop.f32.mrf.mxu0
  %v2395 = vadd.f32 %v2226, %v2394
  %v2396 = vpop.f32.mrf.mxu0
  %v2397 = vadd.f32 %v2228, %v2396
  %2398 = vmatmul.bf16.gmra.mxu0 %v1407
  %v2399 = vpop.f32.mrf.mxu0
  %v2400 = vadd.f32 %v2231, %v2399
  %v2401 = vpop.f32.mrf.mxu0
  %v2402 = vadd.f32 %v2233, %v2401
  %2403 = vdwg.mxu0
  %2404 = vmatpush.bf16.msra.mxu0 %v1655
  %2405 = vmatpush.bf16.msra.mxu0 %v1652
  %2406 = vmatpush.bf16.msra.mxu0 %v1649
  %2407 = vmatpush.bf16.msra.mxu0 %v1646
  %2408 = vmatpush.bf16.msra.mxu0 %v1643
  %2409 = vmatpush.bf16.msra.mxu0 %v1640
  %2410 = vmatpush.bf16.msra.mxu0 %v1637
  %2411 = vmatpush.bf16.msra.mxu0 %v1634
  %2412 = vmatmul.bf16.gmra.mxu0 %v1344
  %v2413 = vpop.f32.mrf.mxu0
  %v2414 = vadd.f32 0.0, %v2413
  %v2415 = vpop.f32.mrf.mxu0
  %v2416 = vadd.f32 0.0, %v2415
  %2417 = vmatmul.bf16.gmra.mxu0 %v1346
  %v2418 = vpop.f32.mrf.mxu0
  %v2419 = vadd.f32 0.0, %v2418
  %v2420 = vpop.f32.mrf.mxu0
  %v2421 = vadd.f32 0.0, %v2420
  %2422 = vmatmul.bf16.gmra.mxu0 %v1348
  %v2423 = vpop.f32.mrf.mxu0
  %v2424 = vadd.f32 0.0, %v2423
  %v2425 = vpop.f32.mrf.mxu0
  %v2426 = vadd.f32 0.0, %v2425
  %2427 = vmatmul.bf16.gmra.mxu0 %v1350
  %v2428 = vpop.f32.mrf.mxu0
  %v2429 = vadd.f32 0.0, %v2428
  %v2430 = vpop.f32.mrf.mxu0
  %v2431 = vadd.f32 0.0, %v2430
  %2432 = vmatmul.bf16.gmra.mxu0 %v1352
  %v2433 = vpop.f32.mrf.mxu0
  %v2434 = vadd.f32 0.0, %v2433
  %v2435 = vpop.f32.mrf.mxu0
  %v2436 = vadd.f32 0.0, %v2435
  %2437 = vmatmul.bf16.gmra.mxu0 %v1354
  %v2438 = vpop.f32.mrf.mxu0
  %v2439 = vadd.f32 0.0, %v2438
  %v2440 = vpop.f32.mrf.mxu0
  %v2441 = vadd.f32 0.0, %v2440
  %2442 = vmatmul.bf16.gmra.mxu0 %v1356
  %v2443 = vpop.f32.mrf.mxu0
  %v2444 = vadd.f32 0.0, %v2443
  %v2445 = vpop.f32.mrf.mxu0
  %v2446 = vadd.f32 0.0, %v2445
  %2447 = vmatmul.bf16.gmra.mxu0 %v1358
  %v2448 = vpop.f32.mrf.mxu0
  %v2449 = vadd.f32 0.0, %v2448
  %v2450 = vpop.f32.mrf.mxu0
  %v2451 = vadd.f32 0.0, %v2450
  %2452 = vmatmul.bf16.gmra.mxu0 %v1360
  %v2453 = vpop.f32.mrf.mxu0
  %v2454 = vadd.f32 0.0, %v2453
  %v2455 = vpop.f32.mrf.mxu0
  %v2456 = vadd.f32 0.0, %v2455
  %2457 = vmatmul.bf16.gmra.mxu0 %v1362
  %v2458 = vpop.f32.mrf.mxu0
  %v2459 = vadd.f32 0.0, %v2458
  %v2460 = vpop.f32.mrf.mxu0
  %v2461 = vadd.f32 0.0, %v2460
  %2462 = vmatmul.bf16.gmra.mxu0 %v1364
  %v2463 = vpop.f32.mrf.mxu0
  %v2464 = vadd.f32 0.0, %v2463
  %v2465 = vpop.f32.mrf.mxu0
  %v2466 = vadd.f32 0.0, %v2465
  %2467 = vmatmul.bf16.gmra.mxu0 %v1366
  %v2468 = vpop.f32.mrf.mxu0
  %v2469 = vadd.f32 0.0, %v2468
  %v2470 = vpop.f32.mrf.mxu0
  %v2471 = vadd.f32 0.0, %v2470
  %2472 = vmatmul.bf16.gmra.mxu0 %v1368
  %v2473 = vpop.f32.mrf.mxu0
  %v2474 = vadd.f32 0.0, %v2473
  %v2475 = vpop.f32.mrf.mxu0
  %v2476 = vadd.f32 0.0, %v2475
  %2477 = vmatmul.bf16.gmra.mxu0 %v1370
  %v2478 = vpop.f32.mrf.mxu0
  %v2479 = vadd.f32 0.0, %v2478
  %v2480 = vpop.f32.mrf.mxu0
  %v2481 = vadd.f32 0.0, %v2480
  %2482 = vmatmul.bf16.gmra.mxu0 %v1372
  %v2483 = vpop.f32.mrf.mxu0
  %v2484 = vadd.f32 0.0, %v2483
  %v2485 = vpop.f32.mrf.mxu0
  %v2486 = vadd.f32 0.0, %v2485
  %2487 = vmatmul.bf16.gmra.mxu0 %v1374
  %v2488 = vpop.f32.mrf.mxu0
  %v2489 = vadd.f32 0.0, %v2488
  %v2490 = vpop.f32.mrf.mxu0
  %v2491 = vadd.f32 0.0, %v2490
  %2492 = vmatmul.bf16.gmra.mxu0 %v1376
  %v2493 = vpop.f32.mrf.mxu0
  %v2494 = vadd.f32 0.0, %v2493
  %v2495 = vpop.f32.mrf.mxu0
  %v2496 = vadd.f32 0.0, %v2495
  %2497 = vmatmul.bf16.gmra.mxu0 %v1378
  %v2498 = vpop.f32.mrf.mxu0
  %v2499 = vadd.f32 0.0, %v2498
  %v2500 = vpop.f32.mrf.mxu0
  %v2501 = vadd.f32 0.0, %v2500
  %2502 = vmatmul.bf16.gmra.mxu0 %v1380
  %v2503 = vpop.f32.mrf.mxu0
  %v2504 = vadd.f32 0.0, %v2503
  %v2505 = vpop.f32.mrf.mxu0
  %v2506 = vadd.f32 0.0, %v2505
  %2507 = vmatmul.bf16.gmra.mxu0 %v1382
  %v2508 = vpop.f32.mrf.mxu0
  %v2509 = vadd.f32 0.0, %v2508
  %v2510 = vpop.f32.mrf.mxu0
  %v2511 = vadd.f32 0.0, %v2510
  %2512 = vmatmul.bf16.gmra.mxu0 %v1384
  %v2513 = vpop.f32.mrf.mxu0
  %v2514 = vadd.f32 0.0, %v2513
  %v2515 = vpop.f32.mrf.mxu0
  %v2516 = vadd.f32 0.0, %v2515
  %2517 = vmatmul.bf16.gmra.mxu0 %v1386
  %v2518 = vpop.f32.mrf.mxu0
  %v2519 = vadd.f32 0.0, %v2518
  %v2520 = vpop.f32.mrf.mxu0
  %v2521 = vadd.f32 0.0, %v2520
  %2522 = vmatmul.bf16.gmra.mxu0 %v1388
  %v2523 = vpop.f32.mrf.mxu0
  %v2524 = vadd.f32 0.0, %v2523
  %v2525 = vpop.f32.mrf.mxu0
  %v2526 = vadd.f32 0.0, %v2525
  %2527 = vmatmul.bf16.gmra.mxu0 %v1390
  %v2528 = vpop.f32.mrf.mxu0
  %v2529 = vadd.f32 0.0, %v2528
  %v2530 = vpop.f32.mrf.mxu0
  %v2531 = vadd.f32 0.0, %v2530
  %2532 = vmatmul.bf16.gmra.mxu0 %v1392
  %v2533 = vpop.f32.mrf.mxu0
  %v2534 = vadd.f32 0.0, %v2533
  %v2535 = vpop.f32.mrf.mxu0
  %v2536 = vadd.f32 0.0, %v2535
  %2537 = vmatmul.bf16.gmra.mxu0 %v1394
  %v2538 = vpop.f32.mrf.mxu0
  %v2539 = vadd.f32 0.0, %v2538
  %v2540 = vpop.f32.mrf.mxu0
  %v2541 = vadd.f32 0.0, %v2540
  %2542 = vmatmul.bf16.gmra.mxu0 %v1396
  %v2543 = vpop.f32.mrf.mxu0
  %v2544 = vadd.f32 0.0, %v2543
  %v2545 = vpop.f32.mrf.mxu0
  %v2546 = vadd.f32 0.0, %v2545
  %2547 = vmatmul.bf16.gmra.mxu0 %v1398
  %v2548 = vpop.f32.mrf.mxu0
  %v2549 = vadd.f32 0.0, %v2548
  %v2550 = vpop.f32.mrf.mxu0
  %v2551 = vadd.f32 0.0, %v2550
  %2552 = vmatmul.bf16.gmra.mxu0 %v1400
  %v2553 = vpop.f32.mrf.mxu0
  %v2554 = vadd.f32 0.0, %v2553
  %v2555 = vpop.f32.mrf.mxu0
  %v2556 = vadd.f32 0.0, %v2555
  %2557 = vmatmul.bf16.gmra.mxu0 %v1402
  %v2558 = vpop.f32.mrf.mxu0
  %v2559 = vadd.f32 0.0, %v2558
  %v2560 = vpop.f32.mrf.mxu0
  %v2561 = vadd.f32 0.0, %v2560
  %2562 = vmatmul.bf16.gmra.mxu0 %v1404
  %v2563 = vpop.f32.mrf.mxu0
  %v2564 = vadd.f32 0.0, %v2563
  %v2565 = vpop.f32.mrf.mxu0
  %v2566 = vadd.f32 0.0, %v2565
  %2567 = vmatmul.bf16.gmra.mxu0 %v1406
  %v2568 = vpop.f32.mrf.mxu0
  %v2569 = vadd.f32 0.0, %v2568
  %v2570 = vpop.f32.mrf.mxu0
  %v2571 = vadd.f32 0.0, %v2570
  %2572 = vdwg.mxu0
  %2573 = vmatpush.bf16.msra.mxu0 %v1679
  %2574 = vmatpush.bf16.msra.mxu0 %v1676
  %2575 = vmatpush.bf16.msra.mxu0 %v1673
  %2576 = vmatpush.bf16.msra.mxu0 %v1670
  %2577 = vmatpush.bf16.msra.mxu0 %v1667
  %2578 = vmatpush.bf16.msra.mxu0 %v1664
  %2579 = vmatpush.bf16.msra.mxu0 %v1661
  %2580 = vmatpush.bf16.msra.mxu0 %v1658
  %2581 = vmatmul.bf16.gmra.mxu0 %v1345
  %v2582 = vpop.f32.mrf.mxu0
  %v2583 = vadd.f32 %v2414, %v2582
  %v2584 = vpop.f32.mrf.mxu0
  %v2585 = vadd.f32 %v2416, %v2584
  %2586 = vmatmul.bf16.gmra.mxu0 %v1347
  %v2587 = vpop.f32.mrf.mxu0
  %v2588 = vadd.f32 %v2419, %v2587
  %v2589 = vpop.f32.mrf.mxu0
  %v2590 = vadd.f32 %v2421, %v2589
  %2591 = vmatmul.bf16.gmra.mxu0 %v1349
  %v2592 = vpop.f32.mrf.mxu0
  %v2593 = vadd.f32 %v2424, %v2592
  %v2594 = vpop.f32.mrf.mxu0
  %v2595 = vadd.f32 %v2426, %v2594
  %2596 = vmatmul.bf16.gmra.mxu0 %v1351
  %v2597 = vpop.f32.mrf.mxu0
  %v2598 = vadd.f32 %v2429, %v2597
  %v2599 = vpop.f32.mrf.mxu0
  %v2600 = vadd.f32 %v2431, %v2599
  %2601 = vmatmul.bf16.gmra.mxu0 %v1353
  %v2602 = vpop.f32.mrf.mxu0
  %v2603 = vadd.f32 %v2434, %v2602
  %v2604 = vpop.f32.mrf.mxu0
  %v2605 = vadd.f32 %v2436, %v2604
  %2606 = vmatmul.bf16.gmra.mxu0 %v1355
  %v2607 = vpop.f32.mrf.mxu0
  %v2608 = vadd.f32 %v2439, %v2607
  %v2609 = vpop.f32.mrf.mxu0
  %v2610 = vadd.f32 %v2441, %v2609
  %2611 = vmatmul.bf16.gmra.mxu0 %v1357
  %v2612 = vpop.f32.mrf.mxu0
  %v2613 = vadd.f32 %v2444, %v2612
  %v2614 = vpop.f32.mrf.mxu0
  %v2615 = vadd.f32 %v2446, %v2614
  %2616 = vmatmul.bf16.gmra.mxu0 %v1359
  %v2617 = vpop.f32.mrf.mxu0
  %v2618 = vadd.f32 %v2449, %v2617
  %v2619 = vpop.f32.mrf.mxu0
  %v2620 = vadd.f32 %v2451, %v2619
  %2621 = vmatmul.bf16.gmra.mxu0 %v1361
  %v2622 = vpop.f32.mrf.mxu0
  %v2623 = vadd.f32 %v2454, %v2622
  %v2624 = vpop.f32.mrf.mxu0
  %v2625 = vadd.f32 %v2456, %v2624
  %2626 = vmatmul.bf16.gmra.mxu0 %v1363
  %v2627 = vpop.f32.mrf.mxu0
  %v2628 = vadd.f32 %v2459, %v2627
  %v2629 = vpop.f32.mrf.mxu0
  %v2630 = vadd.f32 %v2461, %v2629
  %2631 = vmatmul.bf16.gmra.mxu0 %v1365
  %v2632 = vpop.f32.mrf.mxu0
  %v2633 = vadd.f32 %v2464, %v2632
  %v2634 = vpop.f32.mrf.mxu0
  %v2635 = vadd.f32 %v2466, %v2634
  %2636 = vmatmul.bf16.gmra.mxu0 %v1367
  %v2637 = vpop.f32.mrf.mxu0
  %v2638 = vadd.f32 %v2469, %v2637
  %v2639 = vpop.f32.mrf.mxu0
  %v2640 = vadd.f32 %v2471, %v2639
  %2641 = vmatmul.bf16.gmra.mxu0 %v1369
  %v2642 = vpop.f32.mrf.mxu0
  %v2643 = vadd.f32 %v2474, %v2642
  %v2644 = vpop.f32.mrf.mxu0
  %v2645 = vadd.f32 %v2476, %v2644
  %2646 = vmatmul.bf16.gmra.mxu0 %v1371
  %v2647 = vpop.f32.mrf.mxu0
  %v2648 = vadd.f32 %v2479, %v2647
  %v2649 = vpop.f32.mrf.mxu0
  %v2650 = vadd.f32 %v2481, %v2649
  %2651 = vmatmul.bf16.gmra.mxu0 %v1373
  %v2652 = vpop.f32.mrf.mxu0
  %v2653 = vadd.f32 %v2484, %v2652
  %v2654 = vpop.f32.mrf.mxu0
  %v2655 = vadd.f32 %v2486, %v2654
  %2656 = vmatmul.bf16.gmra.mxu0 %v1375
  %v2657 = vpop.f32.mrf.mxu0
  %v2658 = vadd.f32 %v2489, %v2657
  %v2659 = vpop.f32.mrf.mxu0
  %v2660 = vadd.f32 %v2491, %v2659
  %2661 = vmatmul.bf16.gmra.mxu0 %v1377
  %v2662 = vpop.f32.mrf.mxu0
  %v2663 = vadd.f32 %v2494, %v2662
  %v2664 = vpop.f32.mrf.mxu0
  %v2665 = vadd.f32 %v2496, %v2664
  %2666 = vmatmul.bf16.gmra.mxu0 %v1379
  %v2667 = vpop.f32.mrf.mxu0
  %v2668 = vadd.f32 %v2499, %v2667
  %v2669 = vpop.f32.mrf.mxu0
  %v2670 = vadd.f32 %v2501, %v2669
  %2671 = vmatmul.bf16.gmra.mxu0 %v1381
  %v2672 = vpop.f32.mrf.mxu0
  %v2673 = vadd.f32 %v2504, %v2672
  %v2674 = vpop.f32.mrf.mxu0
  %v2675 = vadd.f32 %v2506, %v2674
  %2676 = vmatmul.bf16.gmra.mxu0 %v1383
  %v2677 = vpop.f32.mrf.mxu0
  %v2678 = vadd.f32 %v2509, %v2677
  %v2679 = vpop.f32.mrf.mxu0
  %v2680 = vadd.f32 %v2511, %v2679
  %2681 = vmatmul.bf16.gmra.mxu0 %v1385
  %v2682 = vpop.f32.mrf.mxu0
  %v2683 = vadd.f32 %v2514, %v2682
  %v2684 = vpop.f32.mrf.mxu0
  %v2685 = vadd.f32 %v2516, %v2684
  %2686 = vmatmul.bf16.gmra.mxu0 %v1387
  %v2687 = vpop.f32.mrf.mxu0
  %v2688 = vadd.f32 %v2519, %v2687
  %v2689 = vpop.f32.mrf.mxu0
  %v2690 = vadd.f32 %v2521, %v2689
  %2691 = vmatmul.bf16.gmra.mxu0 %v1389
  %v2692 = vpop.f32.mrf.mxu0
  %v2693 = vadd.f32 %v2524, %v2692
  %v2694 = vpop.f32.mrf.mxu0
  %v2695 = vadd.f32 %v2526, %v2694
  %2696 = vmatmul.bf16.gmra.mxu0 %v1391
  %v2697 = vpop.f32.mrf.mxu0
  %v2698 = vadd.f32 %v2529, %v2697
  %v2699 = vpop.f32.mrf.mxu0
  %v2700 = vadd.f32 %v2531, %v2699
  %2701 = vmatmul.bf16.gmra.mxu0 %v1393
  %v2702 = vpop.f32.mrf.mxu0
  %v2703 = vadd.f32 %v2534, %v2702
  %v2704 = vpop.f32.mrf.mxu0
  %v2705 = vadd.f32 %v2536, %v2704
  %2706 = vmatmul.bf16.gmra.mxu0 %v1395
  %v2707 = vpop.f32.mrf.mxu0
  %v2708 = vadd.f32 %v2539, %v2707
  %v2709 = vpop.f32.mrf.mxu0
  %v2710 = vadd.f32 %v2541, %v2709
  %2711 = vmatmul.bf16.gmra.mxu0 %v1397
  %v2712 = vpop.f32.mrf.mxu0
  %v2713 = vadd.f32 %v2544, %v2712
  %v2714 = vpop.f32.mrf.mxu0
  %v2715 = vadd.f32 %v2546, %v2714
  %2716 = vmatmul.bf16.gmra.mxu0 %v1399
  %v2717 = vpop.f32.mrf.mxu0
  %v2718 = vadd.f32 %v2549, %v2717
  %v2719 = vpop.f32.mrf.mxu0
  %v2720 = vadd.f32 %v2551, %v2719
  %2721 = vmatmul.bf16.gmra.mxu0 %v1401
  %v2722 = vpop.f32.mrf.mxu0
  %v2723 = vadd.f32 %v2554, %v2722
  %v2724 = vpop.f32.mrf.mxu0
  %v2725 = vadd.f32 %v2556, %v2724
  %2726 = vmatmul.bf16.gmra.mxu0 %v1403
  %v2727 = vpop.f32.mrf.mxu0
  %v2728 = vadd.f32 %v2559, %v2727
  %v2729 = vpop.f32.mrf.mxu0
  %v2730 = vadd.f32 %v2561, %v2729
  %2731 = vmatmul.bf16.gmra.mxu0 %v1405
  %v2732 = vpop.f32.mrf.mxu0
  %v2733 = vadd.f32 %v2564, %v2732
  %v2734 = vpop.f32.mrf.mxu0
  %v2735 = vadd.f32 %v2566, %v2734
  %2736 = vmatmul.bf16.gmra.mxu0 %v1407
  %v2737 = vpop.f32.mrf.mxu0
  %v2738 = vadd.f32 %v2569, %v2737
  %v2739 = vpop.f32.mrf.mxu0
  %v2740 = vadd.f32 %v2571, %v2739
  %2741 = vdwg.mxu0
  %vm2806 = vcmask 1046528
  %v2807 = vrot.slane %v2245, 1
  %v2808 = vrot.slane %v2247, 1
  %v2809 = vsel %vm2806, %v2807, %v2808
  %v2810 = vrot.slane %v2250, 1
  %v2811 = vrot.slane %v2252, 1
  %v2812 = vsel %vm2806, %v2810, %v2811
  %v2813 = vrot.slane %v2255, 1
  %v2814 = vrot.slane %v2257, 1
  %v2815 = vsel %vm2806, %v2813, %v2814
  %v2816 = vrot.slane %v2260, 1
  %v2817 = vrot.slane %v2262, 1
  %v2818 = vsel %vm2806, %v2816, %v2817
  %v2819 = vrot.slane %v2265, 1
  %v2820 = vrot.slane %v2267, 1
  %v2821 = vsel %vm2806, %v2819, %v2820
  %v2822 = vrot.slane %v2270, 1
  %v2823 = vrot.slane %v2272, 1
  %v2824 = vsel %vm2806, %v2822, %v2823
  %v2825 = vrot.slane %v2275, 1
  %v2826 = vrot.slane %v2277, 1
  %v2827 = vsel %vm2806, %v2825, %v2826
  %v2828 = vrot.slane %v2280, 1
  %v2829 = vrot.slane %v2282, 1
  %v2830 = vsel %vm2806, %v2828, %v2829
  %v2831 = vrot.slane %v2285, 1
  %v2832 = vrot.slane %v2287, 1
  %v2833 = vsel %vm2806, %v2831, %v2832
  %v2834 = vrot.slane %v2290, 1
  %v2835 = vrot.slane %v2292, 1
  %v2836 = vsel %vm2806, %v2834, %v2835
  %v2837 = vrot.slane %v2295, 1
  %v2838 = vrot.slane %v2297, 1
  %v2839 = vsel %vm2806, %v2837, %v2838
  %v2840 = vrot.slane %v2300, 1
  %v2841 = vrot.slane %v2302, 1
  %v2842 = vsel %vm2806, %v2840, %v2841
  %v2843 = vrot.slane %v2305, 1
  %v2844 = vrot.slane %v2307, 1
  %v2845 = vsel %vm2806, %v2843, %v2844
  %v2846 = vrot.slane %v2310, 1
  %v2847 = vrot.slane %v2312, 1
  %v2848 = vsel %vm2806, %v2846, %v2847
  %v2849 = vrot.slane %v2315, 1
  %v2850 = vrot.slane %v2317, 1
  %v2851 = vsel %vm2806, %v2849, %v2850
  %v2852 = vrot.slane %v2320, 1
  %v2853 = vrot.slane %v2322, 1
  %v2854 = vsel %vm2806, %v2852, %v2853
  %v2855 = vrot.slane %v2325, 1
  %v2856 = vrot.slane %v2327, 1
  %v2857 = vsel %vm2806, %v2855, %v2856
  %v2858 = vrot.slane %v2330, 1
  %v2859 = vrot.slane %v2332, 1
  %v2860 = vsel %vm2806, %v2858, %v2859
  %v2861 = vrot.slane %v2335, 1
  %v2862 = vrot.slane %v2337, 1
  %v2863 = vsel %vm2806, %v2861, %v2862
  %v2864 = vrot.slane %v2340, 1
  %v2865 = vrot.slane %v2342, 1
  %v2866 = vsel %vm2806, %v2864, %v2865
  %v2867 = vrot.slane %v2345, 1
  %v2868 = vrot.slane %v2347, 1
  %v2869 = vsel %vm2806, %v2867, %v2868
  %v2870 = vrot.slane %v2350, 1
  %v2871 = vrot.slane %v2352, 1
  %v2872 = vsel %vm2806, %v2870, %v2871
  %v2873 = vrot.slane %v2355, 1
  %v2874 = vrot.slane %v2357, 1
  %v2875 = vsel %vm2806, %v2873, %v2874
  %v2876 = vrot.slane %v2360, 1
  %v2877 = vrot.slane %v2362, 1
  %v2878 = vsel %vm2806, %v2876, %v2877
  %v2879 = vrot.slane %v2365, 1
  %v2880 = vrot.slane %v2367, 1
  %v2881 = vsel %vm2806, %v2879, %v2880
  %v2882 = vrot.slane %v2370, 1
  %v2883 = vrot.slane %v2372, 1
  %v2884 = vsel %vm2806, %v2882, %v2883
  %v2885 = vrot.slane %v2375, 1
  %v2886 = vrot.slane %v2377, 1
  %v2887 = vsel %vm2806, %v2885, %v2886
  %v2888 = vrot.slane %v2380, 1
  %v2889 = vrot.slane %v2382, 1
  %v2890 = vsel %vm2806, %v2888, %v2889
  %v2891 = vrot.slane %v2385, 1
  %v2892 = vrot.slane %v2387, 1
  %v2893 = vsel %vm2806, %v2891, %v2892
  %v2894 = vrot.slane %v2390, 1
  %v2895 = vrot.slane %v2392, 1
  %v2896 = vsel %vm2806, %v2894, %v2895
  %v2897 = vrot.slane %v2395, 1
  %v2898 = vrot.slane %v2397, 1
  %v2899 = vsel %vm2806, %v2897, %v2898
  %v2900 = vrot.slane %v2400, 1
  %v2901 = vrot.slane %v2402, 1
  %v2902 = vsel %vm2806, %v2900, %v2901
  %v2967 = vadd.f32 %v1907, %v2809
  %v2968 = vadd.f32 %v1909, %v2808
  %v2969 = vadd.f32 %v1912, %v2812
  %v2970 = vadd.f32 %v1914, %v2811
  %v2971 = vadd.f32 %v1917, %v2815
  %v2972 = vadd.f32 %v1919, %v2814
  %v2973 = vadd.f32 %v1922, %v2818
  %v2974 = vadd.f32 %v1924, %v2817
  %v2975 = vadd.f32 %v1927, %v2821
  %v2976 = vadd.f32 %v1929, %v2820
  %v2977 = vadd.f32 %v1932, %v2824
  %v2978 = vadd.f32 %v1934, %v2823
  %v2979 = vadd.f32 %v1937, %v2827
  %v2980 = vadd.f32 %v1939, %v2826
  %v2981 = vadd.f32 %v1942, %v2830
  %v2982 = vadd.f32 %v1944, %v2829
  %v2983 = vadd.f32 %v1947, %v2833
  %v2984 = vadd.f32 %v1949, %v2832
  %v2985 = vadd.f32 %v1952, %v2836
  %v2986 = vadd.f32 %v1954, %v2835
  %v2987 = vadd.f32 %v1957, %v2839
  %v2988 = vadd.f32 %v1959, %v2838
  %v2989 = vadd.f32 %v1962, %v2842
  %v2990 = vadd.f32 %v1964, %v2841
  %v2991 = vadd.f32 %v1967, %v2845
  %v2992 = vadd.f32 %v1969, %v2844
  %v2993 = vadd.f32 %v1972, %v2848
  %v2994 = vadd.f32 %v1974, %v2847
  %v2995 = vadd.f32 %v1977, %v2851
  %v2996 = vadd.f32 %v1979, %v2850
  %v2997 = vadd.f32 %v1982, %v2854
  %v2998 = vadd.f32 %v1984, %v2853
  %v2999 = vadd.f32 %v1987, %v2857
  %v3000 = vadd.f32 %v1989, %v2856
  %v3001 = vadd.f32 %v1992, %v2860
  %v3002 = vadd.f32 %v1994, %v2859
  %v3003 = vadd.f32 %v1997, %v2863
  %v3004 = vadd.f32 %v1999, %v2862
  %v3005 = vadd.f32 %v2002, %v2866
  %v3006 = vadd.f32 %v2004, %v2865
  %v3007 = vadd.f32 %v2007, %v2869
  %v3008 = vadd.f32 %v2009, %v2868
  %v3009 = vadd.f32 %v2012, %v2872
  %v3010 = vadd.f32 %v2014, %v2871
  %v3011 = vadd.f32 %v2017, %v2875
  %v3012 = vadd.f32 %v2019, %v2874
  %v3013 = vadd.f32 %v2022, %v2878
  %v3014 = vadd.f32 %v2024, %v2877
  %v3015 = vadd.f32 %v2027, %v2881
  %v3016 = vadd.f32 %v2029, %v2880
  %v3017 = vadd.f32 %v2032, %v2884
  %v3018 = vadd.f32 %v2034, %v2883
  %v3019 = vadd.f32 %v2037, %v2887
  %v3020 = vadd.f32 %v2039, %v2886
  %v3021 = vadd.f32 %v2042, %v2890
  %v3022 = vadd.f32 %v2044, %v2889
  %v3023 = vadd.f32 %v2047, %v2893
  %v3024 = vadd.f32 %v2049, %v2892
  %v3025 = vadd.f32 %v2052, %v2896
  %v3026 = vadd.f32 %v2054, %v2895
  %v3027 = vadd.f32 %v2057, %v2899
  %v3028 = vadd.f32 %v2059, %v2898
  %v3029 = vadd.f32 %v2062, %v2902
  %v3030 = vadd.f32 %v2064, %v2901
  %vm3095 = vcmask 1045504
  %v3096 = vrot.slane %v2583, 2
  %v3097 = vrot.slane %v2585, 2
  %v3098 = vsel %vm3095, %v3096, %v3097
  %v3099 = vrot.slane %v2588, 2
  %v3100 = vrot.slane %v2590, 2
  %v3101 = vsel %vm3095, %v3099, %v3100
  %v3102 = vrot.slane %v2593, 2
  %v3103 = vrot.slane %v2595, 2
  %v3104 = vsel %vm3095, %v3102, %v3103
  %v3105 = vrot.slane %v2598, 2
  %v3106 = vrot.slane %v2600, 2
  %v3107 = vsel %vm3095, %v3105, %v3106
  %v3108 = vrot.slane %v2603, 2
  %v3109 = vrot.slane %v2605, 2
  %v3110 = vsel %vm3095, %v3108, %v3109
  %v3111 = vrot.slane %v2608, 2
  %v3112 = vrot.slane %v2610, 2
  %v3113 = vsel %vm3095, %v3111, %v3112
  %v3114 = vrot.slane %v2613, 2
  %v3115 = vrot.slane %v2615, 2
  %v3116 = vsel %vm3095, %v3114, %v3115
  %v3117 = vrot.slane %v2618, 2
  %v3118 = vrot.slane %v2620, 2
  %v3119 = vsel %vm3095, %v3117, %v3118
  %v3120 = vrot.slane %v2623, 2
  %v3121 = vrot.slane %v2625, 2
  %v3122 = vsel %vm3095, %v3120, %v3121
  %v3123 = vrot.slane %v2628, 2
  %v3124 = vrot.slane %v2630, 2
  %v3125 = vsel %vm3095, %v3123, %v3124
  %v3126 = vrot.slane %v2633, 2
  %v3127 = vrot.slane %v2635, 2
  %v3128 = vsel %vm3095, %v3126, %v3127
  %v3129 = vrot.slane %v2638, 2
  %v3130 = vrot.slane %v2640, 2
  %v3131 = vsel %vm3095, %v3129, %v3130
  %v3132 = vrot.slane %v2643, 2
  %v3133 = vrot.slane %v2645, 2
  %v3134 = vsel %vm3095, %v3132, %v3133
  %v3135 = vrot.slane %v2648, 2
  %v3136 = vrot.slane %v2650, 2
  %v3137 = vsel %vm3095, %v3135, %v3136
  %v3138 = vrot.slane %v2653, 2
  %v3139 = vrot.slane %v2655, 2
  %v3140 = vsel %vm3095, %v3138, %v3139
  %v3141 = vrot.slane %v2658, 2
  %v3142 = vrot.slane %v2660, 2
  %v3143 = vsel %vm3095, %v3141, %v3142
  %v3144 = vrot.slane %v2663, 2
  %v3145 = vrot.slane %v2665, 2
  %v3146 = vsel %vm3095, %v3144, %v3145
  %v3147 = vrot.slane %v2668, 2
  %v3148 = vrot.slane %v2670, 2
  %v3149 = vsel %vm3095, %v3147, %v3148
  %v3150 = vrot.slane %v2673, 2
  %v3151 = vrot.slane %v2675, 2
  %v3152 = vsel %vm3095, %v3150, %v3151
  %v3153 = vrot.slane %v2678, 2
  %v3154 = vrot.slane %v2680, 2
  %v3155 = vsel %vm3095, %v3153, %v3154
  %v3156 = vrot.slane %v2683, 2
  %v3157 = vrot.slane %v2685, 2
  %v3158 = vsel %vm3095, %v3156, %v3157
  %v3159 = vrot.slane %v2688, 2
  %v3160 = vrot.slane %v2690, 2
  %v3161 = vsel %vm3095, %v3159, %v3160
  %v3162 = vrot.slane %v2693, 2
  %v3163 = vrot.slane %v2695, 2
  %v3164 = vsel %vm3095, %v3162, %v3163
  %v3165 = vrot.slane %v2698, 2
  %v3166 = vrot.slane %v2700, 2
  %v3167 = vsel %vm3095, %v3165, %v3166
  %v3168 = vrot.slane %v2703, 2
  %v3169 = vrot.slane %v2705, 2
  %v3170 = vsel %vm3095, %v3168, %v3169
  %v3171 = vrot.slane %v2708, 2
  %v3172 = vrot.slane %v2710, 2
  %v3173 = vsel %vm3095, %v3171, %v3172
  %v3174 = vrot.slane %v2713, 2
  %v3175 = vrot.slane %v2715, 2
  %v3176 = vsel %vm3095, %v3174, %v3175
  %v3177 = vrot.slane %v2718, 2
  %v3178 = vrot.slane %v2720, 2
  %v3179 = vsel %vm3095, %v3177, %v3178
  %v3180 = vrot.slane %v2723, 2
  %v3181 = vrot.slane %v2725, 2
  %v3182 = vsel %vm3095, %v3180, %v3181
  %v3183 = vrot.slane %v2728, 2
  %v3184 = vrot.slane %v2730, 2
  %v3185 = vsel %vm3095, %v3183, %v3184
  %v3186 = vrot.slane %v2733, 2
  %v3187 = vrot.slane %v2735, 2
  %v3188 = vsel %vm3095, %v3186, %v3187
  %v3189 = vrot.slane %v2738, 2
  %v3190 = vrot.slane %v2740, 2
  %v3191 = vsel %vm3095, %v3189, %v3190
  %v3256 = vadd.f32 %v2967, %v3098
  %v3257 = vadd.f32 %v2968, %v3097
  %v3258 = vadd.f32 %v2969, %v3101
  %v3259 = vadd.f32 %v2970, %v3100
  %v3260 = vadd.f32 %v2971, %v3104
  %v3261 = vadd.f32 %v2972, %v3103
  %v3262 = vadd.f32 %v2973, %v3107
  %v3263 = vadd.f32 %v2974, %v3106
  %v3264 = vadd.f32 %v2975, %v3110
  %v3265 = vadd.f32 %v2976, %v3109
  %v3266 = vadd.f32 %v2977, %v3113
  %v3267 = vadd.f32 %v2978, %v3112
  %v3268 = vadd.f32 %v2979, %v3116
  %v3269 = vadd.f32 %v2980, %v3115
  %v3270 = vadd.f32 %v2981, %v3119
  %v3271 = vadd.f32 %v2982, %v3118
  %v3272 = vadd.f32 %v2983, %v3122
  %v3273 = vadd.f32 %v2984, %v3121
  %v3274 = vadd.f32 %v2985, %v3125
  %v3275 = vadd.f32 %v2986, %v3124
  %v3276 = vadd.f32 %v2987, %v3128
  %v3277 = vadd.f32 %v2988, %v3127
  %v3278 = vadd.f32 %v2989, %v3131
  %v3279 = vadd.f32 %v2990, %v3130
  %v3280 = vadd.f32 %v2991, %v3134
  %v3281 = vadd.f32 %v2992, %v3133
  %v3282 = vadd.f32 %v2993, %v3137
  %v3283 = vadd.f32 %v2994, %v3136
  %v3284 = vadd.f32 %v2995, %v3140
  %v3285 = vadd.f32 %v2996, %v3139
  %v3286 = vadd.f32 %v2997, %v3143
  %v3287 = vadd.f32 %v2998, %v3142
  %v3288 = vadd.f32 %v2999, %v3146
  %v3289 = vadd.f32 %v3000, %v3145
  %v3290 = vadd.f32 %v3001, %v3149
  %v3291 = vadd.f32 %v3002, %v3148
  %v3292 = vadd.f32 %v3003, %v3152
  %v3293 = vadd.f32 %v3004, %v3151
  %v3294 = vadd.f32 %v3005, %v3155
  %v3295 = vadd.f32 %v3006, %v3154
  %v3296 = vadd.f32 %v3007, %v3158
  %v3297 = vadd.f32 %v3008, %v3157
  %v3298 = vadd.f32 %v3009, %v3161
  %v3299 = vadd.f32 %v3010, %v3160
  %v3300 = vadd.f32 %v3011, %v3164
  %v3301 = vadd.f32 %v3012, %v3163
  %v3302 = vadd.f32 %v3013, %v3167
  %v3303 = vadd.f32 %v3014, %v3166
  %v3304 = vadd.f32 %v3015, %v3170
  %v3305 = vadd.f32 %v3016, %v3169
  %v3306 = vadd.f32 %v3017, %v3173
  %v3307 = vadd.f32 %v3018, %v3172
  %v3308 = vadd.f32 %v3019, %v3176
  %v3309 = vadd.f32 %v3020, %v3175
  %v3310 = vadd.f32 %v3021, %v3179
  %v3311 = vadd.f32 %v3022, %v3178
  %v3312 = vadd.f32 %v3023, %v3182
  %v3313 = vadd.f32 %v3024, %v3181
  %v3314 = vadd.f32 %v3025, %v3185
  %v3315 = vadd.f32 %v3026, %v3184
  %v3316 = vadd.f32 %v3027, %v3188
  %v3317 = vadd.f32 %v3028, %v3187
  %v3318 = vadd.f32 %v3029, %v3191
  %v3319 = vadd.f32 %v3030, %v3190
  %v3320 = vsel %vm3095, %v3257, -inf
  %v3321 = vmax.f32 %v3256, %v3320
  %v3322 = vrot.slane %v3321, 4
  %v3323 = vmax.f32 %v3321, %v3322
  %v3324 = vrot.slane %v3323, 2
  %v3325 = vmax.f32 %v3323, %v3324
  %v3326 = vrot.slane %v3325, 1
  %v3327 = vmax.f32 %v3325, %v3326
  %v3328 = vsel %vm3095, %v3259, -inf
  %v3329 = vmax.f32 %v3258, %v3328
  %v3330 = vrot.slane %v3329, 4
  %v3331 = vmax.f32 %v3329, %v3330
  %v3332 = vrot.slane %v3331, 2
  %v3333 = vmax.f32 %v3331, %v3332
  %v3334 = vrot.slane %v3333, 1
  %v3335 = vmax.f32 %v3333, %v3334
  %v3336 = vsel %vm3095, %v3261, -inf
  %v3337 = vmax.f32 %v3260, %v3336
  %v3338 = vrot.slane %v3337, 4
  %v3339 = vmax.f32 %v3337, %v3338
  %v3340 = vrot.slane %v3339, 2
  %v3341 = vmax.f32 %v3339, %v3340
  %v3342 = vrot.slane %v3341, 1
  %v3343 = vmax.f32 %v3341, %v3342
  %v3344 = vsel %vm3095, %v3263, -inf
  %v3345 = vmax.f32 %v3262, %v3344
  %v3346 = vrot.slane %v3345, 4
  %v3347 = vmax.f32 %v3345, %v3346
  %v3348 = vrot.slane %v3347, 2
  %v3349 = vmax.f32 %v3347, %v3348
  %v3350 = vrot.slane %v3349, 1
  %v3351 = vmax.f32 %v3349, %v3350
  %v3352 = vsel %vm3095, %v3265, -inf
  %v3353 = vmax.f32 %v3264, %v3352
  %v3354 = vrot.slane %v3353, 4
  %v3355 = vmax.f32 %v3353, %v3354
  %v3356 = vrot.slane %v3355, 2
  %v3357 = vmax.f32 %v3355, %v3356
  %v3358 = vrot.slane %v3357, 1
  %v3359 = vmax.f32 %v3357, %v3358
  %v3360 = vsel %vm3095, %v3267, -inf
  %v3361 = vmax.f32 %v3266, %v3360
  %v3362 = vrot.slane %v3361, 4
  %v3363 = vmax.f32 %v3361, %v3362
  %v3364 = vrot.slane %v3363, 2
  %v3365 = vmax.f32 %v3363, %v3364
  %v3366 = vrot.slane %v3365, 1
  %v3367 = vmax.f32 %v3365, %v3366
  %v3368 = vsel %vm3095, %v3269, -inf
  %v3369 = vmax.f32 %v3268, %v3368
  %v3370 = vrot.slane %v3369, 4
  %v3371 = vmax.f32 %v3369, %v3370
  %v3372 = vrot.slane %v3371, 2
  %v3373 = vmax.f32 %v3371, %v3372
  %v3374 = vrot.slane %v3373, 1
  %v3375 = vmax.f32 %v3373, %v3374
  %v3376 = vsel %vm3095, %v3271, -inf
  %v3377 = vmax.f32 %v3270, %v3376
  %v3378 = vrot.slane %v3377, 4
  %v3379 = vmax.f32 %v3377, %v3378
  %v3380 = vrot.slane %v3379, 2
  %v3381 = vmax.f32 %v3379, %v3380
  %v3382 = vrot.slane %v3381, 1
  %v3383 = vmax.f32 %v3381, %v3382
  %v3384 = vsel %vm3095, %v3273, -inf
  %v3385 = vmax.f32 %v3272, %v3384
  %v3386 = vrot.slane %v3385, 4
  %v3387 = vmax.f32 %v3385, %v3386
  %v3388 = vrot.slane %v3387, 2
  %v3389 = vmax.f32 %v3387, %v3388
  %v3390 = vrot.slane %v3389, 1
  %v3391 = vmax.f32 %v3389, %v3390
  %v3392 = vsel %vm3095, %v3275, -inf
  %v3393 = vmax.f32 %v3274, %v3392
  %v3394 = vrot.slane %v3393, 4
  %v3395 = vmax.f32 %v3393, %v3394
  %v3396 = vrot.slane %v3395, 2
  %v3397 = vmax.f32 %v3395, %v3396
  %v3398 = vrot.slane %v3397, 1
  %v3399 = vmax.f32 %v3397, %v3398
  %v3400 = vsel %vm3095, %v3277, -inf
  %v3401 = vmax.f32 %v3276, %v3400
  %v3402 = vrot.slane %v3401, 4
  %v3403 = vmax.f32 %v3401, %v3402
  %v3404 = vrot.slane %v3403, 2
  %v3405 = vmax.f32 %v3403, %v3404
  %v3406 = vrot.slane %v3405, 1
  %v3407 = vmax.f32 %v3405, %v3406
  %v3408 = vsel %vm3095, %v3279, -inf
  %v3409 = vmax.f32 %v3278, %v3408
  %v3410 = vrot.slane %v3409, 4
  %v3411 = vmax.f32 %v3409, %v3410
  %v3412 = vrot.slane %v3411, 2
  %v3413 = vmax.f32 %v3411, %v3412
  %v3414 = vrot.slane %v3413, 1
  %v3415 = vmax.f32 %v3413, %v3414
  %v3416 = vsel %vm3095, %v3281, -inf
  %v3417 = vmax.f32 %v3280, %v3416
  %v3418 = vrot.slane %v3417, 4
  %v3419 = vmax.f32 %v3417, %v3418
  %v3420 = vrot.slane %v3419, 2
  %v3421 = vmax.f32 %v3419, %v3420
  %v3422 = vrot.slane %v3421, 1
  %v3423 = vmax.f32 %v3421, %v3422
  %v3424 = vsel %vm3095, %v3283, -inf
  %v3425 = vmax.f32 %v3282, %v3424
  %v3426 = vrot.slane %v3425, 4
  %v3427 = vmax.f32 %v3425, %v3426
  %v3428 = vrot.slane %v3427, 2
  %v3429 = vmax.f32 %v3427, %v3428
  %v3430 = vrot.slane %v3429, 1
  %v3431 = vmax.f32 %v3429, %v3430
  %v3432 = vsel %vm3095, %v3285, -inf
  %v3433 = vmax.f32 %v3284, %v3432
  %v3434 = vrot.slane %v3433, 4
  %v3435 = vmax.f32 %v3433, %v3434
  %v3436 = vrot.slane %v3435, 2
  %v3437 = vmax.f32 %v3435, %v3436
  %v3438 = vrot.slane %v3437, 1
  %v3439 = vmax.f32 %v3437, %v3438
  %v3440 = vsel %vm3095, %v3287, -inf
  %v3441 = vmax.f32 %v3286, %v3440
  %v3442 = vrot.slane %v3441, 4
  %v3443 = vmax.f32 %v3441, %v3442
  %v3444 = vrot.slane %v3443, 2
  %v3445 = vmax.f32 %v3443, %v3444
  %v3446 = vrot.slane %v3445, 1
  %v3447 = vmax.f32 %v3445, %v3446
  %v3448 = vsel %vm3095, %v3289, -inf
  %v3449 = vmax.f32 %v3288, %v3448
  %v3450 = vrot.slane %v3449, 4
  %v3451 = vmax.f32 %v3449, %v3450
  %v3452 = vrot.slane %v3451, 2
  %v3453 = vmax.f32 %v3451, %v3452
  %v3454 = vrot.slane %v3453, 1
  %v3455 = vmax.f32 %v3453, %v3454
  %v3456 = vsel %vm3095, %v3291, -inf
  %v3457 = vmax.f32 %v3290, %v3456
  %v3458 = vrot.slane %v3457, 4
  %v3459 = vmax.f32 %v3457, %v3458
  %v3460 = vrot.slane %v3459, 2
  %v3461 = vmax.f32 %v3459, %v3460
  %v3462 = vrot.slane %v3461, 1
  %v3463 = vmax.f32 %v3461, %v3462
  %v3464 = vsel %vm3095, %v3293, -inf
  %v3465 = vmax.f32 %v3292, %v3464
  %v3466 = vrot.slane %v3465, 4
  %v3467 = vmax.f32 %v3465, %v3466
  %v3468 = vrot.slane %v3467, 2
  %v3469 = vmax.f32 %v3467, %v3468
  %v3470 = vrot.slane %v3469, 1
  %v3471 = vmax.f32 %v3469, %v3470
  %v3472 = vsel %vm3095, %v3295, -inf
  %v3473 = vmax.f32 %v3294, %v3472
  %v3474 = vrot.slane %v3473, 4
  %v3475 = vmax.f32 %v3473, %v3474
  %v3476 = vrot.slane %v3475, 2
  %v3477 = vmax.f32 %v3475, %v3476
  %v3478 = vrot.slane %v3477, 1
  %v3479 = vmax.f32 %v3477, %v3478
  %v3480 = vsel %vm3095, %v3297, -inf
  %v3481 = vmax.f32 %v3296, %v3480
  %v3482 = vrot.slane %v3481, 4
  %v3483 = vmax.f32 %v3481, %v3482
  %v3484 = vrot.slane %v3483, 2
  %v3485 = vmax.f32 %v3483, %v3484
  %v3486 = vrot.slane %v3485, 1
  %v3487 = vmax.f32 %v3485, %v3486
  %v3488 = vsel %vm3095, %v3299, -inf
  %v3489 = vmax.f32 %v3298, %v3488
  %v3490 = vrot.slane %v3489, 4
  %v3491 = vmax.f32 %v3489, %v3490
  %v3492 = vrot.slane %v3491, 2
  %v3493 = vmax.f32 %v3491, %v3492
  %v3494 = vrot.slane %v3493, 1
  %v3495 = vmax.f32 %v3493, %v3494
  %v3496 = vsel %vm3095, %v3301, -inf
  %v3497 = vmax.f32 %v3300, %v3496
  %v3498 = vrot.slane %v3497, 4
  %v3499 = vmax.f32 %v3497, %v3498
  %v3500 = vrot.slane %v3499, 2
  %v3501 = vmax.f32 %v3499, %v3500
  %v3502 = vrot.slane %v3501, 1
  %v3503 = vmax.f32 %v3501, %v3502
  %v3504 = vsel %vm3095, %v3303, -inf
  %v3505 = vmax.f32 %v3302, %v3504
  %v3506 = vrot.slane %v3505, 4
  %v3507 = vmax.f32 %v3505, %v3506
  %v3508 = vrot.slane %v3507, 2
  %v3509 = vmax.f32 %v3507, %v3508
  %v3510 = vrot.slane %v3509, 1
  %v3511 = vmax.f32 %v3509, %v3510
  %v3512 = vsel %vm3095, %v3305, -inf
  %v3513 = vmax.f32 %v3304, %v3512
  %v3514 = vrot.slane %v3513, 4
  %v3515 = vmax.f32 %v3513, %v3514
  %v3516 = vrot.slane %v3515, 2
  %v3517 = vmax.f32 %v3515, %v3516
  %v3518 = vrot.slane %v3517, 1
  %v3519 = vmax.f32 %v3517, %v3518
  %v3520 = vsel %vm3095, %v3307, -inf
  %v3521 = vmax.f32 %v3306, %v3520
  %v3522 = vrot.slane %v3521, 4
  %v3523 = vmax.f32 %v3521, %v3522
  %v3524 = vrot.slane %v3523, 2
  %v3525 = vmax.f32 %v3523, %v3524
  %v3526 = vrot.slane %v3525, 1
  %v3527 = vmax.f32 %v3525, %v3526
  %v3528 = vsel %vm3095, %v3309, -inf
  %v3529 = vmax.f32 %v3308, %v3528
  %v3530 = vrot.slane %v3529, 4
  %v3531 = vmax.f32 %v3529, %v3530
  %v3532 = vrot.slane %v3531, 2
  %v3533 = vmax.f32 %v3531, %v3532
  %v3534 = vrot.slane %v3533, 1
  %v3535 = vmax.f32 %v3533, %v3534
  %v3536 = vsel %vm3095, %v3311, -inf
  %v3537 = vmax.f32 %v3310, %v3536
  %v3538 = vrot.slane %v3537, 4
  %v3539 = vmax.f32 %v3537, %v3538
  %v3540 = vrot.slane %v3539, 2
  %v3541 = vmax.f32 %v3539, %v3540
  %v3542 = vrot.slane %v3541, 1
  %v3543 = vmax.f32 %v3541, %v3542
  %v3544 = vsel %vm3095, %v3313, -inf
  %v3545 = vmax.f32 %v3312, %v3544
  %v3546 = vrot.slane %v3545, 4
  %v3547 = vmax.f32 %v3545, %v3546
  %v3548 = vrot.slane %v3547, 2
  %v3549 = vmax.f32 %v3547, %v3548
  %v3550 = vrot.slane %v3549, 1
  %v3551 = vmax.f32 %v3549, %v3550
  %v3552 = vsel %vm3095, %v3315, -inf
  %v3553 = vmax.f32 %v3314, %v3552
  %v3554 = vrot.slane %v3553, 4
  %v3555 = vmax.f32 %v3553, %v3554
  %v3556 = vrot.slane %v3555, 2
  %v3557 = vmax.f32 %v3555, %v3556
  %v3558 = vrot.slane %v3557, 1
  %v3559 = vmax.f32 %v3557, %v3558
  %v3560 = vsel %vm3095, %v3317, -inf
  %v3561 = vmax.f32 %v3316, %v3560
  %v3562 = vrot.slane %v3561, 4
  %v3563 = vmax.f32 %v3561, %v3562
  %v3564 = vrot.slane %v3563, 2
  %v3565 = vmax.f32 %v3563, %v3564
  %v3566 = vrot.slane %v3565, 1
  %v3567 = vmax.f32 %v3565, %v3566
  %v3568 = vsel %vm3095, %v3319, -inf
  %v3569 = vmax.f32 %v3318, %v3568
  %v3570 = vrot.slane %v3569, 4
  %v3571 = vmax.f32 %v3569, %v3570
  %v3572 = vrot.slane %v3571, 2
  %v3573 = vmax.f32 %v3571, %v3572
  %v3574 = vrot.slane %v3573, 1
  %v3575 = vmax.f32 %v3573, %v3574
  %v3576 = vld [vmem:[%s4] sm:$0x1]
  %v3578 = vperm.slane %v3576, 0
  %v3580 = vadd.f32 %v3327, %v3578
  %v3581 = vadd.f32 %v3335, %v3578
  %v3582 = vadd.f32 %v3343, %v3578
  %v3583 = vadd.f32 %v3351, %v3578
  %v3584 = vadd.f32 %v3359, %v3578
  %v3585 = vadd.f32 %v3367, %v3578
  %v3586 = vadd.f32 %v3375, %v3578
  %v3587 = vadd.f32 %v3383, %v3578
  %v3588 = vadd.f32 %v3391, %v3578
  %v3589 = vadd.f32 %v3399, %v3578
  %v3590 = vadd.f32 %v3407, %v3578
  %v3591 = vadd.f32 %v3415, %v3578
  %v3592 = vadd.f32 %v3423, %v3578
  %v3593 = vadd.f32 %v3431, %v3578
  %v3594 = vadd.f32 %v3439, %v3578
  %v3595 = vadd.f32 %v3447, %v3578
  %v3596 = vadd.f32 %v3455, %v3578
  %v3597 = vadd.f32 %v3463, %v3578
  %v3598 = vadd.f32 %v3471, %v3578
  %v3599 = vadd.f32 %v3479, %v3578
  %v3600 = vadd.f32 %v3487, %v3578
  %v3601 = vadd.f32 %v3495, %v3578
  %v3602 = vadd.f32 %v3503, %v3578
  %v3603 = vadd.f32 %v3511, %v3578
  %v3604 = vadd.f32 %v3519, %v3578
  %v3605 = vadd.f32 %v3527, %v3578
  %v3606 = vadd.f32 %v3535, %v3578
  %v3607 = vadd.f32 %v3543, %v3578
  %v3608 = vadd.f32 %v3551, %v3578
  %v3609 = vadd.f32 %v3559, %v3578
  %v3610 = vadd.f32 %v3567, %v3578
  %v3611 = vadd.f32 %v3575, %v3578
  %v3612 = vmax.f32 %v3580, 0.0
  %v3613 = vmax.f32 %v3581, 0.0
  %v3614 = vmax.f32 %v3582, 0.0
  %v3615 = vmax.f32 %v3583, 0.0
  %v3616 = vmax.f32 %v3584, 0.0
  %v3617 = vmax.f32 %v3585, 0.0
  %v3618 = vmax.f32 %v3586, 0.0
  %v3619 = vmax.f32 %v3587, 0.0
  %v3620 = vmax.f32 %v3588, 0.0
  %v3621 = vmax.f32 %v3589, 0.0
  %v3622 = vmax.f32 %v3590, 0.0
  %v3623 = vmax.f32 %v3591, 0.0
  %v3624 = vmax.f32 %v3592, 0.0
  %v3625 = vmax.f32 %v3593, 0.0
  %v3626 = vmax.f32 %v3594, 0.0
  %v3627 = vmax.f32 %v3595, 0.0
  %v3628 = vmax.f32 %v3596, 0.0
  %v3629 = vmax.f32 %v3597, 0.0
  %v3630 = vmax.f32 %v3598, 0.0
  %v3631 = vmax.f32 %v3599, 0.0
  %v3632 = vmax.f32 %v3600, 0.0
  %v3633 = vmax.f32 %v3601, 0.0
  %v3634 = vmax.f32 %v3602, 0.0
  %v3635 = vmax.f32 %v3603, 0.0
  %v3636 = vmax.f32 %v3604, 0.0
  %v3637 = vmax.f32 %v3605, 0.0
  %v3638 = vmax.f32 %v3606, 0.0
  %v3639 = vmax.f32 %v3607, 0.0
  %v3640 = vmax.f32 %v3608, 0.0
  %v3641 = vmax.f32 %v3609, 0.0
  %v3642 = vmax.f32 %v3610, 0.0
  %v3643 = vmax.f32 %v3611, 0.0
  %v3644 = vld [vmem:[%s1] sm:$0xff]
  %v3645 = vld [vmem:[%s1 + $0x8] sm:$0xff]
  %v3646 = vld [vmem:[%s1 + $0x10] sm:$0xff]
  %v3647 = vld [vmem:[%s1 + $0x18] sm:$0xff]
  %3648 = vset.pattern.permute.xlu0 0
  %3649 = vperm.xlu0 %3648, %v3644
  %v3650 = vpop.permute.xlu0 %3649
  %3651 = vset.pattern.permute.xlu0 0
  %3652 = vperm.xlu0 %3651, %v3645
  %v3653 = vpop.permute.xlu0 %3652
  %3654 = vset.pattern.permute.xlu0 0
  %3655 = vperm.xlu0 %3654, %v3646
  %v3656 = vpop.permute.xlu0 %3655
  %3657 = vset.pattern.permute.xlu0 0
  %3658 = vperm.xlu0 %3657, %v3647
  %v3659 = vpop.permute.xlu0 %3658
  %vm3660 = vcmp.eq.s32.totalorder %v3650, %v569
  %vm3661 = vcmp.eq.s32.totalorder %v3653, %v569
  %vm3662 = vcmp.eq.s32.totalorder %v3656, %v569
  %vm3663 = vcmp.eq.s32.totalorder %v3659, %v569
  %v3664 = vsel %vm3660, 1, 0
  %v3665 = vsel %vm3661, 1, 0
  %v3666 = vsel %vm3662, 1, 0
  %v3667 = vsel %vm3663, 1, 0
  %v3668 = vcvt.s32.f32 %v3664
  %v3669 = vcvt.s32.f32 %v3665
  %v3670 = vcvt.s32.f32 %v3666
  %v3671 = vcvt.s32.f32 %v3667
  %v3672 = vld [vmem:[%s3] sm:$0xff]
  %v3673 = vld [vmem:[%s3 + $0x8] sm:$0xff]
  %v3674 = vld [vmem:[%s3 + $0x10] sm:$0xff]
  %v3675 = vld [vmem:[%s3 + $0x18] sm:$0xff]
  %v3676 = vld [vmem:[%s3 + $0x20] sm:$0xff]
  %v3677 = vld [vmem:[%s3 + $0x28] sm:$0xff]
  %v3678 = vld [vmem:[%s3 + $0x30] sm:$0xff]
  %v3679 = vld [vmem:[%s3 + $0x38] sm:$0xff]
  %v3680 = vld [vmem:[%s3 + $0x40] sm:$0xff]
  %v3681 = vld [vmem:[%s3 + $0x48] sm:$0xff]
  %v3682 = vld [vmem:[%s3 + $0x50] sm:$0xff]
  %v3683 = vld [vmem:[%s3 + $0x58] sm:$0xff]
  %v3684 = vld [vmem:[%s3 + $0x60] sm:$0xff]
  %v3685 = vld [vmem:[%s3 + $0x68] sm:$0xff]
  %v3686 = vld [vmem:[%s3 + $0x70] sm:$0xff]
  %v3687 = vld [vmem:[%s3 + $0x78] sm:$0xff]
  %v3720 = vrot.slane %v3613, 7
  %vm3721 = vcmask 1041409
  %v3722 = vsel %vm3721, %v3720, %v3612
  %v3723 = vrot.slane %v3614, 6
  %vm3724 = vcmask 1042434
  %v3725 = vsel %vm3724, %v3723, %v3722
  %v3726 = vrot.slane %v3615, 5
  %vm3727 = vcmask 1043459
  %v3728 = vsel %vm3727, %v3726, %v3725
  %v3729 = vrot.slane %v3616, 4
  %vm3730 = vcmask 1044484
  %v3731 = vsel %vm3730, %v3729, %v3728
  %v3732 = vrot.slane %v3617, 3
  %vm3733 = vcmask 1045509
  %v3734 = vsel %vm3733, %v3732, %v3731
  %v3735 = vrot.slane %v3618, 2
  %vm3736 = vcmask 1046534
  %v3737 = vsel %vm3736, %v3735, %v3734
  %v3738 = vrot.slane %v3619, 1
  %vm3739 = vcmask 1047559
  %v3740 = vsel %vm3739, %v3738, %v3737
  %v3741 = vrot.slane %v3621, 7
  %v3742 = vsel %vm3721, %v3741, %v3620
  %v3743 = vrot.slane %v3622, 6
  %v3744 = vsel %vm3724, %v3743, %v3742
  %v3745 = vrot.slane %v3623, 5
  %v3746 = vsel %vm3727, %v3745, %v3744
  %v3747 = vrot.slane %v3624, 4
  %v3748 = vsel %vm3730, %v3747, %v3746
  %v3749 = vrot.slane %v3625, 3
  %v3750 = vsel %vm3733, %v3749, %v3748
  %v3751 = vrot.slane %v3626, 2
  %v3752 = vsel %vm3736, %v3751, %v3750
  %v3753 = vrot.slane %v3627, 1
  %v3754 = vsel %vm3739, %v3753, %v3752
  %v3755 = vrot.slane %v3629, 7
  %v3756 = vsel %vm3721, %v3755, %v3628
  %v3757 = vrot.slane %v3630, 6
  %v3758 = vsel %vm3724, %v3757, %v3756
  %v3759 = vrot.slane %v3631, 5
  %v3760 = vsel %vm3727, %v3759, %v3758
  %v3761 = vrot.slane %v3632, 4
  %v3762 = vsel %vm3730, %v3761, %v3760
  %v3763 = vrot.slane %v3633, 3
  %v3764 = vsel %vm3733, %v3763, %v3762
  %v3765 = vrot.slane %v3634, 2
  %v3766 = vsel %vm3736, %v3765, %v3764
  %v3767 = vrot.slane %v3635, 1
  %v3768 = vsel %vm3739, %v3767, %v3766
  %v3769 = vrot.slane %v3637, 7
  %v3770 = vsel %vm3721, %v3769, %v3636
  %v3771 = vrot.slane %v3638, 6
  %v3772 = vsel %vm3724, %v3771, %v3770
  %v3773 = vrot.slane %v3639, 5
  %v3774 = vsel %vm3727, %v3773, %v3772
  %v3775 = vrot.slane %v3640, 4
  %v3776 = vsel %vm3730, %v3775, %v3774
  %v3777 = vrot.slane %v3641, 3
  %v3778 = vsel %vm3733, %v3777, %v3776
  %v3779 = vrot.slane %v3642, 2
  %v3780 = vsel %vm3736, %v3779, %v3778
  %v3781 = vrot.slane %v3643, 1
  %v3782 = vsel %vm3739, %v3781, %v3780
  %3787 = vmatpush.msra.mxu0 %v3687
  %3788 = vmatpush.msra.mxu0 %v3686
  %3789 = vmatpush.msra.mxu0 %v3685
  %3790 = vmatpush.msra.mxu0 %v3684
  %3791 = vmatpush.msra.mxu0 %v3683
  %3792 = vmatpush.msra.mxu0 %v3682
  %3793 = vmatpush.msra.mxu0 %v3681
  %3794 = vmatpush.msra.mxu0 %v3680
  %3795 = vmatpush.msra.mxu0 %v3679
  %3796 = vmatpush.msra.mxu0 %v3678
  %3797 = vmatpush.msra.mxu0 %v3677
  %3798 = vmatpush.msra.mxu0 %v3676
  %3799 = vmatpush.msra.mxu0 %v3675
  %3800 = vmatpush.msra.mxu0 %v3674
  %3801 = vmatpush.msra.mxu0 %v3673
  %3802 = vmatpush.msra.mxu0 %v3672
  %3803 = vmatmul.f32.gmra.mxu0 %v3668
  %v3804 = vpop.f32.mrf.mxu0
  %v3805 = vadd.f32 %v3740, %v3804
  %3806 = vmatmul.f32.gmra.mxu0 %v3669
  %v3807 = vpop.f32.mrf.mxu0
  %v3808 = vadd.f32 %v3754, %v3807
  %3809 = vmatmul.f32.gmra.mxu0 %v3670
  %v3810 = vpop.f32.mrf.mxu0
  %v3811 = vadd.f32 %v3768, %v3810
  %3812 = vmatmul.f32.gmra.mxu0 %v3671
  %v3813 = vpop.f32.mrf.mxu0
  %v3814 = vadd.f32 %v3782, %v3813
  %3815 = vdwg.mxu0
  %3816 = vst [vmem:[%s5] sm:$0xff] %v3805
  %3817 = vst [vmem:[%s5 + $0x8] sm:$0xff] %v3808
  %3818 = vst [vmem:[%s5 + $0x10] sm:$0xff] %v3811
  %3819 = vst [vmem:[%s5 + $0x18] sm:$0xff] %v3814
  // Predicated region
  $region22: #{embedding_forward.1} parent=0 // pred_check
    _
  $region23: #{embedding_forward.1} parent=0 // pred_check_branch
    %3821 = sbr.rel (0) target = $region25
  $region24: #{embedding_forward.1} parent=0 // pred_region
    _
  $region25: #{embedding_forward.1} parent=0 // pred_fallthru
    _
  // Predicated region
  $region26: #{embedding_forward.1} parent=0 // pred_check
    _
  $region27: #{embedding_forward.1} parent=0 // pred_check_branch
    %3823 = sbr.rel (0) target = $region29
  $region28: #{embedding_forward.1} parent=0 // pred_region
    _
  $region29: #{embedding_forward.1} parent=0 // pred_fallthru
    _

</llo_original>
